<compile_context>
chip_gen: v6e
topology: v6e:2x2x1
jax: 0.10.0
libtpu: 0.0.40
codegen_flags: <defaults>
</compile_context>

<pallas_src>
import functools

import jax
import jax.numpy as jnp
from jax.experimental import pallas as pl
from jax.experimental.pallas import tpu as pltpu

_LANE = 128
_MAX_TILE_ROWS = 1024                 # target M-tile size (rows) per grid step
_VMEM_LIMIT = 64 * 1024 * 1024


# ---------------------------------------------------------------------------
# small helpers
# ---------------------------------------------------------------------------
def _rup(x, m):
    return ((x + m - 1) // m) * m


def _pad_last(a, c_to):
    c = a.shape[-1]
    if c == c_to:
        return a
    return jnp.pad(a, [(0, 0)] * (a.ndim - 1) + [(0, c_to - c)])


def _choose_th(ho, wo, max_rows):
    """Largest divisor th of ho with th*wo <= max_rows and (th*wo) % 8 == 0."""
    best = None
    for th in range(1, ho + 1):
        if ho % th == 0 and th * wo <= max_rows and (th * wo) % 8 == 0:
            best = th
    return ho if best is None else best


# ---------------------------------------------------------------------------
# Pallas kernel 1: 3x3 conv as 9 tap matmuls + bias + BN partial statistics
# ---------------------------------------------------------------------------
def _conv_tap_kernel(x_ref, w_ref, b_ref, y_ref, st_ref, *,
                     row_offsets, col_offsets, th, wo):
    # x_ref : (T, Hb, Wb, Cin_p)   bf16 block (T shifted views for this image tile)
    # w_ref : (9, Cin_p, Cout_p)   bf16, tap index = di*3 + dj
    # b_ref : (1, Cout_p)          f32
    # y_ref : (th*wo, Cout_p)      f32 pre-BN output rows for this tile
    # st_ref: (1, 1, 2, Cout_p)    f32 per-tile [sum, sum-of-squares]
    cin_p = x_ref.shape[-1]
    cout_p = w_ref.shape[-1]
    nviews = x_ref.shape[0]
    rows = th * wo

    acc = jnp.zeros((rows, cout_p), jnp.float32)
    k = 0
    for t in range(nviews):
        for r0 in row_offsets:
            for c0 in col_offsets:
                lhs = x_ref[t, r0:r0 + th, c0:c0 + wo, :].reshape(rows, cin_p)
                acc = acc + jnp.dot(lhs, w_ref[k],
                                    preferred_element_type=jnp.float32)
                k += 1

    y = acc + b_ref[...]                       # bias in f32
    y_ref[...] = y.astype(y_ref.dtype)

    # Per-tile partial BN stats (reduced across all tiles outside the kernel —
    # never compute mean/var per tile).
    s = jnp.sum(y, axis=0, keepdims=True)      # (1, Cout_p)
    ss = jnp.sum(y * y, axis=0, keepdims=True)
    st_ref[...] = jnp.concatenate([s, ss], axis=0).reshape(1, 1, 2, cout_p)


# ---------------------------------------------------------------------------
# Pallas kernel 2: apply BN scale/shift (+ optional ReLU), lane-dense 2D tiles
# ---------------------------------------------------------------------------
def _bn_act_kernel(y_ref, sc_ref, sh_ref, o_ref, *, relu):
    y = y_ref[...]                             # (tm, Cp) f32
    out = y * sc_ref[...] + sh_ref[...]        # (1, Cp) broadcast
    if relu:
        out = jnp.maximum(out, 0.0)
    o_ref[...] = out.astype(o_ref.dtype)


# ---------------------------------------------------------------------------
# conv layer wrapper: tap views + tiled pallas_call
# ---------------------------------------------------------------------------
def _conv_layer(x_nhwc, w_oihw, bias, *, stride, compute_dtype,
                max_rows=_MAX_TILE_ROWS):
    N, H, W, cp_in = x_nhwc.shape
    cout, cin = w_oihw.shape[0], w_oihw.shape[1]
    cp_out = _rup(cout, _LANE)
    Ho = (H + 2 - 3) // stride + 1
    Wo = (W + 2 - 3) // stride + 1

    # Weights: (Cout,Cin,3,3) -> (9, Cin_p, Cout_p) bf16, zero-padded channels.
    w_taps = jnp.transpose(w_oihw, (2, 3, 1, 0)).reshape(9, cin, cout)
    w_taps = jnp.pad(w_taps, ((0, 0), (0, cp_in - cin), (0, cp_out - cout)))
    w_taps = w_taps.astype(compute_dtype)
    b_pad = _pad_last(bias.astype(jnp.float32), cp_out).reshape(1, cp_out)

    xp = jnp.pad(x_nhwc, ((0, 0), (1, 1), (1, 1), (0, 0)))   # spatial 1-ring

    if stride == 1 and Ho * Wo <= max_rows:
        # Small image: whole padded image per grid step, all 9 taps sliced
        # in-kernel -> input read exactly once from HBM.
        xs = xp                                               # (N, Ho+2, Wo+2, Cp)
        T, th, hb, wb = 1, Ho, Ho + 2, Wo + 2
        row_off, col_off = (0, 1, 2), (0, 1, 2)
    elif stride == 1:
        # Large image: H-tiled.  3 row-shifted views make the H tiling halo-free
        # with plain Blocked specs; the 3 column taps stay in-kernel.
        th = _choose_th(Ho, Wo, max_rows)
        views = [xp[:, di:di + Ho, :, :] for di in range(3)]
        xs = jnp.stack(views, axis=1).reshape(N * 3, Ho, Wo + 2, cp_in)
        T, hb, wb = 3, th, Wo + 2
        row_off, col_off = (0,), (0, 1, 2)
    else:
        # stride 2 (conv1): 9 output-sized subsampled views; no in-kernel strided
        # slicing needed and each view is 1/stride^2 of the input.
        th = _choose_th(Ho, Wo, max_rows)
        views = [xp[:, di:di + stride * (Ho - 1) + 1:stride,
                    dj:dj + stride * (Wo - 1) + 1:stride, :]
                 for di in range(3) for dj in range(3)]
        xs = jnp.stack(views, axis=1).reshape(N * 9, Ho, Wo, cp_in)
        T, hb, wb = 9, th, Wo
        row_off, col_off = (0,), (0,)

    nh = Ho // th
    tm = th * Wo
    assert tm % 8 == 0, f"tile rows ({tm}) must be a multiple of 8"
    M = N * Ho * Wo

    kernel = functools.partial(_conv_tap_kernel, row_offsets=row_off,
                               col_offsets=col_off, th=th, wo=Wo)
    flops = 2 * M * (9 * cp_in) * cp_out
    bytes_accessed = (xs.size * xs.dtype.itemsize
                      + w_taps.size * w_taps.dtype.itemsize
                      + b_pad.size * 4
                      + M * cp_out * 4
                      + N * nh * 2 * cp_out * 4)

    y2d, stats = pl.pallas_call(
        kernel,
        out_shape=(jax.ShapeDtypeStruct((M, cp_out), jnp.float32),
                   jax.ShapeDtypeStruct((N, nh, 2, cp_out), jnp.float32)),
        grid=(N, nh),
        in_specs=[
            pl.BlockSpec((T, hb, wb, cp_in), lambda n, i: (n, i, 0, 0)),
            pl.BlockSpec((9, cp_in, cp_out), lambda n, i: (0, 0, 0)),
            pl.BlockSpec((1, cp_out), lambda n, i: (0, 0)),
        ],
        out_specs=(
            pl.BlockSpec((tm, cp_out), lambda n, i: (n * nh + i, 0)),
            pl.BlockSpec((1, 1, 2, cp_out), lambda n, i: (n, i, 0, 0)),
        ),
        compiler_params=pltpu.CompilerParams(
            dimension_semantics=("parallel", "parallel"),
            vmem_limit_bytes=_VMEM_LIMIT),
        cost_estimate=pl.CostEstimate(flops=flops, transcendentals=0,
                                      bytes_accessed=bytes_accessed),
    )(xs, w_taps, b_pad)
    return y2d, stats, (Ho, Wo), tm


# ---------------------------------------------------------------------------
# BN (batch statistics) + optional ReLU
# ---------------------------------------------------------------------------
def _bn_apply(y2d, scale, shift, *, tm, relu, out_dtype):
    M, cp = y2d.shape
    kernel = functools.partial(_bn_act_kernel, relu=relu)
    out_bytes = M * cp * jnp.dtype(out_dtype).itemsize
    return pl.pallas_call(
        kernel,
        out_shape=jax.ShapeDtypeStruct((M, cp), out_dtype),
        grid=(M // tm,),
        in_specs=[
            pl.BlockSpec((tm, cp), lambda r: (r, 0)),
            pl.BlockSpec((1, cp), lambda r: (0, 0)),
            pl.BlockSpec((1, cp), lambda r: (0, 0)),
        ],
        out_specs=pl.BlockSpec((tm, cp), lambda r: (r, 0)),
        compiler_params=pltpu.CompilerParams(
            dimension_semantics=("parallel",),
            vmem_limit_bytes=_VMEM_LIMIT),
        cost_estimate=pl.CostEstimate(flops=3 * M * cp, transcendentals=0,
                                      bytes_accessed=M * cp * 4 + out_bytes
                                      + 2 * cp * 4),
    )(y2d, scale.reshape(1, cp), shift.reshape(1, cp))


def _bn_layer(y2d, stats, gamma, beta, *, count, tm, relu, out_dtype, eps):
    cp = y2d.shape[1]
    # Global batch statistics from the per-tile partial sums (biased variance,
    # matching PyTorch training-mode BatchNorm2d forward).
    s = jnp.sum(stats[:, :, 0, :], axis=(0, 1))
    ss = jnp.sum(stats[:, :, 1, :], axis=(0, 1))
    mean = s / count
    var = jnp.maximum(ss / count - mean * mean, 0.0)
    g = _pad_last(gamma.astype(jnp.float32), cp)     # padded channels: gamma=0
    b = _pad_last(beta.astype(jnp.float32), cp)      # padded channels: beta=0
    scale = g * jax.lax.rsqrt(var + eps)
    shift = b - mean * scale
    return _bn_apply(y2d, scale, shift, tm=tm, relu=relu, out_dtype=out_dtype)


def _layer(x4d, w, b, g, be, *, stride, relu, out_dtype, compute_dtype, eps):
    N = x4d.shape[0]
    y2d, stats, (Ho, Wo), tm = _conv_layer(x4d, w, b, stride=stride,
                                           compute_dtype=compute_dtype)
    a2d = _bn_layer(y2d, stats, g, be, count=N * Ho * Wo, tm=tm, relu=relu,
                    out_dtype=out_dtype, eps=eps)
    return a2d.reshape(N, Ho, Wo, -1)


# ---------------------------------------------------------------------------
# block_a forward (public I/O in NCHW like PyTorch)
# ---------------------------------------------------------------------------
def block_a_forward(x_nchw, params, *, eps=1e-5, compute_dtype=jnp.bfloat16):
    N, Cin, H, W = x_nchw.shape
    cout = params["w1"].shape[0]
    x = jnp.transpose(x_nchw, (0, 2, 3, 1))                 # NCHW -> NHWC
    x = _pad_last(x, _rup(Cin, _LANE)).astype(compute_dtype)

    x = _layer(x, params["w1"], params["b1"], params["g1"], params["be1"],
               stride=2, relu=True, out_dtype=compute_dtype,
               compute_dtype=compute_dtype, eps=eps)
    x = _layer(x, params["w2"], params["b2"], params["g2"], params["be2"],
               stride=1, relu=True, out_dtype=compute_dtype,
               compute_dtype=compute_dtype, eps=eps)
    x = _layer(x, params["w3"], params["b3"], params["g3"], params["be3"],
               stride=1, relu=False, out_dtype=jnp.float32,
               compute_dtype=compute_dtype, eps=eps)

    # Dropout2d(p=0.1): identity in eval mode.
    x = x[..., :cout]                                       # drop channel padding
    return jnp.transpose(x, (0, 3, 1, 2))                   # NHWC -> NCHW


# ---------------------------------------------------------------------------
# Pure-JAX reference (lax conv + batch-stat BN) with the same precision policy
# (bf16 conv operands, f32 accumulation / BN math) for a fair tolerance check.
# ---------------------------------------------------------------------------
def block_a_reference(x_nchw, params, *, eps=1e-5, compute_dtype=jnp.bfloat16):
    def conv_bn(x, w, b, g, be, stride, relu):
        y = jax.lax.conv_general_dilated(
            x.astype(compute_dtype),
            jnp.transpose(w, (2, 3, 1, 0)).astype(compute_dtype),
            window_strides=(stride, stride), padding=((1, 1), (1, 1)),
            dimension_numbers=("NHWC", "HWIO", "NHWC"),
            preferred_element_type=jnp.float32)
        y = y + b
        mean = y.mean(axis=(0, 1, 2), keepdims=True)
        var = ((y - mean) ** 2).mean(axis=(0, 1, 2), keepdims=True)
        y = (y - mean) * jax.lax.rsqrt(var + eps) * g + be
        return jnp.maximum(y, 0.0) if relu else y

    x = jnp.transpose(x_nchw, (0, 2, 3, 1))
    x = conv_bn(x, params["w1"], params["b1"], params["g1"], params["be1"],
                2, True).astype(compute_dtype)
    x = conv_bn(x, params["w2"], params["b2"], params["g2"], params["be2"],
                1, True).astype(compute_dtype)
    x = conv_bn(x, params["w3"], params["b3"], params["g3"], params["be3"],
                1, False)
    return jnp.transpose(x, (0, 3, 1, 2))


# ---------------------------------------------------------------------------
def _init_params(key, in_channel, out_channel):
    ks = jax.random.split(key, 12)
    p = {}
    cins = [in_channel, out_channel, out_channel]
    for i in range(3):
        p[f"w{i+1}"] = 0.1 * jax.random.normal(
            ks[4 * i + 0], (out_channel, cins[i], 3, 3), jnp.float32)
        p[f"b{i+1}"] = 0.1 * jax.random.normal(
            ks[4 * i + 1], (out_channel,), jnp.float32)
        p[f"g{i+1}"] = 1.0 + 0.1 * jax.random.normal(
            ks[4 * i + 2], (out_channel,), jnp.float32)
        p[f"be{i+1}"] = 0.1 * jax.random.normal(
            ks[4 * i + 3], (out_channel,), jnp.float32)
    return p


if __name__ == "__main__":
    key = jax.random.PRNGKey(0)
    k_x, k_p = jax.random.split(key)

    N, Cin, H, W = 2, 4, 16, 16
    Cout = 8
    x = jax.random.normal(k_x, (N, Cin, H, W), jnp.float32)
    params = _init_params(k_p, Cin, Cout)

    out = jax.block_until_ready(jax.jit(block_a_forward)(x, params))
    ref = jax.block_until_ready(jax.jit(block_a_reference)(x, params))

    assert out.shape == (N, Cout, H // 2, W // 2), out.shape
    err = float(jnp.max(jnp.abs(out - ref)))
    assert err < 1e-2, err

    print("KERNEL_OK")
</pallas_src>

<mosaic_0001>
module attributes {stable_mosaic.version = 11 : i64} {
  func.func @_conv_tap_kernel(%arg0: i32, %arg1: i32, %arg2: memref<9x8x8x128xbf16, #tpu.memory_space<vmem>>, %arg3: memref<9x128x128xbf16, #tpu.memory_space<vmem>>, %arg4: memref<1x128xf32, #tpu.memory_space<vmem>>, %arg5: memref<64x128xf32, #tpu.memory_space<vmem>>, %arg6: memref<1x1x2x128xf32, #tpu.memory_space<vmem>>) attributes {dimension_semantics = [#tpu.dimension_semantics<parallel>, #tpu.dimension_semantics<parallel>], iteration_bounds = array<i64: 2, 1>, scalar_prefetch = 0 : i64, scratch_operands = 0 : i64, tpu.core_type = #tpu.core_type<tc>, window_params = [{transform_indices = @transform_0, window_bounds = array<i64: 9, 8, 8, 128>}, {pipeline_mode = #tpu.pipeline_mode<synchronous>, transform_indices = @transform_1, window_bounds = array<i64: 9, 128, 128>}, {pipeline_mode = #tpu.pipeline_mode<synchronous>, transform_indices = @transform_2, window_bounds = array<i64: 1, 128>}, {transform_indices = @transform_3, window_bounds = array<i64: 64, 128>}, {transform_indices = @transform_4, window_bounds = array<i64: 1, 1, 2, 128>}]} {
    %cst = arith.constant 0.000000e+00 : f32
    %0 = vector.broadcast %cst : f32 to vector<64x128xf32>
    %c0 = arith.constant 0 : index
    %c0_0 = arith.constant 0 : index
    %c0_1 = arith.constant 0 : index
    %c0_2 = arith.constant 0 : index
    %1 = vector.load %arg2[%c0, %c0_0, %c0_1, %c0_2] : memref<9x8x8x128xbf16, #tpu.memory_space<vmem>>, vector<1x8x8x128xbf16>
    %2 = vector.shape_cast %1 : vector<1x8x8x128xbf16> to vector<8x8x128xbf16>
    %3 = vector.shape_cast %2 : vector<8x8x128xbf16> to vector<64x128xbf16>
    %c0_3 = arith.constant 0 : index
    %c0_4 = arith.constant 0 : index
    %c0_5 = arith.constant 0 : index
    %4 = vector.load %arg3[%c0_3, %c0_4, %c0_5] : memref<9x128x128xbf16, #tpu.memory_space<vmem>>, vector<1x128x128xbf16>
    %5 = vector.shape_cast %4 : vector<1x128x128xbf16> to vector<128x128xbf16>
    %cst_6 = arith.constant dense<0.000000e+00> : vector<64x128xf32>
    %6 = tpu.matmul %3, %5, %cst_6 {dimension_numbers = #tpu.dot_dimension_numbers<[1], [0], [0], [1], [0, 0, 1, 1], [], []>} : vector<64x128xbf16>, vector<128x128xbf16>, vector<64x128xf32> -> vector<64x128xf32>
    %7 = arith.addf %0, %6 : vector<64x128xf32>
    %c1 = arith.constant 1 : index
    %c0_7 = arith.constant 0 : index
    %c0_8 = arith.constant 0 : index
    %c0_9 = arith.constant 0 : index
    %8 = vector.load %arg2[%c1, %c0_7, %c0_8, %c0_9] : memref<9x8x8x128xbf16, #tpu.memory_space<vmem>>, vector<1x8x8x128xbf16>
    %9 = vector.shape_cast %8 : vector<1x8x8x128xbf16> to vector<8x8x128xbf16>
    %10 = vector.shape_cast %9 : vector<8x8x128xbf16> to vector<64x128xbf16>
    %c1_10 = arith.constant 1 : index
    %c0_11 = arith.constant 0 : index
    %c0_12 = arith.constant 0 : index
    %11 = vector.load %arg3[%c1_10, %c0_11, %c0_12] : memref<9x128x128xbf16, #tpu.memory_space<vmem>>, vector<1x128x128xbf16>
    %12 = vector.shape_cast %11 : vector<1x128x128xbf16> to vector<128x128xbf16>
    %cst_13 = arith.constant dense<0.000000e+00> : vector<64x128xf32>
    %13 = tpu.matmul %10, %12, %cst_13 {dimension_numbers = #tpu.dot_dimension_numbers<[1], [0], [0], [1], [0, 0, 1, 1], [], []>} : vector<64x128xbf16>, vector<128x128xbf16>, vector<64x128xf32> -> vector<64x128xf32>
    %14 = arith.addf %7, %13 : vector<64x128xf32>
    %c2 = arith.constant 2 : index
    %c0_14 = arith.constant 0 : index
    %c0_15 = arith.constant 0 : index
    %c0_16 = arith.constant 0 : index
    %15 = vector.load %arg2[%c2, %c0_14, %c0_15, %c0_16] : memref<9x8x8x128xbf16, #tpu.memory_space<vmem>>, vector<1x8x8x128xbf16>
    %16 = vector.shape_cast %15 : vector<1x8x8x128xbf16> to vector<8x8x128xbf16>
    %17 = vector.shape_cast %16 : vector<8x8x128xbf16> to vector<64x128xbf16>
    %c2_17 = arith.constant 2 : index
    %c0_18 = arith.constant 0 : index
    %c0_19 = arith.constant 0 : index
    %18 = vector.load %arg3[%c2_17, %c0_18, %c0_19] : memref<9x128x128xbf16, #tpu.memory_space<vmem>>, vector<1x128x128xbf16>
    %19 = vector.shape_cast %18 : vector<1x128x128xbf16> to vector<128x128xbf16>
    %cst_20 = arith.constant dense<0.000000e+00> : vector<64x128xf32>
    %20 = tpu.matmul %17, %19, %cst_20 {dimension_numbers = #tpu.dot_dimension_numbers<[1], [0], [0], [1], [0, 0, 1, 1], [], []>} : vector<64x128xbf16>, vector<128x128xbf16>, vector<64x128xf32> -> vector<64x128xf32>
    %21 = arith.addf %14, %20 : vector<64x128xf32>
    %c3 = arith.constant 3 : index
    %c0_21 = arith.constant 0 : index
    %c0_22 = arith.constant 0 : index
    %c0_23 = arith.constant 0 : index
    %22 = vector.load %arg2[%c3, %c0_21, %c0_22, %c0_23] : memref<9x8x8x128xbf16, #tpu.memory_space<vmem>>, vector<1x8x8x128xbf16>
    %23 = vector.shape_cast %22 : vector<1x8x8x128xbf16> to vector<8x8x128xbf16>
    %24 = vector.shape_cast %23 : vector<8x8x128xbf16> to vector<64x128xbf16>
    %c3_24 = arith.constant 3 : index
    %c0_25 = arith.constant 0 : index
    %c0_26 = arith.constant 0 : index
    %25 = vector.load %arg3[%c3_24, %c0_25, %c0_26] : memref<9x128x128xbf16, #tpu.memory_space<vmem>>, vector<1x128x128xbf16>
    %26 = vector.shape_cast %25 : vector<1x128x128xbf16> to vector<128x128xbf16>
    %cst_27 = arith.constant dense<0.000000e+00> : vector<64x128xf32>
    %27 = tpu.matmul %24, %26, %cst_27 {dimension_numbers = #tpu.dot_dimension_numbers<[1], [0], [0], [1], [0, 0, 1, 1], [], []>} : vector<64x128xbf16>, vector<128x128xbf16>, vector<64x128xf32> -> vector<64x128xf32>
    %28 = arith.addf %21, %27 : vector<64x128xf32>
    %c4 = arith.constant 4 : index
    %c0_28 = arith.constant 0 : index
    %c0_29 = arith.constant 0 : index
    %c0_30 = arith.constant 0 : index
    %29 = vector.load %arg2[%c4, %c0_28, %c0_29, %c0_30] : memref<9x8x8x128xbf16, #tpu.memory_space<vmem>>, vector<1x8x8x128xbf16>
    %30 = vector.shape_cast %29 : vector<1x8x8x128xbf16> to vector<8x8x128xbf16>
    %31 = vector.shape_cast %30 : vector<8x8x128xbf16> to vector<64x128xbf16>
    %c4_31 = arith.constant 4 : index
    %c0_32 = arith.constant 0 : index
    %c0_33 = arith.constant 0 : index
    %32 = vector.load %arg3[%c4_31, %c0_32, %c0_33] : memref<9x128x128xbf16, #tpu.memory_space<vmem>>, vector<1x128x128xbf16>
    %33 = vector.shape_cast %32 : vector<1x128x128xbf16> to vector<128x128xbf16>
    %cst_34 = arith.constant dense<0.000000e+00> : vector<64x128xf32>
    %34 = tpu.matmul %31, %33, %cst_34 {dimension_numbers = #tpu.dot_dimension_numbers<[1], [0], [0], [1], [0, 0, 1, 1], [], []>} : vector<64x128xbf16>, vector<128x128xbf16>, vector<64x128xf32> -> vector<64x128xf32>
    %35 = arith.addf %28, %34 : vector<64x128xf32>
    %c5 = arith.constant 5 : index
    %c0_35 = arith.constant 0 : index
    %c0_36 = arith.constant 0 : index
    %c0_37 = arith.constant 0 : index
    %36 = vector.load %arg2[%c5, %c0_35, %c0_36, %c0_37] : memref<9x8x8x128xbf16, #tpu.memory_space<vmem>>, vector<1x8x8x128xbf16>
    %37 = vector.shape_cast %36 : vector<1x8x8x128xbf16> to vector<8x8x128xbf16>
    %38 = vector.shape_cast %37 : vector<8x8x128xbf16> to vector<64x128xbf16>
    %c5_38 = arith.constant 5 : index
    %c0_39 = arith.constant 0 : index
    %c0_40 = arith.constant 0 : index
    %39 = vector.load %arg3[%c5_38, %c0_39, %c0_40] : memref<9x128x128xbf16, #tpu.memory_space<vmem>>, vector<1x128x128xbf16>
    %40 = vector.shape_cast %39 : vector<1x128x128xbf16> to vector<128x128xbf16>
    %cst_41 = arith.constant dense<0.000000e+00> : vector<64x128xf32>
    %41 = tpu.matmul %38, %40, %cst_41 {dimension_numbers = #tpu.dot_dimension_numbers<[1], [0], [0], [1], [0, 0, 1, 1], [], []>} : vector<64x128xbf16>, vector<128x128xbf16>, vector<64x128xf32> -> vector<64x128xf32>
    %42 = arith.addf %35, %41 : vector<64x128xf32>
    %c6 = arith.constant 6 : index
    %c0_42 = arith.constant 0 : index
    %c0_43 = arith.constant 0 : index
    %c0_44 = arith.constant 0 : index
    %43 = vector.load %arg2[%c6, %c0_42, %c0_43, %c0_44] : memref<9x8x8x128xbf16, #tpu.memory_space<vmem>>, vector<1x8x8x128xbf16>
    %44 = vector.shape_cast %43 : vector<1x8x8x128xbf16> to vector<8x8x128xbf16>
    %45 = vector.shape_cast %44 : vector<8x8x128xbf16> to vector<64x128xbf16>
    %c6_45 = arith.constant 6 : index
    %c0_46 = arith.constant 0 : index
    %c0_47 = arith.constant 0 : index
    %46 = vector.load %arg3[%c6_45, %c0_46, %c0_47] : memref<9x128x128xbf16, #tpu.memory_space<vmem>>, vector<1x128x128xbf16>
    %47 = vector.shape_cast %46 : vector<1x128x128xbf16> to vector<128x128xbf16>
    %cst_48 = arith.constant dense<0.000000e+00> : vector<64x128xf32>
    %48 = tpu.matmul %45, %47, %cst_48 {dimension_numbers = #tpu.dot_dimension_numbers<[1], [0], [0], [1], [0, 0, 1, 1], [], []>} : vector<64x128xbf16>, vector<128x128xbf16>, vector<64x128xf32> -> vector<64x128xf32>
    %49 = arith.addf %42, %48 : vector<64x128xf32>
    %c7 = arith.constant 7 : index
    %c0_49 = arith.constant 0 : index
    %c0_50 = arith.constant 0 : index
    %c0_51 = arith.constant 0 : index
    %50 = vector.load %arg2[%c7, %c0_49, %c0_50, %c0_51] : memref<9x8x8x128xbf16, #tpu.memory_space<vmem>>, vector<1x8x8x128xbf16>
    %51 = vector.shape_cast %50 : vector<1x8x8x128xbf16> to vector<8x8x128xbf16>
    %52 = vector.shape_cast %51 : vector<8x8x128xbf16> to vector<64x128xbf16>
    %c7_52 = arith.constant 7 : index
    %c0_53 = arith.constant 0 : index
    %c0_54 = arith.constant 0 : index
    %53 = vector.load %arg3[%c7_52, %c0_53, %c0_54] : memref<9x128x128xbf16, #tpu.memory_space<vmem>>, vector<1x128x128xbf16>
    %54 = vector.shape_cast %53 : vector<1x128x128xbf16> to vector<128x128xbf16>
    %cst_55 = arith.constant dense<0.000000e+00> : vector<64x128xf32>
    %55 = tpu.matmul %52, %54, %cst_55 {dimension_numbers = #tpu.dot_dimension_numbers<[1], [0], [0], [1], [0, 0, 1, 1], [], []>} : vector<64x128xbf16>, vector<128x128xbf16>, vector<64x128xf32> -> vector<64x128xf32>
    %56 = arith.addf %49, %55 : vector<64x128xf32>
    %c8 = arith.constant 8 : index
    %c0_56 = arith.constant 0 : index
    %c0_57 = arith.constant 0 : index
    %c0_58 = arith.constant 0 : index
    %57 = vector.load %arg2[%c8, %c0_56, %c0_57, %c0_58] : memref<9x8x8x128xbf16, #tpu.memory_space<vmem>>, vector<1x8x8x128xbf16>
    %58 = vector.shape_cast %57 : vector<1x8x8x128xbf16> to vector<8x8x128xbf16>
    %59 = vector.shape_cast %58 : vector<8x8x128xbf16> to vector<64x128xbf16>
    %c8_59 = arith.constant 8 : index
    %c0_60 = arith.constant 0 : index
    %c0_61 = arith.constant 0 : index
    %60 = vector.load %arg3[%c8_59, %c0_60, %c0_61] : memref<9x128x128xbf16, #tpu.memory_space<vmem>>, vector<1x128x128xbf16>
    %61 = vector.shape_cast %60 : vector<1x128x128xbf16> to vector<128x128xbf16>
    %cst_62 = arith.constant dense<0.000000e+00> : vector<64x128xf32>
    %62 = tpu.matmul %59, %61, %cst_62 {dimension_numbers = #tpu.dot_dimension_numbers<[1], [0], [0], [1], [0, 0, 1, 1], [], []>} : vector<64x128xbf16>, vector<128x128xbf16>, vector<64x128xf32> -> vector<64x128xf32>
    %63 = arith.addf %56, %62 : vector<64x128xf32>
    %c0_63 = arith.constant 0 : index
    %c0_64 = arith.constant 0 : index
    %64 = vector.load %arg4[%c0_63, %c0_64] : memref<1x128xf32, #tpu.memory_space<vmem>>, vector<1x128xf32>
    %65 = vector.broadcast %64 : vector<1x128xf32> to vector<64x128xf32>
    %66 = arith.addf %63, %65 : vector<64x128xf32>
    %c0_65 = arith.constant 0 : index
    %c0_66 = arith.constant 0 : index
    %67 = vector.load %arg5[%c0_65, %c0_66] : memref<64x128xf32, #tpu.memory_space<vmem>>, vector<64x128xf32>
    tpu.vector_store %arg5[%c0_65, %c0_66], %66 {strides = array<i32>} : memref<64x128xf32, #tpu.memory_space<vmem>>, vector<64x128xf32>,
    %cst_67 = arith.constant dense<0.000000e+00> : vector<128xf32>
    %68 = vector.multi_reduction <add>, %66, %cst_67 [0] : vector<64x128xf32> to vector<128xf32>
    %69 = vector.shape_cast %68 : vector<128xf32> to vector<1x128xf32>
    %70 = arith.mulf %66, %66 : vector<64x128xf32>
    %cst_68 = arith.constant dense<0.000000e+00> : vector<128xf32>
    %71 = vector.multi_reduction <add>, %70, %cst_68 [0] : vector<64x128xf32> to vector<128xf32>
    %72 = vector.shape_cast %71 : vector<128xf32> to vector<1x128xf32>
    %73 = tpu.concatenate %69, %72 in 0 : vector<1x128xf32>, vector<1x128xf32> -> vector<2x128xf32>
    %74 = vector.shape_cast %73 : vector<2x128xf32> to vector<1x1x2x128xf32>
    %c0_69 = arith.constant 0 : index
    %c0_70 = arith.constant 0 : index
    %c0_71 = arith.constant 0 : index
    %c0_72 = arith.constant 0 : index
    %75 = vector.load %arg6[%c0_69, %c0_70, %c0_71, %c0_72] : memref<1x1x2x128xf32, #tpu.memory_space<vmem>>, vector<1x1x2x128xf32>
    tpu.vector_store %arg6[%c0_69, %c0_70, %c0_71, %c0_72], %74 {strides = array<i32>} : memref<1x1x2x128xf32, #tpu.memory_space<vmem>>, vector<1x1x2x128xf32>,
    return
  }
  func.func @transform_0(%arg0: i32, %arg1: i32) -> (i32, i32, i32, i32) {
    %c0_i32 = arith.constant 0 : i32
    %c0_i32_0 = arith.constant 0 : i32
    %c0_i32_1 = arith.constant 0 : i32
    return %arg0, %arg1, %c0_i32, %c0_i32_0 : i32, i32, i32, i32
  }
  func.func @transform_1(%arg0: i32, %arg1: i32) -> (i32, i32, i32) {
    %c0_i32 = arith.constant 0 : i32
    %c0_i32_0 = arith.constant 0 : i32
    %c0_i32_1 = arith.constant 0 : i32
    %c0_i32_2 = arith.constant 0 : i32
    return %c0_i32, %c0_i32_0, %c0_i32_1 : i32, i32, i32
  }
  func.func @transform_2(%arg0: i32, %arg1: i32) -> (i32, i32) {
    %c0_i32 = arith.constant 0 : i32
    %c0_i32_0 = arith.constant 0 : i32
    %c0_i32_1 = arith.constant 0 : i32
    return %c0_i32, %c0_i32_0 : i32, i32
  }
  func.func @transform_3(%arg0: i32, %arg1: i32) -> (i32, i32) {
    %c1_i32 = arith.constant 1 : i32
    %0 = arith.muli %arg0, %c1_i32 : i32
    %1 = arith.addi %0, %arg1 : i32
    %c0_i32 = arith.constant 0 : i32
    %c0_i32_0 = arith.constant 0 : i32
    return %1, %c0_i32 : i32, i32
  }
  func.func @transform_4(%arg0: i32, %arg1: i32) -> (i32, i32, i32, i32) {
    %c0_i32 = arith.constant 0 : i32
    %c0_i32_0 = arith.constant 0 : i32
    %c0_i32_1 = arith.constant 0 : i32
    return %arg0, %arg1, %c0_i32, %c0_i32_0 : i32, i32, i32, i32
  }
}

module attributes {stable_mosaic.version = 11 : i64} {
  func.func @_bn_act_kernel(%arg0: i32, %arg1: memref<64x128xf32, #tpu.memory_space<vmem>>, %arg2: memref<1x128xf32, #tpu.memory_space<vmem>>, %arg3: memref<1x128xf32, #tpu.memory_space<vmem>>, %arg4: memref<64x128xbf16, #tpu.memory_space<vmem>>) attributes {dimension_semantics = [#tpu.dimension_semantics<parallel>], iteration_bounds = array<i64: 2>, scalar_prefetch = 0 : i64, scratch_operands = 0 : i64, tpu.core_type = #tpu.core_type<tc>, window_params = [{transform_indices = @transform_0, window_bounds = array<i64: 64, 128>}, {pipeline_mode = #tpu.pipeline_mode<synchronous>, transform_indices = @transform_1, window_bounds = array<i64: 1, 128>}, {pipeline_mode = #tpu.pipeline_mode<synchronous>, transform_indices = @transform_2, window_bounds = array<i64: 1, 128>}, {transform_indices = @transform_3, window_bounds = array<i64: 64, 128>}]} {
    %c0 = arith.constant 0 : index
    %c0_0 = arith.constant 0 : index
    %0 = vector.load %arg1[%c0, %c0_0] : memref<64x128xf32, #tpu.memory_space<vmem>>, vector<64x128xf32>
    %c0_1 = arith.constant 0 : index
    %c0_2 = arith.constant 0 : index
    %1 = vector.load %arg2[%c0_1, %c0_2] : memref<1x128xf32, #tpu.memory_space<vmem>>, vector<1x128xf32>
    %2 = vector.broadcast %1 : vector<1x128xf32> to vector<64x128xf32>
    %3 = arith.mulf %0, %2 : vector<64x128xf32>
    %c0_3 = arith.constant 0 : index
    %c0_4 = arith.constant 0 : index
    %4 = vector.load %arg3[%c0_3, %c0_4] : memref<1x128xf32, #tpu.memory_space<vmem>>, vector<1x128xf32>
    %5 = vector.broadcast %4 : vector<1x128xf32> to vector<64x128xf32>
    %6 = arith.addf %3, %5 : vector<64x128xf32>
    %cst = arith.constant 0.000000e+00 : f32
    %7 = vector.broadcast %cst : f32 to vector<64x128xf32>
    %8 = arith.maximumf %6, %7 : vector<64x128xf32>
    %9 = arith.truncf %8 : vector<64x128xf32> to vector<64x128xbf16>
    %c0_5 = arith.constant 0 : index
    %c0_6 = arith.constant 0 : index
    %10 = vector.load %arg4[%c0_5, %c0_6] : memref<64x128xbf16, #tpu.memory_space<vmem>>, vector<64x128xbf16>
    tpu.vector_store %arg4[%c0_5, %c0_6], %9 {strides = array<i32>} : memref<64x128xbf16, #tpu.memory_space<vmem>>, vector<64x128xbf16>,
    return
  }
  func.func @transform_0(%arg0: i32) -> (i32, i32) {
    %c0_i32 = arith.constant 0 : i32
    %c0_i32_0 = arith.constant 0 : i32
    return %arg0, %c0_i32 : i32, i32
  }
  func.func @transform_1(%arg0: i32) -> (i32, i32) {
    %c0_i32 = arith.constant 0 : i32
    %c0_i32_0 = arith.constant 0 : i32
    %c0_i32_1 = arith.constant 0 : i32
    return %c0_i32, %c0_i32_0 : i32, i32
  }
  func.func @transform_2(%arg0: i32) -> (i32, i32) {
    %c0_i32 = arith.constant 0 : i32
    %c0_i32_0 = arith.constant 0 : i32
    %c0_i32_1 = arith.constant 0 : i32
    return %c0_i32, %c0_i32_0 : i32, i32
  }
  func.func @transform_3(%arg0: i32) -> (i32, i32) {
    %c0_i32 = arith.constant 0 : i32
    %c0_i32_0 = arith.constant 0 : i32
    return %arg0, %c0_i32 : i32, i32
  }
}

module attributes {stable_mosaic.version = 11 : i64} {
  func.func @_bn_act_kernel(%arg0: i32, %arg1: memref<64x128xf32, #tpu.memory_space<vmem>>, %arg2: memref<1x128xf32, #tpu.memory_space<vmem>>, %arg3: memref<1x128xf32, #tpu.memory_space<vmem>>, %arg4: memref<64x128xf32, #tpu.memory_space<vmem>>) attributes {dimension_semantics = [#tpu.dimension_semantics<parallel>], iteration_bounds = array<i64: 2>, scalar_prefetch = 0 : i64, scratch_operands = 0 : i64, tpu.core_type = #tpu.core_type<tc>, window_params = [{transform_indices = @transform_0, window_bounds = array<i64: 64, 128>}, {pipeline_mode = #tpu.pipeline_mode<synchronous>, transform_indices = @transform_1, window_bounds = array<i64: 1, 128>}, {pipeline_mode = #tpu.pipeline_mode<synchronous>, transform_indices = @transform_2, window_bounds = array<i64: 1, 128>}, {transform_indices = @transform_3, window_bounds = array<i64: 64, 128>}]} {
    %c0 = arith.constant 0 : index
    %c0_0 = arith.constant 0 : index
    %0 = vector.load %arg1[%c0, %c0_0] : memref<64x128xf32, #tpu.memory_space<vmem>>, vector<64x128xf32>
    %c0_1 = arith.constant 0 : index
    %c0_2 = arith.constant 0 : index
    %1 = vector.load %arg2[%c0_1, %c0_2] : memref<1x128xf32, #tpu.memory_space<vmem>>, vector<1x128xf32>
    %2 = vector.broadcast %1 : vector<1x128xf32> to vector<64x128xf32>
    %3 = arith.mulf %0, %2 : vector<64x128xf32>
    %c0_3 = arith.constant 0 : index
    %c0_4 = arith.constant 0 : index
    %4 = vector.load %arg3[%c0_3, %c0_4] : memref<1x128xf32, #tpu.memory_space<vmem>>, vector<1x128xf32>
    %5 = vector.broadcast %4 : vector<1x128xf32> to vector<64x128xf32>
    %6 = arith.addf %3, %5 : vector<64x128xf32>
    %c0_5 = arith.constant 0 : index
    %c0_6 = arith.constant 0 : index
    %7 = vector.load %arg4[%c0_5, %c0_6] : memref<64x128xf32, #tpu.memory_space<vmem>>, vector<64x128xf32>
    tpu.vector_store %arg4[%c0_5, %c0_6], %6 {strides = array<i32>} : memref<64x128xf32, #tpu.memory_space<vmem>>, vector<64x128xf32>,
    return
  }
  func.func @transform_0(%arg0: i32) -> (i32, i32) {
    %c0_i32 = arith.constant 0 : i32
    %c0_i32_0 = arith.constant 0 : i32
    return %arg0, %c0_i32 : i32, i32
  }
  func.func @transform_1(%arg0: i32) -> (i32, i32) {
    %c0_i32 = arith.constant 0 : i32
    %c0_i32_0 = arith.constant 0 : i32
    %c0_i32_1 = arith.constant 0 : i32
    return %c0_i32, %c0_i32_0 : i32, i32
  }
  func.func @transform_2(%arg0: i32) -> (i32, i32) {
    %c0_i32 = arith.constant 0 : i32
    %c0_i32_0 = arith.constant 0 : i32
    %c0_i32_1 = arith.constant 0 : i32
    return %c0_i32, %c0_i32_0 : i32, i32
  }
  func.func @transform_3(%arg0: i32) -> (i32, i32) {
    %c0_i32 = arith.constant 0 : i32
    %c0_i32_0 = arith.constant 0 : i32
    return %arg0, %c0_i32 : i32, i32
  }
}

module attributes {stable_mosaic.version = 11 : i64} {
  func.func @_conv_tap_kernel(%arg0: i32, %arg1: i32, %arg2: memref<1x10x10x128xbf16, #tpu.memory_space<vmem>>, %arg3: memref<9x128x128xbf16, #tpu.memory_space<vmem>>, %arg4: memref<1x128xf32, #tpu.memory_space<vmem>>, %arg5: memref<64x128xf32, #tpu.memory_space<vmem>>, %arg6: memref<1x1x2x128xf32, #tpu.memory_space<vmem>>) attributes {dimension_semantics = [#tpu.dimension_semantics<parallel>, #tpu.dimension_semantics<parallel>], iteration_bounds = array<i64: 2, 1>, scalar_prefetch = 0 : i64, scratch_operands = 0 : i64, tpu.core_type = #tpu.core_type<tc>, window_params = [{transform_indices = @transform_0, window_bounds = array<i64: 1, 10, 10, 128>}, {pipeline_mode = #tpu.pipeline_mode<synchronous>, transform_indices = @transform_1, window_bounds = array<i64: 9, 128, 128>}, {pipeline_mode = #tpu.pipeline_mode<synchronous>, transform_indices = @transform_2, window_bounds = array<i64: 1, 128>}, {transform_indices = @transform_3, window_bounds = array<i64: 64, 128>}, {transform_indices = @transform_4, window_bounds = array<i64: 1, 1, 2, 128>}]} {
    %cst = arith.constant 0.000000e+00 : f32
    %0 = vector.broadcast %cst : f32 to vector<64x128xf32>
    %c0 = arith.constant 0 : index
    %c0_0 = arith.constant 0 : index
    %c0_1 = arith.constant 0 : index
    %c0_2 = arith.constant 0 : index
    %1 = vector.load %arg2[%c0, %c0_0, %c0_1, %c0_2] : memref<1x10x10x128xbf16, #tpu.memory_space<vmem>>, vector<1x8x8x128xbf16>
    %2 = vector.shape_cast %1 : vector<1x8x8x128xbf16> to vector<8x8x128xbf16>
    %3 = vector.shape_cast %2 : vector<8x8x128xbf16> to vector<64x128xbf16>
    %c0_3 = arith.constant 0 : index
    %c0_4 = arith.constant 0 : index
    %c0_5 = arith.constant 0 : index
    %4 = vector.load %arg3[%c0_3, %c0_4, %c0_5] : memref<9x128x128xbf16, #tpu.memory_space<vmem>>, vector<1x128x128xbf16>
    %5 = vector.shape_cast %4 : vector<1x128x128xbf16> to vector<128x128xbf16>
    %cst_6 = arith.constant dense<0.000000e+00> : vector<64x128xf32>
    %6 = tpu.matmul %3, %5, %cst_6 {dimension_numbers = #tpu.dot_dimension_numbers<[1], [0], [0], [1], [0, 0, 1, 1], [], []>} : vector<64x128xbf16>, vector<128x128xbf16>, vector<64x128xf32> -> vector<64x128xf32>
    %7 = arith.addf %0, %6 : vector<64x128xf32>
    %c0_7 = arith.constant 0 : index
    %c0_8 = arith.constant 0 : index
    %c1 = arith.constant 1 : index
    %c0_9 = arith.constant 0 : index
    %8 = vector.load %arg2[%c0_7, %c0_8, %c1, %c0_9] : memref<1x10x10x128xbf16, #tpu.memory_space<vmem>>, vector<1x8x8x128xbf16>
    %9 = vector.shape_cast %8 : vector<1x8x8x128xbf16> to vector<8x8x128xbf16>
    %10 = vector.shape_cast %9 : vector<8x8x128xbf16> to vector<64x128xbf16>
    %c1_10 = arith.constant 1 : index
    %c0_11 = arith.constant 0 : index
    %c0_12 = arith.constant 0 : index
    %11 = vector.load %arg3[%c1_10, %c0_11, %c0_12] : memref<9x128x128xbf16, #tpu.memory_space<vmem>>, vector<1x128x128xbf16>
    %12 = vector.shape_cast %11 : vector<1x128x128xbf16> to vector<128x128xbf16>
    %cst_13 = arith.constant dense<0.000000e+00> : vector<64x128xf32>
    %13 = tpu.matmul %10, %12, %cst_13 {dimension_numbers = #tpu.dot_dimension_numbers<[1], [0], [0], [1], [0, 0, 1, 1], [], []>} : vector<64x128xbf16>, vector<128x128xbf16>, vector<64x128xf32> -> vector<64x128xf32>
    %14 = arith.addf %7, %13 : vector<64x128xf32>
    %c0_14 = arith.constant 0 : index
    %c0_15 = arith.constant 0 : index
    %c2 = arith.constant 2 : index
    %c0_16 = arith.constant 0 : index
    %15 = vector.load %arg2[%c0_14, %c0_15, %c2, %c0_16] : memref<1x10x10x128xbf16, #tpu.memory_space<vmem>>, vector<1x8x8x128xbf16>
    %16 = vector.shape_cast %15 : vector<1x8x8x128xbf16> to vector<8x8x128xbf16>
    %17 = vector.shape_cast %16 : vector<8x8x128xbf16> to vector<64x128xbf16>
    %c2_17 = arith.constant 2 : index
    %c0_18 = arith.constant 0 : index
    %c0_19 = arith.constant 0 : index
    %18 = vector.load %arg3[%c2_17, %c0_18, %c0_19] : memref<9x128x128xbf16, #tpu.memory_space<vmem>>, vector<1x128x128xbf16>
    %19 = vector.shape_cast %18 : vector<1x128x128xbf16> to vector<128x128xbf16>
    %cst_20 = arith.constant dense<0.000000e+00> : vector<64x128xf32>
    %20 = tpu.matmul %17, %19, %cst_20 {dimension_numbers = #tpu.dot_dimension_numbers<[1], [0], [0], [1], [0, 0, 1, 1], [], []>} : vector<64x128xbf16>, vector<128x128xbf16>, vector<64x128xf32> -> vector<64x128xf32>
    %21 = arith.addf %14, %20 : vector<64x128xf32>
    %c0_21 = arith.constant 0 : index
    %c1_22 = arith.constant 1 : index
    %c0_23 = arith.constant 0 : index
    %c0_24 = arith.constant 0 : index
    %22 = vector.load %arg2[%c0_21, %c1_22, %c0_23, %c0_24] : memref<1x10x10x128xbf16, #tpu.memory_space<vmem>>, vector<1x8x8x128xbf16>
    %23 = vector.shape_cast %22 : vector<1x8x8x128xbf16> to vector<8x8x128xbf16>
    %24 = vector.shape_cast %23 : vector<8x8x128xbf16> to vector<64x128xbf16>
    %c3 = arith.constant 3 : index
    %c0_25 = arith.constant 0 : index
    %c0_26 = arith.constant 0 : index
    %25 = vector.load %arg3[%c3, %c0_25, %c0_26] : memref<9x128x128xbf16, #tpu.memory_space<vmem>>, vector<1x128x128xbf16>
    %26 = vector.shape_cast %25 : vector<1x128x128xbf16> to vector<128x128xbf16>
    %cst_27 = arith.constant dense<0.000000e+00> : vector<64x128xf32>
    %27 = tpu.matmul %24, %26, %cst_27 {dimension_numbers = #tpu.dot_dimension_numbers<[1], [0], [0], [1], [0, 0, 1, 1], [], []>} : vector<64x128xbf16>, vector<128x128xbf16>, vector<64x128xf32> -> vector<64x128xf32>
    %28 = arith.addf %21, %27 : vector<64x128xf32>
    %c0_28 = arith.constant 0 : index
    %c1_29 = arith.constant 1 : index
    %c1_30 = arith.constant 1 : index
    %c0_31 = arith.constant 0 : index
    %29 = vector.load %arg2[%c0_28, %c1_29, %c1_30, %c0_31] : memref<1x10x10x128xbf16, #tpu.memory_space<vmem>>, vector<1x8x8x128xbf16>
    %30 = vector.shape_cast %29 : vector<1x8x8x128xbf16> to vector<8x8x128xbf16>
    %31 = vector.shape_cast %30 : vector<8x8x128xbf16> to vector<64x128xbf16>
    %c4 = arith.constant 4 : index
    %c0_32 = arith.constant 0 : index
    %c0_33 = arith.constant 0 : index
    %32 = vector.load %arg3[%c4, %c0_32, %c0_33] : memref<9x128x128xbf16, #tpu.memory_space<vmem>>, vector<1x128x128xbf16>
    %33 = vector.shape_cast %32 : vector<1x128x128xbf16> to vector<128x128xbf16>
    %cst_34 = arith.constant dense<0.000000e+00> : vector<64x128xf32>
    %34 = tpu.matmul %31, %33, %cst_34 {dimension_numbers = #tpu.dot_dimension_numbers<[1], [0], [0], [1], [0, 0, 1, 1], [], []>} : vector<64x128xbf16>, vector<128x128xbf16>, vector<64x128xf32> -> vector<64x128xf32>
    %35 = arith.addf %28, %34 : vector<64x128xf32>
    %c0_35 = arith.constant 0 : index
    %c1_36 = arith.constant 1 : index
    %c2_37 = arith.constant 2 : index
    %c0_38 = arith.constant 0 : index
    %36 = vector.load %arg2[%c0_35, %c1_36, %c2_37, %c0_38] : memref<1x10x10x128xbf16, #tpu.memory_space<vmem>>, vector<1x8x8x128xbf16>
    %37 = vector.shape_cast %36 : vector<1x8x8x128xbf16> to vector<8x8x128xbf16>
    %38 = vector.shape_cast %37 : vector<8x8x128xbf16> to vector<64x128xbf16>
    %c5 = arith.constant 5 : index
    %c0_39 = arith.constant 0 : index
    %c0_40 = arith.constant 0 : index
    %39 = vector.load %arg3[%c5, %c0_39, %c0_40] : memref<9x128x128xbf16, #tpu.memory_space<vmem>>, vector<1x128x128xbf16>
    %40 = vector.shape_cast %39 : vector<1x128x128xbf16> to vector<128x128xbf16>
    %cst_41 = arith.constant dense<0.000000e+00> : vector<64x128xf32>
    %41 = tpu.matmul %38, %40, %cst_41 {dimension_numbers = #tpu.dot_dimension_numbers<[1], [0], [0], [1], [0, 0, 1, 1], [], []>} : vector<64x128xbf16>, vector<128x128xbf16>, vector<64x128xf32> -> vector<64x128xf32>
    %42 = arith.addf %35, %41 : vector<64x128xf32>
    %c0_42 = arith.constant 0 : index
    %c2_43 = arith.constant 2 : index
    %c0_44 = arith.constant 0 : index
    %c0_45 = arith.constant 0 : index
    %43 = vector.load %arg2[%c0_42, %c2_43, %c0_44, %c0_45] : memref<1x10x10x128xbf16, #tpu.memory_space<vmem>>, vector<1x8x8x128xbf16>
    %44 = vector.shape_cast %43 : vector<1x8x8x128xbf16> to vector<8x8x128xbf16>
    %45 = vector.shape_cast %44 : vector<8x8x128xbf16> to vector<64x128xbf16>
    %c6 = arith.constant 6 : index
    %c0_46 = arith.constant 0 : index
    %c0_47 = arith.constant 0 : index
    %46 = vector.load %arg3[%c6, %c0_46, %c0_47] : memref<9x128x128xbf16, #tpu.memory_space<vmem>>, vector<1x128x128xbf16>
    %47 = vector.shape_cast %46 : vector<1x128x128xbf16> to vector<128x128xbf16>
    %cst_48 = arith.constant dense<0.000000e+00> : vector<64x128xf32>
    %48 = tpu.matmul %45, %47, %cst_48 {dimension_numbers = #tpu.dot_dimension_numbers<[1], [0], [0], [1], [0, 0, 1, 1], [], []>} : vector<64x128xbf16>, vector<128x128xbf16>, vector<64x128xf32> -> vector<64x128xf32>
    %49 = arith.addf %42, %48 : vector<64x128xf32>
    %c0_49 = arith.constant 0 : index
    %c2_50 = arith.constant 2 : index
    %c1_51 = arith.constant 1 : index
    %c0_52 = arith.constant 0 : index
    %50 = vector.load %arg2[%c0_49, %c2_50, %c1_51, %c0_52] : memref<1x10x10x128xbf16, #tpu.memory_space<vmem>>, vector<1x8x8x128xbf16>
    %51 = vector.shape_cast %50 : vector<1x8x8x128xbf16> to vector<8x8x128xbf16>
    %52 = vector.shape_cast %51 : vector<8x8x128xbf16> to vector<64x128xbf16>
    %c7 = arith.constant 7 : index
    %c0_53 = arith.constant 0 : index
    %c0_54 = arith.constant 0 : index
    %53 = vector.load %arg3[%c7, %c0_53, %c0_54] : memref<9x128x128xbf16, #tpu.memory_space<vmem>>, vector<1x128x128xbf16>
    %54 = vector.shape_cast %53 : vector<1x128x128xbf16> to vector<128x128xbf16>
    %cst_55 = arith.constant dense<0.000000e+00> : vector<64x128xf32>
    %55 = tpu.matmul %52, %54, %cst_55 {dimension_numbers = #tpu.dot_dimension_numbers<[1], [0], [0], [1], [0, 0, 1, 1], [], []>} : vector<64x128xbf16>, vector<128x128xbf16>, vector<64x128xf32> -> vector<64x128xf32>
    %56 = arith.addf %49, %55 : vector<64x128xf32>
    %c0_56 = arith.constant 0 : index
    %c2_57 = arith.constant 2 : index
    %c2_58 = arith.constant 2 : index
    %c0_59 = arith.constant 0 : index
    %57 = vector.load %arg2[%c0_56, %c2_57, %c2_58, %c0_59] : memref<1x10x10x128xbf16, #tpu.memory_space<vmem>>, vector<1x8x8x128xbf16>
    %58 = vector.shape_cast %57 : vector<1x8x8x128xbf16> to vector<8x8x128xbf16>
    %59 = vector.shape_cast %58 : vector<8x8x128xbf16> to vector<64x128xbf16>
    %c8 = arith.constant 8 : index
    %c0_60 = arith.constant 0 : index
    %c0_61 = arith.constant 0 : index
    %60 = vector.load %arg3[%c8, %c0_60, %c0_61] : memref<9x128x128xbf16, #tpu.memory_space<vmem>>, vector<1x128x128xbf16>
    %61 = vector.shape_cast %60 : vector<1x128x128xbf16> to vector<128x128xbf16>
    %cst_62 = arith.constant dense<0.000000e+00> : vector<64x128xf32>
    %62 = tpu.matmul %59, %61, %cst_62 {dimension_numbers = #tpu.dot_dimension_numbers<[1], [0], [0], [1], [0, 0, 1, 1], [], []>} : vector<64x128xbf16>, vector<128x128xbf16>, vector<64x128xf32> -> vector<64x128xf32>
    %63 = arith.addf %56, %62 : vector<64x128xf32>
    %c0_63 = arith.constant 0 : index
    %c0_64 = arith.constant 0 : index
    %64 = vector.load %arg4[%c0_63, %c0_64] : memref<1x128xf32, #tpu.memory_space<vmem>>, vector<1x128xf32>
    %65 = vector.broadcast %64 : vector<1x128xf32> to vector<64x128xf32>
    %66 = arith.addf %63, %65 : vector<64x128xf32>
    %c0_65 = arith.constant 0 : index
    %c0_66 = arith.constant 0 : index
    %67 = vector.load %arg5[%c0_65, %c0_66] : memref<64x128xf32, #tpu.memory_space<vmem>>, vector<64x128xf32>
    tpu.vector_store %arg5[%c0_65, %c0_66], %66 {strides = array<i32>} : memref<64x128xf32, #tpu.memory_space<vmem>>, vector<64x128xf32>,
    %cst_67 = arith.constant dense<0.000000e+00> : vector<128xf32>
    %68 = vector.multi_reduction <add>, %66, %cst_67 [0] : vector<64x128xf32> to vector<128xf32>
    %69 = vector.shape_cast %68 : vector<128xf32> to vector<1x128xf32>
    %70 = arith.mulf %66, %66 : vector<64x128xf32>
    %cst_68 = arith.constant dense<0.000000e+00> : vector<128xf32>
    %71 = vector.multi_reduction <add>, %70, %cst_68 [0] : vector<64x128xf32> to vector<128xf32>
    %72 = vector.shape_cast %71 : vector<128xf32> to vector<1x128xf32>
    %73 = tpu.concatenate %69, %72 in 0 : vector<1x128xf32>, vector<1x128xf32> -> vector<2x128xf32>
    %74 = vector.shape_cast %73 : vector<2x128xf32> to vector<1x1x2x128xf32>
    %c0_69 = arith.constant 0 : index
    %c0_70 = arith.constant 0 : index
    %c0_71 = arith.constant 0 : index
    %c0_72 = arith.constant 0 : index
    %75 = vector.load %arg6[%c0_69, %c0_70, %c0_71, %c0_72] : memref<1x1x2x128xf32, #tpu.memory_space<vmem>>, vector<1x1x2x128xf32>
    tpu.vector_store %arg6[%c0_69, %c0_70, %c0_71, %c0_72], %74 {strides = array<i32>} : memref<1x1x2x128xf32, #tpu.memory_space<vmem>>, vector<1x1x2x128xf32>,
    return
  }
  func.func @transform_0(%arg0: i32, %arg1: i32) -> (i32, i32, i32, i32) {
    %c0_i32 = arith.constant 0 : i32
    %c0_i32_0 = arith.constant 0 : i32
    %c0_i32_1 = arith.constant 0 : i32
    return %arg0, %arg1, %c0_i32, %c0_i32_0 : i32, i32, i32, i32
  }
  func.func @transform_1(%arg0: i32, %arg1: i32) -> (i32, i32, i32) {
    %c0_i32 = arith.constant 0 : i32
    %c0_i32_0 = arith.constant 0 : i32
    %c0_i32_1 = arith.constant 0 : i32
    %c0_i32_2 = arith.constant 0 : i32
    return %c0_i32, %c0_i32_0, %c0_i32_1 : i32, i32, i32
  }
  func.func @transform_2(%arg0: i32, %arg1: i32) -> (i32, i32) {
    %c0_i32 = arith.constant 0 : i32
    %c0_i32_0 = arith.constant 0 : i32
    %c0_i32_1 = arith.constant 0 : i32
    return %c0_i32, %c0_i32_0 : i32, i32
  }
  func.func @transform_3(%arg0: i32, %arg1: i32) -> (i32, i32) {
    %c1_i32 = arith.constant 1 : i32
    %0 = arith.muli %arg0, %c1_i32 : i32
    %1 = arith.addi %0, %arg1 : i32
    %c0_i32 = arith.constant 0 : i32
    %c0_i32_0 = arith.constant 0 : i32
    return %1, %c0_i32 : i32, i32
  }
  func.func @transform_4(%arg0: i32, %arg1: i32) -> (i32, i32, i32, i32) {
    %c0_i32 = arith.constant 0 : i32
    %c0_i32_0 = arith.constant 0 : i32
    %c0_i32_1 = arith.constant 0 : i32
    return %arg0, %arg1, %c0_i32, %c0_i32_0 : i32, i32, i32, i32
  }
}

</mosaic_0001>

<llo_original>
// kernel: block_a_forward.7
$region0: #{block_a_forward.7}
  #allocation0 [shape = 'u32[]', space=smem, size = 0x4, offset = 0x4, fixed_abs, tag = 'smem constant byte address 0x4 - core index']
  #allocation1 [shape = 'u32[144,128]{1,0:T(1,128)}', space=vmem, size = 0x12000, scoped, tag = 'internal scratch']
  %s0 = inlined_call_operand.vmem [shape: f32[128,128], index: 0, kind: input, shape index: {}]
  %s1 = inlined_call_operand.vmem [shape: f32[1,128], index: 1, kind: input, shape index: {}]
  %s2 = inlined_call_operand.vmem [shape: f32[1,128], index: 2, kind: input, shape index: {}]
  %s3 = inlined_call_operand.vmem [shape: bf16[128,128], index: 3, kind: output, shape index: {}]
  %s4 = sld [smem:[#allocation0]]
  $region45: #{block_a_forward.7} parent=0
    _
  %s6 = ssub.s32 1, %s4
  %s7 = scalar_select 0, %s6, %s4
  loop: start=0, step=1, limit=4
  $region2: #{block_a_forward.7} parent=0 // loop_pre_header
    _
  $region3: #{block_a_forward.7} parent=0 // loop_header
    %s9 = sphi 0, %s13
    %p10 = scmp.ge.s32.totalorder %s9, 4
    %s19 = sphi 0, %s21
    %s22 = sphi 0, %s19
    %s23 = sphi 0, %s22
    %s39 = sphi 0, %s23
    %s43 = sphi 0, %s43
    %s45 = sphi 0, %s43
    %s46 = sphi 0, %s45
    %s60 = sphi 0, %s46
    %s64 = sphi 0, %s64
    %s66 = sphi 0, %s64
    %s67 = sphi 0, %s66
    %s81 = sphi 0, %s67
    %s87 = sphi 0, %s89
    %s90 = sphi 0, %s87
    %s91 = sphi 0, %s90
    %s107 = sphi 0, %s91
  $region4: #{block_a_forward.7} parent=0 // loop_header_branch
    %12 = sbr.rel (%p10) target = $region8
  $region5: #{block_a_forward.7} parent=0 // loop_body
    %s14 = ssub.s32 %s9, 1
    %s15 = ssub.s32 %s9, 2
    %s16 = sadd.s32 %s9, 1
    %s17 = ssub.s32 %s9, %s16
    %p18 = scmp.eq.s32.totalorder %s17, 0
    %s20 = sadd.s32 %s19, 1
    %s21 = scalar_select %p18, %s19, %s20
    %p24 = pneg %p18
    %p25 = scmp.eq.s32.totalorder %s9, 1
    %p26 = por %p24, %p25
    %p27 = scmp.ne.s32.totalorder %s19, %s22
    %p28 = scmp.eq.s32.totalorder %s9, 0
    %p29 = por %p27, %p28
    %p30 = scmp.ne.s32.totalorder %s19, %s22
    %p31 = scmp.eq.s32.totalorder %s14, 1
    %p32 = por %p30, %p31
    %p33 = scmp.ne.s32.totalorder %s22, %s23
    %p34 = scmp.eq.s32.totalorder %s14, 0
    %p35 = por %p33, %p34
    %p36 = scmp.ne.s32.totalorder %s22, %s23
    %p37 = scmp.eq.s32.totalorder %s15, 1
    %p38 = por %p36, %p37
    %p40 = scmp.ne.s32.totalorder %s23, %s39
    %p41 = scmp.eq.s32.totalorder %s15, 0
    %p42 = por %p40, %p41
    %s44 = sadd.s32 %s43, 1
    %p47 = scmp.eq.s32.totalorder %s9, 1
    %p48 = scmp.ne.s32.totalorder %s43, %s45
    %p49 = scmp.eq.s32.totalorder %s9, 0
    %p50 = por %p48, %p49
    %p51 = scmp.ne.s32.totalorder %s43, %s45
    %p52 = scmp.eq.s32.totalorder %s14, 1
    %p53 = por %p51, %p52
    %p54 = scmp.ne.s32.totalorder %s45, %s46
    %p55 = scmp.eq.s32.totalorder %s14, 0
    %p56 = por %p54, %p55
    %p57 = scmp.ne.s32.totalorder %s45, %s46
    %p58 = scmp.eq.s32.totalorder %s15, 1
    %p59 = por %p57, %p58
    %p61 = scmp.ne.s32.totalorder %s46, %s60
    %p62 = scmp.eq.s32.totalorder %s15, 0
    %p63 = por %p61, %p62
    %s65 = sadd.s32 %s64, 1
    %p68 = scmp.eq.s32.totalorder %s9, 1
    %p69 = scmp.ne.s32.totalorder %s64, %s66
    %p70 = scmp.eq.s32.totalorder %s9, 0
    %p71 = por %p69, %p70
    %p72 = scmp.ne.s32.totalorder %s64, %s66
    %p73 = scmp.eq.s32.totalorder %s14, 1
    %p74 = por %p72, %p73
    %p75 = scmp.ne.s32.totalorder %s66, %s67
    %p76 = scmp.eq.s32.totalorder %s14, 0
    %p77 = por %p75, %p76
    %p78 = scmp.ne.s32.totalorder %s66, %s67
    %p79 = scmp.eq.s32.totalorder %s15, 1
    %p80 = por %p78, %p79
    %p82 = scmp.ne.s32.totalorder %s67, %s81
    %p83 = scmp.eq.s32.totalorder %s15, 0
    %p84 = por %p82, %p83
    %s85 = ssub.s32 %s9, %s16
    %p86 = scmp.eq.s32.totalorder %s85, 0
    %s88 = sadd.s32 %s87, 1
    %s89 = scalar_select %p86, %s87, %s88
    %p92 = pneg %p86
    %p93 = scmp.eq.s32.totalorder %s9, 1
    %p94 = por %p92, %p93
    %p95 = scmp.ne.s32.totalorder %s87, %s90
    %p96 = scmp.eq.s32.totalorder %s9, 0
    %p97 = por %p95, %p96
    %p98 = scmp.ne.s32.totalorder %s87, %s90
    %p99 = scmp.eq.s32.totalorder %s14, 1
    %p100 = por %p98, %p99
    %p101 = scmp.ne.s32.totalorder %s90, %s91
    %p102 = scmp.eq.s32.totalorder %s14, 0
    %p103 = por %p101, %p102
    %p104 = scmp.ne.s32.totalorder %s90, %s91
    %p105 = scmp.eq.s32.totalorder %s15, 1
    %p106 = por %p104, %p105
    %p108 = scmp.ne.s32.totalorder %s91, %s107
    %p109 = scmp.eq.s32.totalorder %s15, 0
    %p110 = por %p108, %p109
    %p111 = scmp.le.s32.totalorder 1, %s9
    %p112 = scmp.lt.s32.totalorder %s9, 3
    %p113 = pnand %p111, %p112
    %p114 = pneg %p113
    // Predicated region
    $region9: #{block_a_forward.7} parent=5 // pred_check
      _
    $region10: #{block_a_forward.7} parent=5 // pred_check_branch
      %116 = sbr.rel (%p113) target = $region12
    $region11: #{block_a_forward.7} parent=5 // pred_region
      %s117 = ssub.s32 %s9, 1
      // Predicated region
      $region13: #{block_a_forward.7} parent=11 // pred_check
        %p118 = pneg %p56
      $region14: #{block_a_forward.7} parent=11 // pred_check_branch
        %120 = sbr.rel (%p118) target = $region16
      $region15: #{block_a_forward.7} parent=11 // pred_region
        _
      $region16: #{block_a_forward.7} parent=11 // pred_fallthru
        _
      // Predicated region
      $region17: #{block_a_forward.7} parent=11 // pred_check
        %p121 = pneg %p77
      $region18: #{block_a_forward.7} parent=11 // pred_check_branch
        %123 = sbr.rel (%p121) target = $region20
      $region19: #{block_a_forward.7} parent=11 // pred_region
        _
      $region20: #{block_a_forward.7} parent=11 // pred_fallthru
        _
    $region12: #{block_a_forward.7} parent=5 // pred_fallthru
      _
    %p124 = scmp.lt.s32.totalorder %s9, 2
    // Predicated region
    $region21: #{block_a_forward.7} parent=5 // pred_check
      %p125 = pneg %p124
    $region22: #{block_a_forward.7} parent=5 // pred_check_branch
      %127 = sbr.rel (%p125) target = $region24
    $region23: #{block_a_forward.7} parent=5 // pred_region
      // Predicated region
      $region25: #{block_a_forward.7} parent=23 // pred_check
        %p128 = pneg %p29
      $region26: #{block_a_forward.7} parent=23 // pred_check_branch
        %130 = sbr.rel (%p128) target = $region28
      $region27: #{block_a_forward.7} parent=23 // pred_region
        %s131 = smul.u32 8, %s9
        %p132 = scmp.lt.s32.totalorder %s131, 15
        %s133 = scalar_select %p132, %s131, 15
        %s134 = smul.addr %s133, 8
        %s135 = scalar_lea.vmem %s0, %s134
        %s136 = smul.u32 8, %s9
      $region28: #{block_a_forward.7} parent=23 // pred_fallthru
        _
    $region24: #{block_a_forward.7} parent=5 // pred_fallthru
      _
    %p137 = scmp.le.s32.totalorder 1, %s9
    %p138 = scmp.lt.s32.totalorder %s9, 3
    %p139 = pnand %p137, %p138
    %p140 = pneg %p139
    // Predicated region
    $region29: #{block_a_forward.7} parent=5 // pred_check
      _
    $region30: #{block_a_forward.7} parent=5 // pred_check_branch
      %142 = sbr.rel (%p139) target = $region32
    $region31: #{block_a_forward.7} parent=5 // pred_region
      %s143 = ssub.s32 %s9, 1
      %s144 = smul.u32 8, %s14
      %p145 = scmp.lt.s32.totalorder %s144, 15
      %s146 = scalar_select %p145, %s144, 15
      %s147 = smul.addr %s146, 8
      %s148 = scalar_lea.vmem %s0, %s147
      %p149 = pneg %p35
      %p150 = pneg %p32
      %p151 = pneg %p56
      %p152 = pneg %p53
      %p153 = pneg %p77
      %p154 = pneg %p74
      %p155 = pneg %p103
      %p156 = pneg %p100
      %s157 = smul.u32 8, %s14
      %p158 = scmp.lt.s32.totalorder %s157, 15
      %s159 = scalar_select %p158, %s157, 15
      %s160 = smul.addr %s159, 4
      %s161 = scalar_lea.vmem %s3, %s160
      %s162 = smul.u32 8, %s14
      %p163 = scmp.lt.s32.totalorder %s162, 15
      %s164 = scalar_select %p163, %s162, 15
      %s165 = smul.addr %s164, 8
      %s166 = scalar_lea.vmem %s0, %s165
      %s167 = smul.u32 8, %s14
      %s168 = smul.u32 8, %s14
      %p169 = scmp.lt.s32.totalorder %s168, 15
      %s170 = scalar_select %p169, %s168, 15
      %s171 = smul.addr %s170, 4
      %s172 = scalar_lea.vmem %s3, %s171
      %s173 = smul.u32 8, %s14
      %v174 = vld [vmem:[%s166] sm:$0xff]
      %v175 = vld [vmem:[%s166 + $0x8] sm:$0xff]
      %v176 = vld [vmem:[%s166 + $0x10] sm:$0xff]
      %v177 = vld [vmem:[%s166 + $0x18] sm:$0xff]
      %v178 = vld [vmem:[%s166 + $0x20] sm:$0xff]
      %v179 = vld [vmem:[%s166 + $0x28] sm:$0xff]
      %v180 = vld [vmem:[%s166 + $0x30] sm:$0xff]
      %v181 = vld [vmem:[%s166 + $0x38] sm:$0xff]
      %v182 = vld [vmem:[%s1] sm:$0x1]
      %v184 = vlaneseq
      %v185 = vshrl.u32 %v184, 7
      %v186 = vsub.s32 0, %v185
      %v187 = vrot.slane %v182, %v186
      %v189 = vmul.f32 %v174, %v187
      %v190 = vmul.f32 %v175, %v187
      %v191 = vmul.f32 %v176, %v187
      %v192 = vmul.f32 %v177, %v187
      %v193 = vmul.f32 %v178, %v187
      %v194 = vmul.f32 %v179, %v187
      %v195 = vmul.f32 %v180, %v187
      %v196 = vmul.f32 %v181, %v187
      %v197 = vld [vmem:[%s2] sm:$0x1]
      %v199 = vlaneseq
      %v200 = vshrl.u32 %v199, 7
      %v201 = vsub.s32 0, %v200
      %v202 = vrot.slane %v197, %v201
      %v204 = vadd.f32 %v189, %v202
      %v205 = vadd.f32 %v190, %v202
      %v206 = vadd.f32 %v191, %v202
      %v207 = vadd.f32 %v192, %v202
      %v208 = vadd.f32 %v193, %v202
      %v209 = vadd.f32 %v194, %v202
      %v210 = vadd.f32 %v195, %v202
      %v211 = vadd.f32 %v196, %v202
      %v212 = vmax.f32 %v204, 0.0
      %v213 = vmax.f32 %v205, 0.0
      %v214 = vmax.f32 %v206, 0.0
      %v215 = vmax.f32 %v207, 0.0
      %v216 = vmax.f32 %v208, 0.0
      %v217 = vmax.f32 %v209, 0.0
      %v218 = vmax.f32 %v210, 0.0
      %v219 = vmax.f32 %v211, 0.0
      %v220 = vpack.c.bf16 %v213, %v212
      %v221 = vpack.c.bf16 %v215, %v214
      %v222 = vpack.c.bf16 %v217, %v216
      %v223 = vpack.c.bf16 %v219, %v218
      %v228 = vunpack.c.l.b16 %v220
      %v229 = vunpack.c.h.b16 %v220
      %v230 = vunpack.c.l.b16 %v221
      %v231 = vunpack.c.h.b16 %v221
      %v232 = vunpack.c.l.b16 %v222
      %v233 = vunpack.c.h.b16 %v222
      %v234 = vunpack.c.l.b16 %v223
      %v235 = vunpack.c.h.b16 %v223
      %v236 = vpack.c.b16 %v228, %v228
      %v237 = vpack.c.b16 %v229, %v229
      %v238 = vpack.c.b16 %v230, %v230
      %v239 = vpack.c.b16 %v231, %v231
      %v240 = vpack.c.b16 %v232, %v232
      %v241 = vpack.c.b16 %v233, %v233
      %v242 = vpack.c.b16 %v234, %v234
      %v243 = vpack.c.b16 %v235, %v235
      %252 = vst [vmem:[%s172] sm:$0xf] %v236
      %253 = vst [vmem:[%s172 + $0x4] sm:$0xf] %v237
      %254 = vst [vmem:[%s172 + $0x8] sm:$0xf] %v238
      %255 = vst [vmem:[%s172 + $0xc] sm:$0xf] %v239
      %256 = vst [vmem:[%s172 + $0x10] sm:$0xf] %v240
      %257 = vst [vmem:[%s172 + $0x14] sm:$0xf] %v241
      %258 = vst [vmem:[%s172 + $0x18] sm:$0xf] %v242
      %259 = vst [vmem:[%s172 + $0x1c] sm:$0xf] %v243
      %s260 = smul.u32 8, %s14
      %p261 = scmp.lt.s32.totalorder %s260, 15
      %s262 = scalar_select %p261, %s260, 15
      %s263 = smul.addr %s262, 4
      %s264 = scalar_lea.vmem %s3, %s263
      // Predicated region
      $region33: #{block_a_forward.7} parent=31 // pred_check
        %p265 = pneg %p100
      $region34: #{block_a_forward.7} parent=31 // pred_check_branch
        %267 = sbr.rel (%p265) target = $region36
      $region35: #{block_a_forward.7} parent=31 // pred_region
        %s268 = smul.u32 8, %s14
      $region36: #{block_a_forward.7} parent=31 // pred_fallthru
        _
    $region32: #{block_a_forward.7} parent=5 // pred_fallthru
      _
    %p269 = scmp.le.s32.totalorder 2, %s9
    // Predicated region
    $region37: #{block_a_forward.7} parent=5 // pred_check
      %p270 = pneg %p269
    $region38: #{block_a_forward.7} parent=5 // pred_check_branch
      %272 = sbr.rel (%p270) target = $region40
    $region39: #{block_a_forward.7} parent=5 // pred_region
      %s273 = ssub.s32 %s9, 2
      // Predicated region
      $region41: #{block_a_forward.7} parent=39 // pred_check
        %p274 = pneg %p106
      $region42: #{block_a_forward.7} parent=39 // pred_check_branch
        %276 = sbr.rel (%p274) target = $region44
      $region43: #{block_a_forward.7} parent=39 // pred_region
        %s277 = smul.u32 8, %s15
        %p278 = scmp.lt.s32.totalorder %s277, 15
        %s279 = scalar_select %p278, %s277, 15
        %s280 = smul.addr %s279, 4
        %s281 = scalar_lea.vmem %s3, %s280
      $region44: #{block_a_forward.7} parent=39 // pred_fallthru
        _
    $region40: #{block_a_forward.7} parent=5 // pred_fallthru
      _
  $region6: #{block_a_forward.7} parent=0 // loop_footer
    %s13 = sadd.s32 1, %s9
  $region7: #{block_a_forward.7} parent=0 // loop_footer_branch
    %8 = sbr.rel target = $region3
  $region8: #{block_a_forward.7} parent=0 // loop_exit
    _

// kernel: block_a_forward.11
$region0: #{block_a_forward.11}
  #allocation0 [shape = 'u32[]', space=smem, size = 0x4, offset = 0x4, fixed_abs, tag = 'smem constant byte address 0x4 - core index']
  #allocation1 [shape = 'u32[144,128]{1,0:T(1,128)}', space=vmem, size = 0x12000, scoped, tag = 'internal scratch']
  %s0 = inlined_call_operand.vmem [shape: f32[128,128], index: 0, kind: input, shape index: {}]
  %s1 = inlined_call_operand.vmem [shape: f32[1,128], index: 1, kind: input, shape index: {}]
  %s2 = inlined_call_operand.vmem [shape: f32[1,128], index: 2, kind: input, shape index: {}]
  %s3 = inlined_call_operand.vmem [shape: f32[128,128], index: 3, kind: output, shape index: {}]
  %s4 = sld [smem:[#allocation0]]
  $region45: #{block_a_forward.11} parent=0
    _
  %s6 = ssub.s32 1, %s4
  %s7 = scalar_select 0, %s6, %s4
  loop: start=0, step=1, limit=4
  $region2: #{block_a_forward.11} parent=0 // loop_pre_header
    _
  $region3: #{block_a_forward.11} parent=0 // loop_header
    %s9 = sphi 0, %s13
    %p10 = scmp.ge.s32.totalorder %s9, 4
    %s19 = sphi 0, %s21
    %s22 = sphi 0, %s19
    %s23 = sphi 0, %s22
    %s39 = sphi 0, %s23
    %s43 = sphi 0, %s43
    %s45 = sphi 0, %s43
    %s46 = sphi 0, %s45
    %s60 = sphi 0, %s46
    %s64 = sphi 0, %s64
    %s66 = sphi 0, %s64
    %s67 = sphi 0, %s66
    %s81 = sphi 0, %s67
    %s87 = sphi 0, %s89
    %s90 = sphi 0, %s87
    %s91 = sphi 0, %s90
    %s107 = sphi 0, %s91
  $region4: #{block_a_forward.11} parent=0 // loop_header_branch
    %12 = sbr.rel (%p10) target = $region8
  $region5: #{block_a_forward.11} parent=0 // loop_body
    %s14 = ssub.s32 %s9, 1
    %s15 = ssub.s32 %s9, 2
    %s16 = sadd.s32 %s9, 1
    %s17 = ssub.s32 %s9, %s16
    %p18 = scmp.eq.s32.totalorder %s17, 0
    %s20 = sadd.s32 %s19, 1
    %s21 = scalar_select %p18, %s19, %s20
    %p24 = pneg %p18
    %p25 = scmp.eq.s32.totalorder %s9, 1
    %p26 = por %p24, %p25
    %p27 = scmp.ne.s32.totalorder %s19, %s22
    %p28 = scmp.eq.s32.totalorder %s9, 0
    %p29 = por %p27, %p28
    %p30 = scmp.ne.s32.totalorder %s19, %s22
    %p31 = scmp.eq.s32.totalorder %s14, 1
    %p32 = por %p30, %p31
    %p33 = scmp.ne.s32.totalorder %s22, %s23
    %p34 = scmp.eq.s32.totalorder %s14, 0
    %p35 = por %p33, %p34
    %p36 = scmp.ne.s32.totalorder %s22, %s23
    %p37 = scmp.eq.s32.totalorder %s15, 1
    %p38 = por %p36, %p37
    %p40 = scmp.ne.s32.totalorder %s23, %s39
    %p41 = scmp.eq.s32.totalorder %s15, 0
    %p42 = por %p40, %p41
    %s44 = sadd.s32 %s43, 1
    %p47 = scmp.eq.s32.totalorder %s9, 1
    %p48 = scmp.ne.s32.totalorder %s43, %s45
    %p49 = scmp.eq.s32.totalorder %s9, 0
    %p50 = por %p48, %p49
    %p51 = scmp.ne.s32.totalorder %s43, %s45
    %p52 = scmp.eq.s32.totalorder %s14, 1
    %p53 = por %p51, %p52
    %p54 = scmp.ne.s32.totalorder %s45, %s46
    %p55 = scmp.eq.s32.totalorder %s14, 0
    %p56 = por %p54, %p55
    %p57 = scmp.ne.s32.totalorder %s45, %s46
    %p58 = scmp.eq.s32.totalorder %s15, 1
    %p59 = por %p57, %p58
    %p61 = scmp.ne.s32.totalorder %s46, %s60
    %p62 = scmp.eq.s32.totalorder %s15, 0
    %p63 = por %p61, %p62
    %s65 = sadd.s32 %s64, 1
    %p68 = scmp.eq.s32.totalorder %s9, 1
    %p69 = scmp.ne.s32.totalorder %s64, %s66
    %p70 = scmp.eq.s32.totalorder %s9, 0
    %p71 = por %p69, %p70
    %p72 = scmp.ne.s32.totalorder %s64, %s66
    %p73 = scmp.eq.s32.totalorder %s14, 1
    %p74 = por %p72, %p73
    %p75 = scmp.ne.s32.totalorder %s66, %s67
    %p76 = scmp.eq.s32.totalorder %s14, 0
    %p77 = por %p75, %p76
    %p78 = scmp.ne.s32.totalorder %s66, %s67
    %p79 = scmp.eq.s32.totalorder %s15, 1
    %p80 = por %p78, %p79
    %p82 = scmp.ne.s32.totalorder %s67, %s81
    %p83 = scmp.eq.s32.totalorder %s15, 0
    %p84 = por %p82, %p83
    %s85 = ssub.s32 %s9, %s16
    %p86 = scmp.eq.s32.totalorder %s85, 0
    %s88 = sadd.s32 %s87, 1
    %s89 = scalar_select %p86, %s87, %s88
    %p92 = pneg %p86
    %p93 = scmp.eq.s32.totalorder %s9, 1
    %p94 = por %p92, %p93
    %p95 = scmp.ne.s32.totalorder %s87, %s90
    %p96 = scmp.eq.s32.totalorder %s9, 0
    %p97 = por %p95, %p96
    %p98 = scmp.ne.s32.totalorder %s87, %s90
    %p99 = scmp.eq.s32.totalorder %s14, 1
    %p100 = por %p98, %p99
    %p101 = scmp.ne.s32.totalorder %s90, %s91
    %p102 = scmp.eq.s32.totalorder %s14, 0
    %p103 = por %p101, %p102
    %p104 = scmp.ne.s32.totalorder %s90, %s91
    %p105 = scmp.eq.s32.totalorder %s15, 1
    %p106 = por %p104, %p105
    %p108 = scmp.ne.s32.totalorder %s91, %s107
    %p109 = scmp.eq.s32.totalorder %s15, 0
    %p110 = por %p108, %p109
    %p111 = scmp.le.s32.totalorder 1, %s9
    %p112 = scmp.lt.s32.totalorder %s9, 3
    %p113 = pnand %p111, %p112
    %p114 = pneg %p113
    // Predicated region
    $region9: #{block_a_forward.11} parent=5 // pred_check
      _
    $region10: #{block_a_forward.11} parent=5 // pred_check_branch
      %116 = sbr.rel (%p113) target = $region12
    $region11: #{block_a_forward.11} parent=5 // pred_region
      %s117 = ssub.s32 %s9, 1
      // Predicated region
      $region13: #{block_a_forward.11} parent=11 // pred_check
        %p118 = pneg %p56
      $region14: #{block_a_forward.11} parent=11 // pred_check_branch
        %120 = sbr.rel (%p118) target = $region16
      $region15: #{block_a_forward.11} parent=11 // pred_region
        _
      $region16: #{block_a_forward.11} parent=11 // pred_fallthru
        _
      // Predicated region
      $region17: #{block_a_forward.11} parent=11 // pred_check
        %p121 = pneg %p77
      $region18: #{block_a_forward.11} parent=11 // pred_check_branch
        %123 = sbr.rel (%p121) target = $region20
      $region19: #{block_a_forward.11} parent=11 // pred_region
        _
      $region20: #{block_a_forward.11} parent=11 // pred_fallthru
        _
    $region12: #{block_a_forward.11} parent=5 // pred_fallthru
      _
    %p124 = scmp.lt.s32.totalorder %s9, 2
    // Predicated region
    $region21: #{block_a_forward.11} parent=5 // pred_check
      %p125 = pneg %p124
    $region22: #{block_a_forward.11} parent=5 // pred_check_branch
      %127 = sbr.rel (%p125) target = $region24
    $region23: #{block_a_forward.11} parent=5 // pred_region
      // Predicated region
      $region25: #{block_a_forward.11} parent=23 // pred_check
        %p128 = pneg %p29
      $region26: #{block_a_forward.11} parent=23 // pred_check_branch
        %130 = sbr.rel (%p128) target = $region28
      $region27: #{block_a_forward.11} parent=23 // pred_region
        %s131 = smul.u32 8, %s9
        %p132 = scmp.lt.s32.totalorder %s131, 15
        %s133 = scalar_select %p132, %s131, 15
        %s134 = smul.addr %s133, 8
        %s135 = scalar_lea.vmem %s0, %s134
        %s136 = smul.u32 8, %s9
      $region28: #{block_a_forward.11} parent=23 // pred_fallthru
        _
    $region24: #{block_a_forward.11} parent=5 // pred_fallthru
      _
    %p137 = scmp.le.s32.totalorder 1, %s9
    %p138 = scmp.lt.s32.totalorder %s9, 3
    %p139 = pnand %p137, %p138
    %p140 = pneg %p139
    // Predicated region
    $region29: #{block_a_forward.11} parent=5 // pred_check
      _
    $region30: #{block_a_forward.11} parent=5 // pred_check_branch
      %142 = sbr.rel (%p139) target = $region32
    $region31: #{block_a_forward.11} parent=5 // pred_region
      %s143 = ssub.s32 %s9, 1
      %s144 = smul.u32 8, %s14
      %p145 = scmp.lt.s32.totalorder %s144, 15
      %s146 = scalar_select %p145, %s144, 15
      %s147 = smul.addr %s146, 8
      %s148 = scalar_lea.vmem %s0, %s147
      %p149 = pneg %p35
      %p150 = pneg %p32
      %p151 = pneg %p56
      %p152 = pneg %p53
      %p153 = pneg %p77
      %p154 = pneg %p74
      %p155 = pneg %p103
      %p156 = pneg %p100
      %s157 = smul.u32 8, %s14
      %p158 = scmp.lt.s32.totalorder %s157, 15
      %s159 = scalar_select %p158, %s157, 15
      %s160 = smul.addr %s159, 8
      %s161 = scalar_lea.vmem %s3, %s160
      %s162 = smul.u32 8, %s14
      %p163 = scmp.lt.s32.totalorder %s162, 15
      %s164 = scalar_select %p163, %s162, 15
      %s165 = smul.addr %s164, 8
      %s166 = scalar_lea.vmem %s0, %s165
      %s167 = smul.u32 8, %s14
      %s168 = smul.u32 8, %s14
      %p169 = scmp.lt.s32.totalorder %s168, 15
      %s170 = scalar_select %p169, %s168, 15
      %s171 = smul.addr %s170, 8
      %s172 = scalar_lea.vmem %s3, %s171
      %s173 = smul.u32 8, %s14
      %v174 = vld [vmem:[%s166] sm:$0xff]
      %v175 = vld [vmem:[%s166 + $0x8] sm:$0xff]
      %v176 = vld [vmem:[%s166 + $0x10] sm:$0xff]
      %v177 = vld [vmem:[%s166 + $0x18] sm:$0xff]
      %v178 = vld [vmem:[%s166 + $0x20] sm:$0xff]
      %v179 = vld [vmem:[%s166 + $0x28] sm:$0xff]
      %v180 = vld [vmem:[%s166 + $0x30] sm:$0xff]
      %v181 = vld [vmem:[%s166 + $0x38] sm:$0xff]
      %v182 = vld [vmem:[%s1] sm:$0x1]
      %v184 = vlaneseq
      %v185 = vshrl.u32 %v184, 7
      %v186 = vsub.s32 0, %v185
      %v187 = vrot.slane %v182, %v186
      %v189 = vmul.f32 %v174, %v187
      %v190 = vmul.f32 %v175, %v187
      %v191 = vmul.f32 %v176, %v187
      %v192 = vmul.f32 %v177, %v187
      %v193 = vmul.f32 %v178, %v187
      %v194 = vmul.f32 %v179, %v187
      %v195 = vmul.f32 %v180, %v187
      %v196 = vmul.f32 %v181, %v187
      %v197 = vld [vmem:[%s2] sm:$0x1]
      %v199 = vlaneseq
      %v200 = vshrl.u32 %v199, 7
      %v201 = vsub.s32 0, %v200
      %v202 = vrot.slane %v197, %v201
      %v204 = vadd.f32 %v189, %v202
      %v205 = vadd.f32 %v190, %v202
      %v206 = vadd.f32 %v191, %v202
      %v207 = vadd.f32 %v192, %v202
      %v208 = vadd.f32 %v193, %v202
      %v209 = vadd.f32 %v194, %v202
      %v210 = vadd.f32 %v195, %v202
      %v211 = vadd.f32 %v196, %v202
      %212 = vst [vmem:[%s172] sm:$0xff] %v204
      %213 = vst [vmem:[%s172 + $0x8] sm:$0xff] %v205
      %214 = vst [vmem:[%s172 + $0x10] sm:$0xff] %v206
      %215 = vst [vmem:[%s172 + $0x18] sm:$0xff] %v207
      %216 = vst [vmem:[%s172 + $0x20] sm:$0xff] %v208
      %217 = vst [vmem:[%s172 + $0x28] sm:$0xff] %v209
      %218 = vst [vmem:[%s172 + $0x30] sm:$0xff] %v210
      %219 = vst [vmem:[%s172 + $0x38] sm:$0xff] %v211
      %s220 = smul.u32 8, %s14
      %p221 = scmp.lt.s32.totalorder %s220, 15
      %s222 = scalar_select %p221, %s220, 15
      %s223 = smul.addr %s222, 8
      %s224 = scalar_lea.vmem %s3, %s223
      // Predicated region
      $region33: #{block_a_forward.11} parent=31 // pred_check
        %p225 = pneg %p100
      $region34: #{block_a_forward.11} parent=31 // pred_check_branch
        %227 = sbr.rel (%p225) target = $region36
      $region35: #{block_a_forward.11} parent=31 // pred_region
        %s228 = smul.u32 8, %s14
      $region36: #{block_a_forward.11} parent=31 // pred_fallthru
        _
    $region32: #{block_a_forward.11} parent=5 // pred_fallthru
      _
    %p229 = scmp.le.s32.totalorder 2, %s9
    // Predicated region
    $region37: #{block_a_forward.11} parent=5 // pred_check
      %p230 = pneg %p229
    $region38: #{block_a_forward.11} parent=5 // pred_check_branch
      %232 = sbr.rel (%p230) target = $region40
    $region39: #{block_a_forward.11} parent=5 // pred_region
      %s233 = ssub.s32 %s9, 2
      // Predicated region
      $region41: #{block_a_forward.11} parent=39 // pred_check
        %p234 = pneg %p106
      $region42: #{block_a_forward.11} parent=39 // pred_check_branch
        %236 = sbr.rel (%p234) target = $region44
      $region43: #{block_a_forward.11} parent=39 // pred_region
        %s237 = smul.u32 8, %s15
        %p238 = scmp.lt.s32.totalorder %s237, 15
        %s239 = scalar_select %p238, %s237, 15
        %s240 = smul.addr %s239, 8
        %s241 = scalar_lea.vmem %s3, %s240
      $region44: #{block_a_forward.11} parent=39 // pred_fallthru
        _
    $region40: #{block_a_forward.11} parent=5 // pred_fallthru
      _
  $region6: #{block_a_forward.11} parent=0 // loop_footer
    %s13 = sadd.s32 1, %s9
  $region7: #{block_a_forward.11} parent=0 // loop_footer_branch
    %8 = sbr.rel target = $region3
  $region8: #{block_a_forward.11} parent=0 // loop_exit
    _

// kernel: block_a_forward.6
$region0: #{block_a_forward.6}
  #allocation0 [shape = 'u32[]', space=smem, size = 0x4, offset = 0x4, fixed_abs, tag = 'smem constant byte address 0x4 - core index']
  #allocation1 [shape = 'u32[144,128]{1,0:T(1,128)}', space=vmem, size = 0x12000, scoped, tag = 'internal scratch']
  %s0 = inlined_call_operand.vmem [shape: bf16[18,8,8,128], index: 0, kind: input, shape index: {}]
  %s1 = inlined_call_operand.vmem [shape: bf16[9,128,128], index: 1, kind: input, shape index: {}]
  %s2 = inlined_call_operand.vmem [shape: f32[1,128], index: 2, kind: input, shape index: {}]
  %s3 = inlined_call_operand.vmem [shape: f32[128,128], index: 3, kind: output, shape index: {0}]
  %s4 = inlined_call_operand.vmem [shape: f32[2,1,2,128], index: 4, kind: output, shape index: {1}]
  %5 = xla_tuple %s3, %s4
  %s6 = sld [smem:[#allocation0]]
  $region53: #{block_a_forward.6} parent=0
    _
  %s8 = ssub.s32 1, %s6
  %s9 = scalar_select 0, %s8, %s6
  loop: start=0, step=1, limit=4
  $region2: #{block_a_forward.6} parent=0 // loop_pre_header
    _
  $region3: #{block_a_forward.6} parent=0 // loop_header
    %s11 = sphi 0, %s15
    %p12 = scmp.ge.s32.totalorder %s11, 4
    %s18 = sphi 0, %s30
    %s19 = sphi 0, %s26
    %s20 = sphi 0, %s18
    %s21 = sphi 0, %s19
    %s22 = sphi 0, %s20
    %s23 = sphi 0, %s21
    %s35 = sphi 0, %s37
    %s38 = sphi 0, %s35
    %s39 = sphi 0, %s38
    %s55 = sphi 0, %s39
    %s59 = sphi 0, %s59
    %s61 = sphi 0, %s59
    %s62 = sphi 0, %s61
    %s76 = sphi 0, %s62
    %s80 = sphi 0, %s80
    %s82 = sphi 0, %s80
    %s83 = sphi 0, %s82
    %s97 = sphi 0, %s83
    %s105 = sphi 0, %s107
    %s108 = sphi 0, %s105
    %s109 = sphi 0, %s108
    %s125 = sphi 0, %s109
    %s133 = sphi 0, %s135
    %s136 = sphi 0, %s133
    %s137 = sphi 0, %s136
    %s153 = sphi 0, %s137
  $region4: #{block_a_forward.6} parent=0 // loop_header_branch
    %14 = sbr.rel (%p12) target = $region8
  $region5: #{block_a_forward.6} parent=0 // loop_body
    %s16 = ssub.s32 %s11, 1
    %s17 = ssub.s32 %s11, 2
    %s24 = sadd.s32 1, %s19
    %p25 = scmp.ge.s32.totalorder %s24, 1
    %s26 = scalar_select %p25, 0, %s24
    %s27 = sadd.s32 1, %s18
    %s28 = scalar_select %p25, %s27, %s18
    %p29 = scmp.ge.s32.totalorder %s28, 2
    %s30 = scalar_select %p29, 0, %s28
    %s31 = ssub.s32 %s18, %s30
    %s32 = ssub.s32 %s19, %s26
    %s33 = sor.u32 %s31, %s32
    %p34 = scmp.eq.s32.totalorder %s33, 0
    %s36 = sadd.s32 %s35, 1
    %s37 = scalar_select %p34, %s35, %s36
    %p40 = pneg %p34
    %p41 = scmp.eq.s32.totalorder %s11, 1
    %p42 = por %p40, %p41
    %p43 = scmp.ne.s32.totalorder %s35, %s38
    %p44 = scmp.eq.s32.totalorder %s11, 0
    %p45 = por %p43, %p44
    %p46 = scmp.ne.s32.totalorder %s35, %s38
    %p47 = scmp.eq.s32.totalorder %s16, 1
    %p48 = por %p46, %p47
    %p49 = scmp.ne.s32.totalorder %s38, %s39
    %p50 = scmp.eq.s32.totalorder %s16, 0
    %p51 = por %p49, %p50
    %p52 = scmp.ne.s32.totalorder %s38, %s39
    %p53 = scmp.eq.s32.totalorder %s17, 1
    %p54 = por %p52, %p53
    %p56 = scmp.ne.s32.totalorder %s39, %s55
    %p57 = scmp.eq.s32.totalorder %s17, 0
    %p58 = por %p56, %p57
    %s60 = sadd.s32 %s59, 1
    %p63 = scmp.eq.s32.totalorder %s11, 1
    %p64 = scmp.ne.s32.totalorder %s59, %s61
    %p65 = scmp.eq.s32.totalorder %s11, 0
    %p66 = por %p64, %p65
    %p67 = scmp.ne.s32.totalorder %s59, %s61
    %p68 = scmp.eq.s32.totalorder %s16, 1
    %p69 = por %p67, %p68
    %p70 = scmp.ne.s32.totalorder %s61, %s62
    %p71 = scmp.eq.s32.totalorder %s16, 0
    %p72 = por %p70, %p71
    %p73 = scmp.ne.s32.totalorder %s61, %s62
    %p74 = scmp.eq.s32.totalorder %s17, 1
    %p75 = por %p73, %p74
    %p77 = scmp.ne.s32.totalorder %s62, %s76
    %p78 = scmp.eq.s32.totalorder %s17, 0
    %p79 = por %p77, %p78
    %s81 = sadd.s32 %s80, 1
    %p84 = scmp.eq.s32.totalorder %s11, 1
    %p85 = scmp.ne.s32.totalorder %s80, %s82
    %p86 = scmp.eq.s32.totalorder %s11, 0
    %p87 = por %p85, %p86
    %p88 = scmp.ne.s32.totalorder %s80, %s82
    %p89 = scmp.eq.s32.totalorder %s16, 1
    %p90 = por %p88, %p89
    %p91 = scmp.ne.s32.totalorder %s82, %s83
    %p92 = scmp.eq.s32.totalorder %s16, 0
    %p93 = por %p91, %p92
    %p94 = scmp.ne.s32.totalorder %s82, %s83
    %p95 = scmp.eq.s32.totalorder %s17, 1
    %p96 = por %p94, %p95
    %p98 = scmp.ne.s32.totalorder %s83, %s97
    %p99 = scmp.eq.s32.totalorder %s17, 0
    %p100 = por %p98, %p99
    %s101 = sadd.s32 %s18, %s19
    %s102 = sadd.s32 %s30, %s26
    %s103 = ssub.s32 %s101, %s102
    %p104 = scmp.eq.s32.totalorder %s103, 0
    %s106 = sadd.s32 %s105, 1
    %s107 = scalar_select %p104, %s105, %s106
    %p110 = pneg %p104
    %p111 = scmp.eq.s32.totalorder %s11, 1
    %p112 = por %p110, %p111
    %p113 = scmp.ne.s32.totalorder %s105, %s108
    %p114 = scmp.eq.s32.totalorder %s11, 0
    %p115 = por %p113, %p114
    %p116 = scmp.ne.s32.totalorder %s105, %s108
    %p117 = scmp.eq.s32.totalorder %s16, 1
    %p118 = por %p116, %p117
    %p119 = scmp.ne.s32.totalorder %s108, %s109
    %p120 = scmp.eq.s32.totalorder %s16, 0
    %p121 = por %p119, %p120
    %p122 = scmp.ne.s32.totalorder %s108, %s109
    %p123 = scmp.eq.s32.totalorder %s17, 1
    %p124 = por %p122, %p123
    %p126 = scmp.ne.s32.totalorder %s109, %s125
    %p127 = scmp.eq.s32.totalorder %s17, 0
    %p128 = por %p126, %p127
    %s129 = ssub.s32 %s18, %s30
    %s130 = ssub.s32 %s19, %s26
    %s131 = sor.u32 %s129, %s130
    %p132 = scmp.eq.s32.totalorder %s131, 0
    %s134 = sadd.s32 %s133, 1
    %s135 = scalar_select %p132, %s133, %s134
    %p138 = pneg %p132
    %p139 = scmp.eq.s32.totalorder %s11, 1
    %p140 = por %p138, %p139
    %p141 = scmp.ne.s32.totalorder %s133, %s136
    %p142 = scmp.eq.s32.totalorder %s11, 0
    %p143 = por %p141, %p142
    %p144 = scmp.ne.s32.totalorder %s133, %s136
    %p145 = scmp.eq.s32.totalorder %s16, 1
    %p146 = por %p144, %p145
    %p147 = scmp.ne.s32.totalorder %s136, %s137
    %p148 = scmp.eq.s32.totalorder %s16, 0
    %p149 = por %p147, %p148
    %p150 = scmp.ne.s32.totalorder %s136, %s137
    %p151 = scmp.eq.s32.totalorder %s17, 1
    %p152 = por %p150, %p151
    %p154 = scmp.ne.s32.totalorder %s137, %s153
    %p155 = scmp.eq.s32.totalorder %s17, 0
    %p156 = por %p154, %p155
    %p157 = scmp.le.s32.totalorder 1, %s11
    %p158 = scmp.lt.s32.totalorder %s11, 3
    %p159 = pnand %p157, %p158
    %p160 = pneg %p159
    // Predicated region
    $region9: #{block_a_forward.6} parent=5 // pred_check
      _
    $region10: #{block_a_forward.6} parent=5 // pred_check_branch
      %162 = sbr.rel (%p159) target = $region12
    $region11: #{block_a_forward.6} parent=5 // pred_region
      %s163 = ssub.s32 %s11, 1
      // Predicated region
      $region13: #{block_a_forward.6} parent=11 // pred_check
        %p164 = pneg %p72
      $region14: #{block_a_forward.6} parent=11 // pred_check_branch
        %166 = sbr.rel (%p164) target = $region16
      $region15: #{block_a_forward.6} parent=11 // pred_region
        _
      $region16: #{block_a_forward.6} parent=11 // pred_fallthru
        _
      // Predicated region
      $region17: #{block_a_forward.6} parent=11 // pred_check
        %p167 = pneg %p93
      $region18: #{block_a_forward.6} parent=11 // pred_check_branch
        %169 = sbr.rel (%p167) target = $region20
      $region19: #{block_a_forward.6} parent=11 // pred_region
        _
      $region20: #{block_a_forward.6} parent=11 // pred_fallthru
        _
    $region12: #{block_a_forward.6} parent=5 // pred_fallthru
      _
    %p170 = scmp.lt.s32.totalorder %s11, 2
    // Predicated region
    $region21: #{block_a_forward.6} parent=5 // pred_check
      %p171 = pneg %p170
    $region22: #{block_a_forward.6} parent=5 // pred_check_branch
      %173 = sbr.rel (%p171) target = $region24
    $region23: #{block_a_forward.6} parent=5 // pred_region
      // Predicated region
      $region25: #{block_a_forward.6} parent=23 // pred_check
        %p174 = pneg %p45
      $region26: #{block_a_forward.6} parent=23 // pred_check_branch
        %176 = sbr.rel (%p174) target = $region28
      $region27: #{block_a_forward.6} parent=23 // pred_region
        %s177 = smul.u32 9, %s18
        %s178 = smul.u32 8, %s19
        %p179 = scmp.lt.s32.totalorder %s177, 17
        %s180 = scalar_select %p179, %s177, 17
        %p181 = scmp.lt.s32.totalorder %s178, 7
        %s182 = scalar_select %p181, %s178, 7
        %s183 = smul.addr %s180, 8
        %s184 = sadd.s32 %s182, %s183
        %s185 = smul.addr %s184, 4
        %s186 = scalar_lea.vmem %s0, %s185
        %s187 = smul.u32 9, %s18
        %s188 = smul.u32 8, %s19
      $region28: #{block_a_forward.6} parent=23 // pred_fallthru
        _
    $region24: #{block_a_forward.6} parent=5 // pred_fallthru
      _
    %p189 = scmp.le.s32.totalorder 1, %s11
    %p190 = scmp.lt.s32.totalorder %s11, 3
    %p191 = pnand %p189, %p190
    %p192 = pneg %p191
    // Predicated region
    $region29: #{block_a_forward.6} parent=5 // pred_check
      _
    $region30: #{block_a_forward.6} parent=5 // pred_check_branch
      %194 = sbr.rel (%p191) target = $region32
    $region31: #{block_a_forward.6} parent=5 // pred_region
      %s195 = ssub.s32 %s11, 1
      %s196 = smul.u32 9, %s20
      %s197 = smul.u32 8, %s21
      %p198 = scmp.lt.s32.totalorder %s196, 17
      %s199 = scalar_select %p198, %s196, 17
      %p200 = scmp.lt.s32.totalorder %s197, 7
      %s201 = scalar_select %p200, %s197, 7
      %s202 = smul.addr %s199, 8
      %s203 = sadd.s32 %s201, %s202
      %s204 = smul.addr %s203, 4
      %s205 = scalar_lea.vmem %s0, %s204
      %p206 = pneg %p51
      %p207 = pneg %p48
      %p208 = pneg %p72
      %p209 = pneg %p69
      %p210 = pneg %p93
      %p211 = pneg %p90
      %p212 = pneg %p121
      %p213 = pneg %p118
      %s214 = sadd.s32 %s20, %s21
      %s215 = smul.u32 8, %s214
      %p216 = scmp.lt.s32.totalorder %s215, 15
      %s217 = scalar_select %p216, %s215, 15
      %s218 = smul.addr %s217, 8
      %s219 = scalar_lea.vmem %s3, %s218
      %p220 = pneg %p149
      %p221 = pneg %p146
      %p222 = scmp.lt.s32.totalorder %s20, 1
      %s223 = scalar_select %p222, %s20, 1
      %p224 = scmp.lt.s32.totalorder %s21, 0
      %s225 = scalar_select %p224, %s21, 0
      %s226 = sadd.s32 %s225, %s223
      %s227 = smul.addr %s226, 2
      %s228 = scalar_lea.vmem %s4, %s227
      %s229 = smul.u32 9, %s20
      %s230 = smul.u32 8, %s21
      %p231 = scmp.lt.s32.totalorder %s229, 17
      %s232 = scalar_select %p231, %s229, 17
      %p233 = scmp.lt.s32.totalorder %s230, 7
      %s234 = scalar_select %p233, %s230, 7
      %s235 = smul.addr %s232, 8
      %s236 = sadd.s32 %s234, %s235
      %s237 = smul.addr %s236, 4
      %s238 = scalar_lea.vmem %s0, %s237
      %s239 = smul.u32 9, %s20
      %s240 = smul.u32 8, %s21
      %s241 = sadd.s32 %s20, %s21
      %s242 = smul.u32 8, %s241
      %p243 = scmp.lt.s32.totalorder %s242, 15
      %s244 = scalar_select %p243, %s242, 15
      %s245 = smul.addr %s244, 8
      %s246 = scalar_lea.vmem %s3, %s245
      %s247 = sadd.s32 %s20, %s21
      %s248 = smul.u32 8, %s247
      %p249 = scmp.lt.s32.totalorder %s20, 1
      %s250 = scalar_select %p249, %s20, 1
      %p251 = scmp.lt.s32.totalorder %s21, 0
      %s252 = scalar_select %p251, %s21, 0
      %s253 = sadd.s32 %s252, %s250
      %s254 = smul.addr %s253, 2
      %s255 = scalar_lea.vmem %s4, %s254
      %v257 = vld [vmem:[%s238] sm:$0xf]
      %v258 = vld [vmem:[%s238 + $0x4] sm:$0xf]
      %v259 = vld [vmem:[%s238 + $0x8] sm:$0xf]
      %v260 = vld [vmem:[%s238 + $0xc] sm:$0xf]
      %v261 = vld [vmem:[%s238 + $0x10] sm:$0xf]
      %v262 = vld [vmem:[%s238 + $0x14] sm:$0xf]
      %v263 = vld [vmem:[%s238 + $0x18] sm:$0xf]
      %v264 = vld [vmem:[%s238 + $0x1c] sm:$0xf]
      %v265 = vld [vmem:[%s1] sm:$0xf]
      %v266 = vld [vmem:[%s1 + $0x4] sm:$0xf]
      %v267 = vld [vmem:[%s1 + $0x8] sm:$0xf]
      %v268 = vld [vmem:[%s1 + $0xc] sm:$0xf]
      %v269 = vld [vmem:[%s1 + $0x10] sm:$0xf]
      %v270 = vld [vmem:[%s1 + $0x14] sm:$0xf]
      %v271 = vld [vmem:[%s1 + $0x18] sm:$0xf]
      %v272 = vld [vmem:[%s1 + $0x1c] sm:$0xf]
      %v273 = vld [vmem:[%s1 + $0x20] sm:$0xf]
      %v274 = vld [vmem:[%s1 + $0x24] sm:$0xf]
      %v275 = vld [vmem:[%s1 + $0x28] sm:$0xf]
      %v276 = vld [vmem:[%s1 + $0x2c] sm:$0xf]
      %v277 = vld [vmem:[%s1 + $0x30] sm:$0xf]
      %v278 = vld [vmem:[%s1 + $0x34] sm:$0xf]
      %v279 = vld [vmem:[%s1 + $0x38] sm:$0xf]
      %v280 = vld [vmem:[%s1 + $0x3c] sm:$0xf]
      %s281 = scalar_lea.vmem %s238, 32
      %v282 = vld [vmem:[%s281] sm:$0xf]
      %v283 = vld [vmem:[%s281 + $0x4] sm:$0xf]
      %v284 = vld [vmem:[%s281 + $0x8] sm:$0xf]
      %v285 = vld [vmem:[%s281 + $0xc] sm:$0xf]
      %v286 = vld [vmem:[%s281 + $0x10] sm:$0xf]
      %v287 = vld [vmem:[%s281 + $0x14] sm:$0xf]
      %v288 = vld [vmem:[%s281 + $0x18] sm:$0xf]
      %v289 = vld [vmem:[%s281 + $0x1c] sm:$0xf]
      %s290 = scalar_lea.vmem %s1, 64
      %v291 = vld [vmem:[%s290] sm:$0xf]
      %v292 = vld [vmem:[%s290 + $0x4] sm:$0xf]
      %v293 = vld [vmem:[%s290 + $0x8] sm:$0xf]
      %v294 = vld [vmem:[%s290 + $0xc] sm:$0xf]
      %v295 = vld [vmem:[%s290 + $0x10] sm:$0xf]
      %v296 = vld [vmem:[%s290 + $0x14] sm:$0xf]
      %v297 = vld [vmem:[%s290 + $0x18] sm:$0xf]
      %v298 = vld [vmem:[%s290 + $0x1c] sm:$0xf]
      %v299 = vld [vmem:[%s290 + $0x20] sm:$0xf]
      %v300 = vld [vmem:[%s290 + $0x24] sm:$0xf]
      %v301 = vld [vmem:[%s290 + $0x28] sm:$0xf]
      %v302 = vld [vmem:[%s290 + $0x2c] sm:$0xf]
      %v303 = vld [vmem:[%s290 + $0x30] sm:$0xf]
      %v304 = vld [vmem:[%s290 + $0x34] sm:$0xf]
      %v305 = vld [vmem:[%s290 + $0x38] sm:$0xf]
      %v306 = vld [vmem:[%s290 + $0x3c] sm:$0xf]
      %v315 = vunpack.c.l.b16 %v282
      %v316 = vunpack.c.l.b16 %v283
      %v317 = vunpack.c.l.b16 %v284
      %v318 = vunpack.c.l.b16 %v285
      %v319 = vunpack.c.l.b16 %v286
      %v320 = vunpack.c.l.b16 %v287
      %v321 = vunpack.c.l.b16 %v288
      %v322 = vunpack.c.l.b16 %v289
      %v323 = vpack.c.b16 %v316, %v315
      %v324 = vpack.c.b16 %v318, %v317
      %v325 = vpack.c.b16 %v320, %v319
      %v326 = vpack.c.b16 %v322, %v321
      %v347 = vunpack.c.l.b16 %v291
      %v348 = vunpack.c.l.b16 %v292
      %v349 = vunpack.c.l.b16 %v293
      %v350 = vunpack.c.l.b16 %v294
      %v351 = vunpack.c.l.b16 %v295
      %v352 = vunpack.c.l.b16 %v296
      %v353 = vunpack.c.l.b16 %v297
      %v354 = vunpack.c.l.b16 %v298
      %v355 = vunpack.c.l.b16 %v299
      %v356 = vunpack.c.l.b16 %v300
      %v357 = vunpack.c.l.b16 %v301
      %v358 = vunpack.c.l.b16 %v302
      %v359 = vunpack.c.l.b16 %v303
      %v360 = vunpack.c.l.b16 %v304
      %v361 = vunpack.c.l.b16 %v305
      %v362 = vunpack.c.l.b16 %v306
      %v363 = vpack.c.b16 %v348, %v347
      %v364 = vpack.c.b16 %v350, %v349
      %v365 = vpack.c.b16 %v352, %v351
      %v366 = vpack.c.b16 %v354, %v353
      %v367 = vpack.c.b16 %v356, %v355
      %v368 = vpack.c.b16 %v358, %v357
      %v369 = vpack.c.b16 %v360, %v359
      %v370 = vpack.c.b16 %v362, %v361
      %379 = vmatprep.subr.bf16.mxu0 0
      %380 = vmatpush1.bf16.msra.mxu0 %v370
      %381 = vmatprep.subr.bf16.mxu0 0
      %382 = vmatpush1.bf16.msra.mxu0 %v369
      %383 = vmatprep.subr.bf16.mxu0 0
      %384 = vmatpush1.bf16.msra.mxu0 %v368
      %385 = vmatprep.subr.bf16.mxu0 0
      %386 = vmatpush1.bf16.msra.mxu0 %v367
      %387 = vmatprep.subr.bf16.mxu0 0
      %388 = vmatpush1.bf16.msra.mxu0 %v366
      %389 = vmatprep.subr.bf16.mxu0 0
      %390 = vmatpush1.bf16.msra.mxu0 %v365
      %391 = vmatprep.subr.bf16.mxu0 0
      %392 = vmatpush1.bf16.msra.mxu0 %v364
      %393 = vmatprep.subr.bf16.mxu0 0
      %394 = vmatpush1.bf16.msra.mxu0 %v363
      %395 = vmatprep.subr.bf16.mxu0 0
      %396 = vmatpush2.bf16.msra.mxu0 0
      %397 = vmatprep.subr.bf16.mxu0 0
      %398 = vmatpush2.bf16.msra.mxu0 0
      %399 = vmatprep.subr.bf16.mxu0 0
      %400 = vmatpush2.bf16.msra.mxu0 0
      %401 = vmatprep.subr.bf16.mxu0 0
      %402 = vmatpush2.bf16.msra.mxu0 0
      %403 = vmatprep.subr.bf16.mxu0 0
      %404 = vmatpush2.bf16.msra.mxu0 0
      %405 = vmatprep.subr.bf16.mxu0 0
      %406 = vmatpush2.bf16.msra.mxu0 0
      %407 = vmatprep.subr.bf16.mxu0 0
      %408 = vmatpush2.bf16.msra.mxu0 0
      %409 = vmatprep.subr.bf16.mxu0 0
      %410 = vmatpush2.bf16.msra.mxu0 0
      %411 = vmatprep.mubr.bf16.mxu0 0
      %412 = vmatmul.mubr.bf16.gmra.mxu0 %v323
      %v413 = vpop.f32.mrf.mxu0
      %v414 = vadd.f32 0.0, %v413
      %v415 = vpop.f32.mrf.mxu0
      %v416 = vpop.f32.mrf.mxu0
      %v417 = vadd.f32 0.0, %v416
      %v418 = vpop.f32.mrf.mxu0
      %419 = vmatprep.mubr.bf16.mxu0 0
      %420 = vmatmul.mubr.bf16.gmra.mxu0 %v324
      %v421 = vpop.f32.mrf.mxu0
      %v422 = vadd.f32 0.0, %v421
      %v423 = vpop.f32.mrf.mxu0
      %v424 = vpop.f32.mrf.mxu0
      %v425 = vadd.f32 0.0, %v424
      %v426 = vpop.f32.mrf.mxu0
      %427 = vmatprep.mubr.bf16.mxu0 0
      %428 = vmatmul.mubr.bf16.gmra.mxu0 %v325
      %v429 = vpop.f32.mrf.mxu0
      %v430 = vadd.f32 0.0, %v429
      %v431 = vpop.f32.mrf.mxu0
      %v432 = vpop.f32.mrf.mxu0
      %v433 = vadd.f32 0.0, %v432
      %v434 = vpop.f32.mrf.mxu0
      %435 = vmatprep.mubr.bf16.mxu0 0
      %436 = vmatmul.mubr.bf16.gmra.mxu0 %v326
      %v437 = vpop.f32.mrf.mxu0
      %v438 = vadd.f32 0.0, %v437
      %v439 = vpop.f32.mrf.mxu0
      %v440 = vpop.f32.mrf.mxu0
      %v441 = vadd.f32 0.0, %v440
      %v442 = vpop.f32.mrf.mxu0
      %443 = vdwg.mxu0
      %v452 = vunpack.c.l.b16 %v257
      %v453 = vunpack.c.l.b16 %v258
      %v454 = vunpack.c.l.b16 %v259
      %v455 = vunpack.c.l.b16 %v260
      %v456 = vunpack.c.l.b16 %v261
      %v457 = vunpack.c.l.b16 %v262
      %v458 = vunpack.c.l.b16 %v263
      %v459 = vunpack.c.l.b16 %v264
      %v460 = vpack.c.b16 %v453, %v452
      %v461 = vpack.c.b16 %v455, %v454
      %v462 = vpack.c.b16 %v457, %v456
      %v463 = vpack.c.b16 %v459, %v458
      %v484 = vunpack.c.l.b16 %v265
      %v485 = vunpack.c.l.b16 %v266
      %v486 = vunpack.c.l.b16 %v267
      %v487 = vunpack.c.l.b16 %v268
      %v488 = vunpack.c.l.b16 %v269
      %v489 = vunpack.c.l.b16 %v270
      %v490 = vunpack.c.l.b16 %v271
      %v491 = vunpack.c.l.b16 %v272
      %v492 = vunpack.c.l.b16 %v273
      %v493 = vunpack.c.l.b16 %v274
      %v494 = vunpack.c.l.b16 %v275
      %v495 = vunpack.c.l.b16 %v276
      %v496 = vunpack.c.l.b16 %v277
      %v497 = vunpack.c.l.b16 %v278
      %v498 = vunpack.c.l.b16 %v279
      %v499 = vunpack.c.l.b16 %v280
      %v500 = vpack.c.b16 %v485, %v484
      %v501 = vpack.c.b16 %v487, %v486
      %v502 = vpack.c.b16 %v489, %v488
      %v503 = vpack.c.b16 %v491, %v490
      %v504 = vpack.c.b16 %v493, %v492
      %v505 = vpack.c.b16 %v495, %v494
      %v506 = vpack.c.b16 %v497, %v496
      %v507 = vpack.c.b16 %v499, %v498
      %516 = vmatprep.subr.bf16.mxu0 0
      %517 = vmatpush1.bf16.msra.mxu0 %v507
      %518 = vmatprep.subr.bf16.mxu0 0
      %519 = vmatpush1.bf16.msra.mxu0 %v506
      %520 = vmatprep.subr.bf16.mxu0 0
      %521 = vmatpush1.bf16.msra.mxu0 %v505
      %522 = vmatprep.subr.bf16.mxu0 0
      %523 = vmatpush1.bf16.msra.mxu0 %v504
      %524 = vmatprep.subr.bf16.mxu0 0
      %525 = vmatpush1.bf16.msra.mxu0 %v503
      %526 = vmatprep.subr.bf16.mxu0 0
      %527 = vmatpush1.bf16.msra.mxu0 %v502
      %528 = vmatprep.subr.bf16.mxu0 0
      %529 = vmatpush1.bf16.msra.mxu0 %v501
      %530 = vmatprep.subr.bf16.mxu0 0
      %531 = vmatpush1.bf16.msra.mxu0 %v500
      %532 = vmatprep.subr.bf16.mxu0 0
      %533 = vmatpush2.bf16.msra.mxu0 0
      %534 = vmatprep.subr.bf16.mxu0 0
      %535 = vmatpush2.bf16.msra.mxu0 0
      %536 = vmatprep.subr.bf16.mxu0 0
      %537 = vmatpush2.bf16.msra.mxu0 0
      %538 = vmatprep.subr.bf16.mxu0 0
      %539 = vmatpush2.bf16.msra.mxu0 0
      %540 = vmatprep.subr.bf16.mxu0 0
      %541 = vmatpush2.bf16.msra.mxu0 0
      %542 = vmatprep.subr.bf16.mxu0 0
      %543 = vmatpush2.bf16.msra.mxu0 0
      %544 = vmatprep.subr.bf16.mxu0 0
      %545 = vmatpush2.bf16.msra.mxu0 0
      %546 = vmatprep.subr.bf16.mxu0 0
      %547 = vmatpush2.bf16.msra.mxu0 0
      %548 = vmatprep.mubr.bf16.mxu0 0
      %549 = vmatmul.mubr.bf16.gmra.mxu0 %v460
      %v550 = vpop.f32.mrf.mxu0
      %v551 = vadd.f32 %v414, %v550
      %v552 = vpop.f32.mrf.mxu0
      %v553 = vpop.f32.mrf.mxu0
      %v554 = vadd.f32 %v417, %v553
      %v555 = vpop.f32.mrf.mxu0
      %556 = vmatprep.mubr.bf16.mxu0 0
      %557 = vmatmul.mubr.bf16.gmra.mxu0 %v461
      %v558 = vpop.f32.mrf.mxu0
      %v559 = vadd.f32 %v422, %v558
      %v560 = vpop.f32.mrf.mxu0
      %v561 = vpop.f32.mrf.mxu0
      %v562 = vadd.f32 %v425, %v561
      %v563 = vpop.f32.mrf.mxu0
      %564 = vmatprep.mubr.bf16.mxu0 0
      %565 = vmatmul.mubr.bf16.gmra.mxu0 %v462
      %v566 = vpop.f32.mrf.mxu0
      %v567 = vadd.f32 %v430, %v566
      %v568 = vpop.f32.mrf.mxu0
      %v569 = vpop.f32.mrf.mxu0
      %v570 = vadd.f32 %v433, %v569
      %v571 = vpop.f32.mrf.mxu0
      %572 = vmatprep.mubr.bf16.mxu0 0
      %573 = vmatmul.mubr.bf16.gmra.mxu0 %v463
      %v574 = vpop.f32.mrf.mxu0
      %v575 = vadd.f32 %v438, %v574
      %v576 = vpop.f32.mrf.mxu0
      %v577 = vpop.f32.mrf.mxu0
      %v578 = vadd.f32 %v441, %v577
      %v579 = vpop.f32.mrf.mxu0
      %580 = vdwg.mxu0
      %s581 = scalar_lea.vmem %s238, 64
      %v582 = vld [vmem:[%s581] sm:$0xf]
      %v583 = vld [vmem:[%s581 + $0x4] sm:$0xf]
      %v584 = vld [vmem:[%s581 + $0x8] sm:$0xf]
      %v585 = vld [vmem:[%s581 + $0xc] sm:$0xf]
      %v586 = vld [vmem:[%s581 + $0x10] sm:$0xf]
      %v587 = vld [vmem:[%s581 + $0x14] sm:$0xf]
      %v588 = vld [vmem:[%s581 + $0x18] sm:$0xf]
      %v589 = vld [vmem:[%s581 + $0x1c] sm:$0xf]
      %s590 = scalar_lea.vmem %s1, 128
      %v591 = vld [vmem:[%s590] sm:$0xf]
      %v592 = vld [vmem:[%s590 + $0x4] sm:$0xf]
      %v593 = vld [vmem:[%s590 + $0x8] sm:$0xf]
      %v594 = vld [vmem:[%s590 + $0xc] sm:$0xf]
      %v595 = vld [vmem:[%s590 + $0x10] sm:$0xf]
      %v596 = vld [vmem:[%s590 + $0x14] sm:$0xf]
      %v597 = vld [vmem:[%s590 + $0x18] sm:$0xf]
      %v598 = vld [vmem:[%s590 + $0x1c] sm:$0xf]
      %v599 = vld [vmem:[%s590 + $0x20] sm:$0xf]
      %v600 = vld [vmem:[%s590 + $0x24] sm:$0xf]
      %v601 = vld [vmem:[%s590 + $0x28] sm:$0xf]
      %v602 = vld [vmem:[%s590 + $0x2c] sm:$0xf]
      %v603 = vld [vmem:[%s590 + $0x30] sm:$0xf]
      %v604 = vld [vmem:[%s590 + $0x34] sm:$0xf]
      %v605 = vld [vmem:[%s590 + $0x38] sm:$0xf]
      %v606 = vld [vmem:[%s590 + $0x3c] sm:$0xf]
      %v615 = vunpack.c.l.b16 %v582
      %v616 = vunpack.c.l.b16 %v583
      %v617 = vunpack.c.l.b16 %v584
      %v618 = vunpack.c.l.b16 %v585
      %v619 = vunpack.c.l.b16 %v586
      %v620 = vunpack.c.l.b16 %v587
      %v621 = vunpack.c.l.b16 %v588
      %v622 = vunpack.c.l.b16 %v589
      %v623 = vpack.c.b16 %v616, %v615
      %v624 = vpack.c.b16 %v618, %v617
      %v625 = vpack.c.b16 %v620, %v619
      %v626 = vpack.c.b16 %v622, %v621
      %v647 = vunpack.c.l.b16 %v591
      %v648 = vunpack.c.l.b16 %v592
      %v649 = vunpack.c.l.b16 %v593
      %v650 = vunpack.c.l.b16 %v594
      %v651 = vunpack.c.l.b16 %v595
      %v652 = vunpack.c.l.b16 %v596
      %v653 = vunpack.c.l.b16 %v597
      %v654 = vunpack.c.l.b16 %v598
      %v655 = vunpack.c.l.b16 %v599
      %v656 = vunpack.c.l.b16 %v600
      %v657 = vunpack.c.l.b16 %v601
      %v658 = vunpack.c.l.b16 %v602
      %v659 = vunpack.c.l.b16 %v603
      %v660 = vunpack.c.l.b16 %v604
      %v661 = vunpack.c.l.b16 %v605
      %v662 = vunpack.c.l.b16 %v606
      %v663 = vpack.c.b16 %v648, %v647
      %v664 = vpack.c.b16 %v650, %v649
      %v665 = vpack.c.b16 %v652, %v651
      %v666 = vpack.c.b16 %v654, %v653
      %v667 = vpack.c.b16 %v656, %v655
      %v668 = vpack.c.b16 %v658, %v657
      %v669 = vpack.c.b16 %v660, %v659
      %v670 = vpack.c.b16 %v662, %v661
      %679 = vmatprep.subr.bf16.mxu0 0
      %680 = vmatpush1.bf16.msra.mxu0 %v670
      %681 = vmatprep.subr.bf16.mxu0 0
      %682 = vmatpush1.bf16.msra.mxu0 %v669
      %683 = vmatprep.subr.bf16.mxu0 0
      %684 = vmatpush1.bf16.msra.mxu0 %v668
      %685 = vmatprep.subr.bf16.mxu0 0
      %686 = vmatpush1.bf16.msra.mxu0 %v667
      %687 = vmatprep.subr.bf16.mxu0 0
      %688 = vmatpush1.bf16.msra.mxu0 %v666
      %689 = vmatprep.subr.bf16.mxu0 0
      %690 = vmatpush1.bf16.msra.mxu0 %v665
      %691 = vmatprep.subr.bf16.mxu0 0
      %692 = vmatpush1.bf16.msra.mxu0 %v664
      %693 = vmatprep.subr.bf16.mxu0 0
      %694 = vmatpush1.bf16.msra.mxu0 %v663
      %695 = vmatprep.subr.bf16.mxu0 0
      %696 = vmatpush2.bf16.msra.mxu0 0
      %697 = vmatprep.subr.bf16.mxu0 0
      %698 = vmatpush2.bf16.msra.mxu0 0
      %699 = vmatprep.subr.bf16.mxu0 0
      %700 = vmatpush2.bf16.msra.mxu0 0
      %701 = vmatprep.subr.bf16.mxu0 0
      %702 = vmatpush2.bf16.msra.mxu0 0
      %703 = vmatprep.subr.bf16.mxu0 0
      %704 = vmatpush2.bf16.msra.mxu0 0
      %705 = vmatprep.subr.bf16.mxu0 0
      %706 = vmatpush2.bf16.msra.mxu0 0
      %707 = vmatprep.subr.bf16.mxu0 0
      %708 = vmatpush2.bf16.msra.mxu0 0
      %709 = vmatprep.subr.bf16.mxu0 0
      %710 = vmatpush2.bf16.msra.mxu0 0
      %711 = vmatprep.mubr.bf16.mxu0 0
      %712 = vmatmul.mubr.bf16.gmra.mxu0 %v623
      %v713 = vpop.f32.mrf.mxu0
      %v714 = vadd.f32 0.0, %v713
      %v715 = vpop.f32.mrf.mxu0
      %v716 = vpop.f32.mrf.mxu0
      %v717 = vadd.f32 0.0, %v716
      %v718 = vpop.f32.mrf.mxu0
      %719 = vmatprep.mubr.bf16.mxu0 0
      %720 = vmatmul.mubr.bf16.gmra.mxu0 %v624
      %v721 = vpop.f32.mrf.mxu0
      %v722 = vadd.f32 0.0, %v721
      %v723 = vpop.f32.mrf.mxu0
      %v724 = vpop.f32.mrf.mxu0
      %v725 = vadd.f32 0.0, %v724
      %v726 = vpop.f32.mrf.mxu0
      %727 = vmatprep.mubr.bf16.mxu0 0
      %728 = vmatmul.mubr.bf16.gmra.mxu0 %v625
      %v729 = vpop.f32.mrf.mxu0
      %v730 = vadd.f32 0.0, %v729
      %v731 = vpop.f32.mrf.mxu0
      %v732 = vpop.f32.mrf.mxu0
      %v733 = vadd.f32 0.0, %v732
      %v734 = vpop.f32.mrf.mxu0
      %735 = vmatprep.mubr.bf16.mxu0 0
      %736 = vmatmul.mubr.bf16.gmra.mxu0 %v626
      %v737 = vpop.f32.mrf.mxu0
      %v738 = vadd.f32 0.0, %v737
      %v739 = vpop.f32.mrf.mxu0
      %v740 = vpop.f32.mrf.mxu0
      %v741 = vadd.f32 0.0, %v740
      %v742 = vpop.f32.mrf.mxu0
      %743 = vdwg.mxu0
      %v744 = vadd.f32 %v551, %v714
      %v745 = vadd.f32 %v554, %v717
      %v746 = vadd.f32 %v559, %v722
      %v747 = vadd.f32 %v562, %v725
      %v748 = vadd.f32 %v567, %v730
      %v749 = vadd.f32 %v570, %v733
      %v750 = vadd.f32 %v575, %v738
      %v751 = vadd.f32 %v578, %v741
      %s752 = scalar_lea.vmem %s238, 96
      %v753 = vld [vmem:[%s752] sm:$0xf]
      %v754 = vld [vmem:[%s752 + $0x4] sm:$0xf]
      %v755 = vld [vmem:[%s752 + $0x8] sm:$0xf]
      %v756 = vld [vmem:[%s752 + $0xc] sm:$0xf]
      %v757 = vld [vmem:[%s752 + $0x10] sm:$0xf]
      %v758 = vld [vmem:[%s752 + $0x14] sm:$0xf]
      %v759 = vld [vmem:[%s752 + $0x18] sm:$0xf]
      %v760 = vld [vmem:[%s752 + $0x1c] sm:$0xf]
      %s761 = scalar_lea.vmem %s1, 192
      %v762 = vld [vmem:[%s761] sm:$0xf]
      %v763 = vld [vmem:[%s761 + $0x4] sm:$0xf]
      %v764 = vld [vmem:[%s761 + $0x8] sm:$0xf]
      %v765 = vld [vmem:[%s761 + $0xc] sm:$0xf]
      %v766 = vld [vmem:[%s761 + $0x10] sm:$0xf]
      %v767 = vld [vmem:[%s761 + $0x14] sm:$0xf]
      %v768 = vld [vmem:[%s761 + $0x18] sm:$0xf]
      %v769 = vld [vmem:[%s761 + $0x1c] sm:$0xf]
      %v770 = vld [vmem:[%s761 + $0x20] sm:$0xf]
      %v771 = vld [vmem:[%s761 + $0x24] sm:$0xf]
      %v772 = vld [vmem:[%s761 + $0x28] sm:$0xf]
      %v773 = vld [vmem:[%s761 + $0x2c] sm:$0xf]
      %v774 = vld [vmem:[%s761 + $0x30] sm:$0xf]
      %v775 = vld [vmem:[%s761 + $0x34] sm:$0xf]
      %v776 = vld [vmem:[%s761 + $0x38] sm:$0xf]
      %v777 = vld [vmem:[%s761 + $0x3c] sm:$0xf]
      %v786 = vunpack.c.l.b16 %v753
      %v787 = vunpack.c.l.b16 %v754
      %v788 = vunpack.c.l.b16 %v755
      %v789 = vunpack.c.l.b16 %v756
      %v790 = vunpack.c.l.b16 %v757
      %v791 = vunpack.c.l.b16 %v758
      %v792 = vunpack.c.l.b16 %v759
      %v793 = vunpack.c.l.b16 %v760
      %v794 = vpack.c.b16 %v787, %v786
      %v795 = vpack.c.b16 %v789, %v788
      %v796 = vpack.c.b16 %v791, %v790
      %v797 = vpack.c.b16 %v793, %v792
      %v818 = vunpack.c.l.b16 %v762
      %v819 = vunpack.c.l.b16 %v763
      %v820 = vunpack.c.l.b16 %v764
      %v821 = vunpack.c.l.b16 %v765
      %v822 = vunpack.c.l.b16 %v766
      %v823 = vunpack.c.l.b16 %v767
      %v824 = vunpack.c.l.b16 %v768
      %v825 = vunpack.c.l.b16 %v769
      %v826 = vunpack.c.l.b16 %v770
      %v827 = vunpack.c.l.b16 %v771
      %v828 = vunpack.c.l.b16 %v772
      %v829 = vunpack.c.l.b16 %v773
      %v830 = vunpack.c.l.b16 %v774
      %v831 = vunpack.c.l.b16 %v775
      %v832 = vunpack.c.l.b16 %v776
      %v833 = vunpack.c.l.b16 %v777
      %v834 = vpack.c.b16 %v819, %v818
      %v835 = vpack.c.b16 %v821, %v820
      %v836 = vpack.c.b16 %v823, %v822
      %v837 = vpack.c.b16 %v825, %v824
      %v838 = vpack.c.b16 %v827, %v826
      %v839 = vpack.c.b16 %v829, %v828
      %v840 = vpack.c.b16 %v831, %v830
      %v841 = vpack.c.b16 %v833, %v832
      %850 = vmatprep.subr.bf16.mxu0 0
      %851 = vmatpush1.bf16.msra.mxu0 %v841
      %852 = vmatprep.subr.bf16.mxu0 0
      %853 = vmatpush1.bf16.msra.mxu0 %v840
      %854 = vmatprep.subr.bf16.mxu0 0
      %855 = vmatpush1.bf16.msra.mxu0 %v839
      %856 = vmatprep.subr.bf16.mxu0 0
      %857 = vmatpush1.bf16.msra.mxu0 %v838
      %858 = vmatprep.subr.bf16.mxu0 0
      %859 = vmatpush1.bf16.msra.mxu0 %v837
      %860 = vmatprep.subr.bf16.mxu0 0
      %861 = vmatpush1.bf16.msra.mxu0 %v836
      %862 = vmatprep.subr.bf16.mxu0 0
      %863 = vmatpush1.bf16.msra.mxu0 %v835
      %864 = vmatprep.subr.bf16.mxu0 0
      %865 = vmatpush1.bf16.msra.mxu0 %v834
      %866 = vmatprep.subr.bf16.mxu0 0
      %867 = vmatpush2.bf16.msra.mxu0 0
      %868 = vmatprep.subr.bf16.mxu0 0
      %869 = vmatpush2.bf16.msra.mxu0 0
      %870 = vmatprep.subr.bf16.mxu0 0
      %871 = vmatpush2.bf16.msra.mxu0 0
      %872 = vmatprep.subr.bf16.mxu0 0
      %873 = vmatpush2.bf16.msra.mxu0 0
      %874 = vmatprep.subr.bf16.mxu0 0
      %875 = vmatpush2.bf16.msra.mxu0 0
      %876 = vmatprep.subr.bf16.mxu0 0
      %877 = vmatpush2.bf16.msra.mxu0 0
      %878 = vmatprep.subr.bf16.mxu0 0
      %879 = vmatpush2.bf16.msra.mxu0 0
      %880 = vmatprep.subr.bf16.mxu0 0
      %881 = vmatpush2.bf16.msra.mxu0 0
      %882 = vmatprep.mubr.bf16.mxu0 0
      %883 = vmatmul.mubr.bf16.gmra.mxu0 %v794
      %v884 = vpop.f32.mrf.mxu0
      %v885 = vadd.f32 0.0, %v884
      %v886 = vpop.f32.mrf.mxu0
      %v887 = vpop.f32.mrf.mxu0
      %v888 = vadd.f32 0.0, %v887
      %v889 = vpop.f32.mrf.mxu0
      %890 = vmatprep.mubr.bf16.mxu0 0
      %891 = vmatmul.mubr.bf16.gmra.mxu0 %v795
      %v892 = vpop.f32.mrf.mxu0
      %v893 = vadd.f32 0.0, %v892
      %v894 = vpop.f32.mrf.mxu0
      %v895 = vpop.f32.mrf.mxu0
      %v896 = vadd.f32 0.0, %v895
      %v897 = vpop.f32.mrf.mxu0
      %898 = vmatprep.mubr.bf16.mxu0 0
      %899 = vmatmul.mubr.bf16.gmra.mxu0 %v796
      %v900 = vpop.f32.mrf.mxu0
      %v901 = vadd.f32 0.0, %v900
      %v902 = vpop.f32.mrf.mxu0
      %v903 = vpop.f32.mrf.mxu0
      %v904 = vadd.f32 0.0, %v903
      %v905 = vpop.f32.mrf.mxu0
      %906 = vmatprep.mubr.bf16.mxu0 0
      %907 = vmatmul.mubr.bf16.gmra.mxu0 %v797
      %v908 = vpop.f32.mrf.mxu0
      %v909 = vadd.f32 0.0, %v908
      %v910 = vpop.f32.mrf.mxu0
      %v911 = vpop.f32.mrf.mxu0
      %v912 = vadd.f32 0.0, %v911
      %v913 = vpop.f32.mrf.mxu0
      %914 = vdwg.mxu0
      %v915 = vadd.f32 %v744, %v885
      %v916 = vadd.f32 %v745, %v888
      %v917 = vadd.f32 %v746, %v893
      %v918 = vadd.f32 %v747, %v896
      %v919 = vadd.f32 %v748, %v901
      %v920 = vadd.f32 %v749, %v904
      %v921 = vadd.f32 %v750, %v909
      %v922 = vadd.f32 %v751, %v912
      %s923 = scalar_lea.vmem %s238, 128
      %v924 = vld [vmem:[%s923] sm:$0xf]
      %v925 = vld [vmem:[%s923 + $0x4] sm:$0xf]
      %v926 = vld [vmem:[%s923 + $0x8] sm:$0xf]
      %v927 = vld [vmem:[%s923 + $0xc] sm:$0xf]
      %v928 = vld [vmem:[%s923 + $0x10] sm:$0xf]
      %v929 = vld [vmem:[%s923 + $0x14] sm:$0xf]
      %v930 = vld [vmem:[%s923 + $0x18] sm:$0xf]
      %v931 = vld [vmem:[%s923 + $0x1c] sm:$0xf]
      %s932 = scalar_lea.vmem %s1, 256
      %v933 = vld [vmem:[%s932] sm:$0xf]
      %v934 = vld [vmem:[%s932 + $0x4] sm:$0xf]
      %v935 = vld [vmem:[%s932 + $0x8] sm:$0xf]
      %v936 = vld [vmem:[%s932 + $0xc] sm:$0xf]
      %v937 = vld [vmem:[%s932 + $0x10] sm:$0xf]
      %v938 = vld [vmem:[%s932 + $0x14] sm:$0xf]
      %v939 = vld [vmem:[%s932 + $0x18] sm:$0xf]
      %v940 = vld [vmem:[%s932 + $0x1c] sm:$0xf]
      %v941 = vld [vmem:[%s932 + $0x20] sm:$0xf]
      %v942 = vld [vmem:[%s932 + $0x24] sm:$0xf]
      %v943 = vld [vmem:[%s932 + $0x28] sm:$0xf]
      %v944 = vld [vmem:[%s932 + $0x2c] sm:$0xf]
      %v945 = vld [vmem:[%s932 + $0x30] sm:$0xf]
      %v946 = vld [vmem:[%s932 + $0x34] sm:$0xf]
      %v947 = vld [vmem:[%s932 + $0x38] sm:$0xf]
      %v948 = vld [vmem:[%s932 + $0x3c] sm:$0xf]
      %v957 = vunpack.c.l.b16 %v924
      %v958 = vunpack.c.l.b16 %v925
      %v959 = vunpack.c.l.b16 %v926
      %v960 = vunpack.c.l.b16 %v927
      %v961 = vunpack.c.l.b16 %v928
      %v962 = vunpack.c.l.b16 %v929
      %v963 = vunpack.c.l.b16 %v930
      %v964 = vunpack.c.l.b16 %v931
      %v965 = vpack.c.b16 %v958, %v957
      %v966 = vpack.c.b16 %v960, %v959
      %v967 = vpack.c.b16 %v962, %v961
      %v968 = vpack.c.b16 %v964, %v963
      %v989 = vunpack.c.l.b16 %v933
      %v990 = vunpack.c.l.b16 %v934
      %v991 = vunpack.c.l.b16 %v935
      %v992 = vunpack.c.l.b16 %v936
      %v993 = vunpack.c.l.b16 %v937
      %v994 = vunpack.c.l.b16 %v938
      %v995 = vunpack.c.l.b16 %v939
      %v996 = vunpack.c.l.b16 %v940
      %v997 = vunpack.c.l.b16 %v941
      %v998 = vunpack.c.l.b16 %v942
      %v999 = vunpack.c.l.b16 %v943
      %v1000 = vunpack.c.l.b16 %v944
      %v1001 = vunpack.c.l.b16 %v945
      %v1002 = vunpack.c.l.b16 %v946
      %v1003 = vunpack.c.l.b16 %v947
      %v1004 = vunpack.c.l.b16 %v948
      %v1005 = vpack.c.b16 %v990, %v989
      %v1006 = vpack.c.b16 %v992, %v991
      %v1007 = vpack.c.b16 %v994, %v993
      %v1008 = vpack.c.b16 %v996, %v995
      %v1009 = vpack.c.b16 %v998, %v997
      %v1010 = vpack.c.b16 %v1000, %v999
      %v1011 = vpack.c.b16 %v1002, %v1001
      %v1012 = vpack.c.b16 %v1004, %v1003
      %1021 = vmatprep.subr.bf16.mxu0 0
      %1022 = vmatpush1.bf16.msra.mxu0 %v1012
      %1023 = vmatprep.subr.bf16.mxu0 0
      %1024 = vmatpush1.bf16.msra.mxu0 %v1011
      %1025 = vmatprep.subr.bf16.mxu0 0
      %1026 = vmatpush1.bf16.msra.mxu0 %v1010
      %1027 = vmatprep.subr.bf16.mxu0 0
      %1028 = vmatpush1.bf16.msra.mxu0 %v1009
      %1029 = vmatprep.subr.bf16.mxu0 0
      %1030 = vmatpush1.bf16.msra.mxu0 %v1008
      %1031 = vmatprep.subr.bf16.mxu0 0
      %1032 = vmatpush1.bf16.msra.mxu0 %v1007
      %1033 = vmatprep.subr.bf16.mxu0 0
      %1034 = vmatpush1.bf16.msra.mxu0 %v1006
      %1035 = vmatprep.subr.bf16.mxu0 0
      %1036 = vmatpush1.bf16.msra.mxu0 %v1005
      %1037 = vmatprep.subr.bf16.mxu0 0
      %1038 = vmatpush2.bf16.msra.mxu0 0
      %1039 = vmatprep.subr.bf16.mxu0 0
      %1040 = vmatpush2.bf16.msra.mxu0 0
      %1041 = vmatprep.subr.bf16.mxu0 0
      %1042 = vmatpush2.bf16.msra.mxu0 0
      %1043 = vmatprep.subr.bf16.mxu0 0
      %1044 = vmatpush2.bf16.msra.mxu0 0
      %1045 = vmatprep.subr.bf16.mxu0 0
      %1046 = vmatpush2.bf16.msra.mxu0 0
      %1047 = vmatprep.subr.bf16.mxu0 0
      %1048 = vmatpush2.bf16.msra.mxu0 0
      %1049 = vmatprep.subr.bf16.mxu0 0
      %1050 = vmatpush2.bf16.msra.mxu0 0
      %1051 = vmatprep.subr.bf16.mxu0 0
      %1052 = vmatpush2.bf16.msra.mxu0 0
      %1053 = vmatprep.mubr.bf16.mxu0 0
      %1054 = vmatmul.mubr.bf16.gmra.mxu0 %v965
      %v1055 = vpop.f32.mrf.mxu0
      %v1056 = vadd.f32 0.0, %v1055
      %v1057 = vpop.f32.mrf.mxu0
      %v1058 = vpop.f32.mrf.mxu0
      %v1059 = vadd.f32 0.0, %v1058
      %v1060 = vpop.f32.mrf.mxu0
      %1061 = vmatprep.mubr.bf16.mxu0 0
      %1062 = vmatmul.mubr.bf16.gmra.mxu0 %v966
      %v1063 = vpop.f32.mrf.mxu0
      %v1064 = vadd.f32 0.0, %v1063
      %v1065 = vpop.f32.mrf.mxu0
      %v1066 = vpop.f32.mrf.mxu0
      %v1067 = vadd.f32 0.0, %v1066
      %v1068 = vpop.f32.mrf.mxu0
      %1069 = vmatprep.mubr.bf16.mxu0 0
      %1070 = vmatmul.mubr.bf16.gmra.mxu0 %v967
      %v1071 = vpop.f32.mrf.mxu0
      %v1072 = vadd.f32 0.0, %v1071
      %v1073 = vpop.f32.mrf.mxu0
      %v1074 = vpop.f32.mrf.mxu0
      %v1075 = vadd.f32 0.0, %v1074
      %v1076 = vpop.f32.mrf.mxu0
      %1077 = vmatprep.mubr.bf16.mxu0 0
      %1078 = vmatmul.mubr.bf16.gmra.mxu0 %v968
      %v1079 = vpop.f32.mrf.mxu0
      %v1080 = vadd.f32 0.0, %v1079
      %v1081 = vpop.f32.mrf.mxu0
      %v1082 = vpop.f32.mrf.mxu0
      %v1083 = vadd.f32 0.0, %v1082
      %v1084 = vpop.f32.mrf.mxu0
      %1085 = vdwg.mxu0
      %v1086 = vadd.f32 %v915, %v1056
      %v1087 = vadd.f32 %v916, %v1059
      %v1088 = vadd.f32 %v917, %v1064
      %v1089 = vadd.f32 %v918, %v1067
      %v1090 = vadd.f32 %v919, %v1072
      %v1091 = vadd.f32 %v920, %v1075
      %v1092 = vadd.f32 %v921, %v1080
      %v1093 = vadd.f32 %v922, %v1083
      %s1094 = scalar_lea.vmem %s238, 160
      %v1095 = vld [vmem:[%s1094] sm:$0xf]
      %v1096 = vld [vmem:[%s1094 + $0x4] sm:$0xf]
      %v1097 = vld [vmem:[%s1094 + $0x8] sm:$0xf]
      %v1098 = vld [vmem:[%s1094 + $0xc] sm:$0xf]
      %v1099 = vld [vmem:[%s1094 + $0x10] sm:$0xf]
      %v1100 = vld [vmem:[%s1094 + $0x14] sm:$0xf]
      %v1101 = vld [vmem:[%s1094 + $0x18] sm:$0xf]
      %v1102 = vld [vmem:[%s1094 + $0x1c] sm:$0xf]
      %s1103 = scalar_lea.vmem %s1, 320
      %v1104 = vld [vmem:[%s1103] sm:$0xf]
      %v1105 = vld [vmem:[%s1103 + $0x4] sm:$0xf]
      %v1106 = vld [vmem:[%s1103 + $0x8] sm:$0xf]
      %v1107 = vld [vmem:[%s1103 + $0xc] sm:$0xf]
      %v1108 = vld [vmem:[%s1103 + $0x10] sm:$0xf]
      %v1109 = vld [vmem:[%s1103 + $0x14] sm:$0xf]
      %v1110 = vld [vmem:[%s1103 + $0x18] sm:$0xf]
      %v1111 = vld [vmem:[%s1103 + $0x1c] sm:$0xf]
      %v1112 = vld [vmem:[%s1103 + $0x20] sm:$0xf]
      %v1113 = vld [vmem:[%s1103 + $0x24] sm:$0xf]
      %v1114 = vld [vmem:[%s1103 + $0x28] sm:$0xf]
      %v1115 = vld [vmem:[%s1103 + $0x2c] sm:$0xf]
      %v1116 = vld [vmem:[%s1103 + $0x30] sm:$0xf]
      %v1117 = vld [vmem:[%s1103 + $0x34] sm:$0xf]
      %v1118 = vld [vmem:[%s1103 + $0x38] sm:$0xf]
      %v1119 = vld [vmem:[%s1103 + $0x3c] sm:$0xf]
      %v1128 = vunpack.c.l.b16 %v1095
      %v1129 = vunpack.c.l.b16 %v1096
      %v1130 = vunpack.c.l.b16 %v1097
      %v1131 = vunpack.c.l.b16 %v1098
      %v1132 = vunpack.c.l.b16 %v1099
      %v1133 = vunpack.c.l.b16 %v1100
      %v1134 = vunpack.c.l.b16 %v1101
      %v1135 = vunpack.c.l.b16 %v1102
      %v1136 = vpack.c.b16 %v1129, %v1128
      %v1137 = vpack.c.b16 %v1131, %v1130
      %v1138 = vpack.c.b16 %v1133, %v1132
      %v1139 = vpack.c.b16 %v1135, %v1134
      %v1160 = vunpack.c.l.b16 %v1104
      %v1161 = vunpack.c.l.b16 %v1105
      %v1162 = vunpack.c.l.b16 %v1106
      %v1163 = vunpack.c.l.b16 %v1107
      %v1164 = vunpack.c.l.b16 %v1108
      %v1165 = vunpack.c.l.b16 %v1109
      %v1166 = vunpack.c.l.b16 %v1110
      %v1167 = vunpack.c.l.b16 %v1111
      %v1168 = vunpack.c.l.b16 %v1112
      %v1169 = vunpack.c.l.b16 %v1113
      %v1170 = vunpack.c.l.b16 %v1114
      %v1171 = vunpack.c.l.b16 %v1115
      %v1172 = vunpack.c.l.b16 %v1116
      %v1173 = vunpack.c.l.b16 %v1117
      %v1174 = vunpack.c.l.b16 %v1118
      %v1175 = vunpack.c.l.b16 %v1119
      %v1176 = vpack.c.b16 %v1161, %v1160
      %v1177 = vpack.c.b16 %v1163, %v1162
      %v1178 = vpack.c.b16 %v1165, %v1164
      %v1179 = vpack.c.b16 %v1167, %v1166
      %v1180 = vpack.c.b16 %v1169, %v1168
      %v1181 = vpack.c.b16 %v1171, %v1170
      %v1182 = vpack.c.b16 %v1173, %v1172
      %v1183 = vpack.c.b16 %v1175, %v1174
      %1192 = vmatprep.subr.bf16.mxu0 0
      %1193 = vmatpush1.bf16.msra.mxu0 %v1183
      %1194 = vmatprep.subr.bf16.mxu0 0
      %1195 = vmatpush1.bf16.msra.mxu0 %v1182
      %1196 = vmatprep.subr.bf16.mxu0 0
      %1197 = vmatpush1.bf16.msra.mxu0 %v1181
      %1198 = vmatprep.subr.bf16.mxu0 0
      %1199 = vmatpush1.bf16.msra.mxu0 %v1180
      %1200 = vmatprep.subr.bf16.mxu0 0
      %1201 = vmatpush1.bf16.msra.mxu0 %v1179
      %1202 = vmatprep.subr.bf16.mxu0 0
      %1203 = vmatpush1.bf16.msra.mxu0 %v1178
      %1204 = vmatprep.subr.bf16.mxu0 0
      %1205 = vmatpush1.bf16.msra.mxu0 %v1177
      %1206 = vmatprep.subr.bf16.mxu0 0
      %1207 = vmatpush1.bf16.msra.mxu0 %v1176
      %1208 = vmatprep.subr.bf16.mxu0 0
      %1209 = vmatpush2.bf16.msra.mxu0 0
      %1210 = vmatprep.subr.bf16.mxu0 0
      %1211 = vmatpush2.bf16.msra.mxu0 0
      %1212 = vmatprep.subr.bf16.mxu0 0
      %1213 = vmatpush2.bf16.msra.mxu0 0
      %1214 = vmatprep.subr.bf16.mxu0 0
      %1215 = vmatpush2.bf16.msra.mxu0 0
      %1216 = vmatprep.subr.bf16.mxu0 0
      %1217 = vmatpush2.bf16.msra.mxu0 0
      %1218 = vmatprep.subr.bf16.mxu0 0
      %1219 = vmatpush2.bf16.msra.mxu0 0
      %1220 = vmatprep.subr.bf16.mxu0 0
      %1221 = vmatpush2.bf16.msra.mxu0 0
      %1222 = vmatprep.subr.bf16.mxu0 0
      %1223 = vmatpush2.bf16.msra.mxu0 0
      %1224 = vmatprep.mubr.bf16.mxu0 0
      %1225 = vmatmul.mubr.bf16.gmra.mxu0 %v1136
      %v1226 = vpop.f32.mrf.mxu0
      %v1227 = vadd.f32 0.0, %v1226
      %v1228 = vpop.f32.mrf.mxu0
      %v1229 = vpop.f32.mrf.mxu0
      %v1230 = vadd.f32 0.0, %v1229
      %v1231 = vpop.f32.mrf.mxu0
      %1232 = vmatprep.mubr.bf16.mxu0 0
      %1233 = vmatmul.mubr.bf16.gmra.mxu0 %v1137
      %v1234 = vpop.f32.mrf.mxu0
      %v1235 = vadd.f32 0.0, %v1234
      %v1236 = vpop.f32.mrf.mxu0
      %v1237 = vpop.f32.mrf.mxu0
      %v1238 = vadd.f32 0.0, %v1237
      %v1239 = vpop.f32.mrf.mxu0
      %1240 = vmatprep.mubr.bf16.mxu0 0
      %1241 = vmatmul.mubr.bf16.gmra.mxu0 %v1138
      %v1242 = vpop.f32.mrf.mxu0
      %v1243 = vadd.f32 0.0, %v1242
      %v1244 = vpop.f32.mrf.mxu0
      %v1245 = vpop.f32.mrf.mxu0
      %v1246 = vadd.f32 0.0, %v1245
      %v1247 = vpop.f32.mrf.mxu0
      %1248 = vmatprep.mubr.bf16.mxu0 0
      %1249 = vmatmul.mubr.bf16.gmra.mxu0 %v1139
      %v1250 = vpop.f32.mrf.mxu0
      %v1251 = vadd.f32 0.0, %v1250
      %v1252 = vpop.f32.mrf.mxu0
      %v1253 = vpop.f32.mrf.mxu0
      %v1254 = vadd.f32 0.0, %v1253
      %v1255 = vpop.f32.mrf.mxu0
      %1256 = vdwg.mxu0
      %v1257 = vadd.f32 %v1086, %v1227
      %v1258 = vadd.f32 %v1087, %v1230
      %v1259 = vadd.f32 %v1088, %v1235
      %v1260 = vadd.f32 %v1089, %v1238
      %v1261 = vadd.f32 %v1090, %v1243
      %v1262 = vadd.f32 %v1091, %v1246
      %v1263 = vadd.f32 %v1092, %v1251
      %v1264 = vadd.f32 %v1093, %v1254
      %s1265 = scalar_lea.vmem %s238, 192
      %v1266 = vld [vmem:[%s1265] sm:$0xf]
      %v1267 = vld [vmem:[%s1265 + $0x4] sm:$0xf]
      %v1268 = vld [vmem:[%s1265 + $0x8] sm:$0xf]
      %v1269 = vld [vmem:[%s1265 + $0xc] sm:$0xf]
      %v1270 = vld [vmem:[%s1265 + $0x10] sm:$0xf]
      %v1271 = vld [vmem:[%s1265 + $0x14] sm:$0xf]
      %v1272 = vld [vmem:[%s1265 + $0x18] sm:$0xf]
      %v1273 = vld [vmem:[%s1265 + $0x1c] sm:$0xf]
      %s1274 = scalar_lea.vmem %s1, 384
      %v1275 = vld [vmem:[%s1274] sm:$0xf]
      %v1276 = vld [vmem:[%s1274 + $0x4] sm:$0xf]
      %v1277 = vld [vmem:[%s1274 + $0x8] sm:$0xf]
      %v1278 = vld [vmem:[%s1274 + $0xc] sm:$0xf]
      %v1279 = vld [vmem:[%s1274 + $0x10] sm:$0xf]
      %v1280 = vld [vmem:[%s1274 + $0x14] sm:$0xf]
      %v1281 = vld [vmem:[%s1274 + $0x18] sm:$0xf]
      %v1282 = vld [vmem:[%s1274 + $0x1c] sm:$0xf]
      %v1283 = vld [vmem:[%s1274 + $0x20] sm:$0xf]
      %v1284 = vld [vmem:[%s1274 + $0x24] sm:$0xf]
      %v1285 = vld [vmem:[%s1274 + $0x28] sm:$0xf]
      %v1286 = vld [vmem:[%s1274 + $0x2c] sm:$0xf]
      %v1287 = vld [vmem:[%s1274 + $0x30] sm:$0xf]
      %v1288 = vld [vmem:[%s1274 + $0x34] sm:$0xf]
      %v1289 = vld [vmem:[%s1274 + $0x38] sm:$0xf]
      %v1290 = vld [vmem:[%s1274 + $0x3c] sm:$0xf]
      %v1299 = vunpack.c.l.b16 %v1266
      %v1300 = vunpack.c.l.b16 %v1267
      %v1301 = vunpack.c.l.b16 %v1268
      %v1302 = vunpack.c.l.b16 %v1269
      %v1303 = vunpack.c.l.b16 %v1270
      %v1304 = vunpack.c.l.b16 %v1271
      %v1305 = vunpack.c.l.b16 %v1272
      %v1306 = vunpack.c.l.b16 %v1273
      %v1307 = vpack.c.b16 %v1300, %v1299
      %v1308 = vpack.c.b16 %v1302, %v1301
      %v1309 = vpack.c.b16 %v1304, %v1303
      %v1310 = vpack.c.b16 %v1306, %v1305
      %v1331 = vunpack.c.l.b16 %v1275
      %v1332 = vunpack.c.l.b16 %v1276
      %v1333 = vunpack.c.l.b16 %v1277
      %v1334 = vunpack.c.l.b16 %v1278
      %v1335 = vunpack.c.l.b16 %v1279
      %v1336 = vunpack.c.l.b16 %v1280
      %v1337 = vunpack.c.l.b16 %v1281
      %v1338 = vunpack.c.l.b16 %v1282
      %v1339 = vunpack.c.l.b16 %v1283
      %v1340 = vunpack.c.l.b16 %v1284
      %v1341 = vunpack.c.l.b16 %v1285
      %v1342 = vunpack.c.l.b16 %v1286
      %v1343 = vunpack.c.l.b16 %v1287
      %v1344 = vunpack.c.l.b16 %v1288
      %v1345 = vunpack.c.l.b16 %v1289
      %v1346 = vunpack.c.l.b16 %v1290
      %v1347 = vpack.c.b16 %v1332, %v1331
      %v1348 = vpack.c.b16 %v1334, %v1333
      %v1349 = vpack.c.b16 %v1336, %v1335
      %v1350 = vpack.c.b16 %v1338, %v1337
      %v1351 = vpack.c.b16 %v1340, %v1339
      %v1352 = vpack.c.b16 %v1342, %v1341
      %v1353 = vpack.c.b16 %v1344, %v1343
      %v1354 = vpack.c.b16 %v1346, %v1345
      %1363 = vmatprep.subr.bf16.mxu0 0
      %1364 = vmatpush1.bf16.msra.mxu0 %v1354
      %1365 = vmatprep.subr.bf16.mxu0 0
      %1366 = vmatpush1.bf16.msra.mxu0 %v1353
      %1367 = vmatprep.subr.bf16.mxu0 0
      %1368 = vmatpush1.bf16.msra.mxu0 %v1352
      %1369 = vmatprep.subr.bf16.mxu0 0
      %1370 = vmatpush1.bf16.msra.mxu0 %v1351
      %1371 = vmatprep.subr.bf16.mxu0 0
      %1372 = vmatpush1.bf16.msra.mxu0 %v1350
      %1373 = vmatprep.subr.bf16.mxu0 0
      %1374 = vmatpush1.bf16.msra.mxu0 %v1349
      %1375 = vmatprep.subr.bf16.mxu0 0
      %1376 = vmatpush1.bf16.msra.mxu0 %v1348
      %1377 = vmatprep.subr.bf16.mxu0 0
      %1378 = vmatpush1.bf16.msra.mxu0 %v1347
      %1379 = vmatprep.subr.bf16.mxu0 0
      %1380 = vmatpush2.bf16.msra.mxu0 0
      %1381 = vmatprep.subr.bf16.mxu0 0
      %1382 = vmatpush2.bf16.msra.mxu0 0
      %1383 = vmatprep.subr.bf16.mxu0 0
      %1384 = vmatpush2.bf16.msra.mxu0 0
      %1385 = vmatprep.subr.bf16.mxu0 0
      %1386 = vmatpush2.bf16.msra.mxu0 0
      %1387 = vmatprep.subr.bf16.mxu0 0
      %1388 = vmatpush2.bf16.msra.mxu0 0
      %1389 = vmatprep.subr.bf16.mxu0 0
      %1390 = vmatpush2.bf16.msra.mxu0 0
      %1391 = vmatprep.subr.bf16.mxu0 0
      %1392 = vmatpush2.bf16.msra.mxu0 0
      %1393 = vmatprep.subr.bf16.mxu0 0
      %1394 = vmatpush2.bf16.msra.mxu0 0
      %1395 = vmatprep.mubr.bf16.mxu0 0
      %1396 = vmatmul.mubr.bf16.gmra.mxu0 %v1307
      %v1397 = vpop.f32.mrf.mxu0
      %v1398 = vadd.f32 0.0, %v1397
      %v1399 = vpop.f32.mrf.mxu0
      %v1400 = vpop.f32.mrf.mxu0
      %v1401 = vadd.f32 0.0, %v1400
      %v1402 = vpop.f32.mrf.mxu0
      %1403 = vmatprep.mubr.bf16.mxu0 0
      %1404 = vmatmul.mubr.bf16.gmra.mxu0 %v1308
      %v1405 = vpop.f32.mrf.mxu0
      %v1406 = vadd.f32 0.0, %v1405
      %v1407 = vpop.f32.mrf.mxu0
      %v1408 = vpop.f32.mrf.mxu0
      %v1409 = vadd.f32 0.0, %v1408
      %v1410 = vpop.f32.mrf.mxu0
      %1411 = vmatprep.mubr.bf16.mxu0 0
      %1412 = vmatmul.mubr.bf16.gmra.mxu0 %v1309
      %v1413 = vpop.f32.mrf.mxu0
      %v1414 = vadd.f32 0.0, %v1413
      %v1415 = vpop.f32.mrf.mxu0
      %v1416 = vpop.f32.mrf.mxu0
      %v1417 = vadd.f32 0.0, %v1416
      %v1418 = vpop.f32.mrf.mxu0
      %1419 = vmatprep.mubr.bf16.mxu0 0
      %1420 = vmatmul.mubr.bf16.gmra.mxu0 %v1310
      %v1421 = vpop.f32.mrf.mxu0
      %v1422 = vadd.f32 0.0, %v1421
      %v1423 = vpop.f32.mrf.mxu0
      %v1424 = vpop.f32.mrf.mxu0
      %v1425 = vadd.f32 0.0, %v1424
      %v1426 = vpop.f32.mrf.mxu0
      %1427 = vdwg.mxu0
      %v1428 = vadd.f32 %v1257, %v1398
      %v1429 = vadd.f32 %v1258, %v1401
      %v1430 = vadd.f32 %v1259, %v1406
      %v1431 = vadd.f32 %v1260, %v1409
      %v1432 = vadd.f32 %v1261, %v1414
      %v1433 = vadd.f32 %v1262, %v1417
      %v1434 = vadd.f32 %v1263, %v1422
      %v1435 = vadd.f32 %v1264, %v1425
      %s1436 = scalar_lea.vmem %s238, 224
      %v1437 = vld [vmem:[%s1436] sm:$0xf]
      %v1438 = vld [vmem:[%s1436 + $0x4] sm:$0xf]
      %v1439 = vld [vmem:[%s1436 + $0x8] sm:$0xf]
      %v1440 = vld [vmem:[%s1436 + $0xc] sm:$0xf]
      %v1441 = vld [vmem:[%s1436 + $0x10] sm:$0xf]
      %v1442 = vld [vmem:[%s1436 + $0x14] sm:$0xf]
      %v1443 = vld [vmem:[%s1436 + $0x18] sm:$0xf]
      %v1444 = vld [vmem:[%s1436 + $0x1c] sm:$0xf]
      %s1445 = scalar_lea.vmem %s1, 448
      %v1446 = vld [vmem:[%s1445] sm:$0xf]
      %v1447 = vld [vmem:[%s1445 + $0x4] sm:$0xf]
      %v1448 = vld [vmem:[%s1445 + $0x8] sm:$0xf]
      %v1449 = vld [vmem:[%s1445 + $0xc] sm:$0xf]
      %v1450 = vld [vmem:[%s1445 + $0x10] sm:$0xf]
      %v1451 = vld [vmem:[%s1445 + $0x14] sm:$0xf]
      %v1452 = vld [vmem:[%s1445 + $0x18] sm:$0xf]
      %v1453 = vld [vmem:[%s1445 + $0x1c] sm:$0xf]
      %v1454 = vld [vmem:[%s1445 + $0x20] sm:$0xf]
      %v1455 = vld [vmem:[%s1445 + $0x24] sm:$0xf]
      %v1456 = vld [vmem:[%s1445 + $0x28] sm:$0xf]
      %v1457 = vld [vmem:[%s1445 + $0x2c] sm:$0xf]
      %v1458 = vld [vmem:[%s1445 + $0x30] sm:$0xf]
      %v1459 = vld [vmem:[%s1445 + $0x34] sm:$0xf]
      %v1460 = vld [vmem:[%s1445 + $0x38] sm:$0xf]
      %v1461 = vld [vmem:[%s1445 + $0x3c] sm:$0xf]
      %v1470 = vunpack.c.l.b16 %v1437
      %v1471 = vunpack.c.l.b16 %v1438
      %v1472 = vunpack.c.l.b16 %v1439
      %v1473 = vunpack.c.l.b16 %v1440
      %v1474 = vunpack.c.l.b16 %v1441
      %v1475 = vunpack.c.l.b16 %v1442
      %v1476 = vunpack.c.l.b16 %v1443
      %v1477 = vunpack.c.l.b16 %v1444
      %v1478 = vpack.c.b16 %v1471, %v1470
      %v1479 = vpack.c.b16 %v1473, %v1472
      %v1480 = vpack.c.b16 %v1475, %v1474
      %v1481 = vpack.c.b16 %v1477, %v1476
      %v1502 = vunpack.c.l.b16 %v1446
      %v1503 = vunpack.c.l.b16 %v1447
      %v1504 = vunpack.c.l.b16 %v1448
      %v1505 = vunpack.c.l.b16 %v1449
      %v1506 = vunpack.c.l.b16 %v1450
      %v1507 = vunpack.c.l.b16 %v1451
      %v1508 = vunpack.c.l.b16 %v1452
      %v1509 = vunpack.c.l.b16 %v1453
      %v1510 = vunpack.c.l.b16 %v1454
      %v1511 = vunpack.c.l.b16 %v1455
      %v1512 = vunpack.c.l.b16 %v1456
      %v1513 = vunpack.c.l.b16 %v1457
      %v1514 = vunpack.c.l.b16 %v1458
      %v1515 = vunpack.c.l.b16 %v1459
      %v1516 = vunpack.c.l.b16 %v1460
      %v1517 = vunpack.c.l.b16 %v1461
      %v1518 = vpack.c.b16 %v1503, %v1502
      %v1519 = vpack.c.b16 %v1505, %v1504
      %v1520 = vpack.c.b16 %v1507, %v1506
      %v1521 = vpack.c.b16 %v1509, %v1508
      %v1522 = vpack.c.b16 %v1511, %v1510
      %v1523 = vpack.c.b16 %v1513, %v1512
      %v1524 = vpack.c.b16 %v1515, %v1514
      %v1525 = vpack.c.b16 %v1517, %v1516
      %1534 = vmatprep.subr.bf16.mxu0 0
      %1535 = vmatpush1.bf16.msra.mxu0 %v1525
      %1536 = vmatprep.subr.bf16.mxu0 0
      %1537 = vmatpush1.bf16.msra.mxu0 %v1524
      %1538 = vmatprep.subr.bf16.mxu0 0
      %1539 = vmatpush1.bf16.msra.mxu0 %v1523
      %1540 = vmatprep.subr.bf16.mxu0 0
      %1541 = vmatpush1.bf16.msra.mxu0 %v1522
      %1542 = vmatprep.subr.bf16.mxu0 0
      %1543 = vmatpush1.bf16.msra.mxu0 %v1521
      %1544 = vmatprep.subr.bf16.mxu0 0
      %1545 = vmatpush1.bf16.msra.mxu0 %v1520
      %1546 = vmatprep.subr.bf16.mxu0 0
      %1547 = vmatpush1.bf16.msra.mxu0 %v1519
      %1548 = vmatprep.subr.bf16.mxu0 0
      %1549 = vmatpush1.bf16.msra.mxu0 %v1518
      %1550 = vmatprep.subr.bf16.mxu0 0
      %1551 = vmatpush2.bf16.msra.mxu0 0
      %1552 = vmatprep.subr.bf16.mxu0 0
      %1553 = vmatpush2.bf16.msra.mxu0 0
      %1554 = vmatprep.subr.bf16.mxu0 0
      %1555 = vmatpush2.bf16.msra.mxu0 0
      %1556 = vmatprep.subr.bf16.mxu0 0
      %1557 = vmatpush2.bf16.msra.mxu0 0
      %1558 = vmatprep.subr.bf16.mxu0 0
      %1559 = vmatpush2.bf16.msra.mxu0 0
      %1560 = vmatprep.subr.bf16.mxu0 0
      %1561 = vmatpush2.bf16.msra.mxu0 0
      %1562 = vmatprep.subr.bf16.mxu0 0
      %1563 = vmatpush2.bf16.msra.mxu0 0
      %1564 = vmatprep.subr.bf16.mxu0 0
      %1565 = vmatpush2.bf16.msra.mxu0 0
      %1566 = vmatprep.mubr.bf16.mxu0 0
      %1567 = vmatmul.mubr.bf16.gmra.mxu0 %v1478
      %v1568 = vpop.f32.mrf.mxu0
      %v1569 = vadd.f32 0.0, %v1568
      %v1570 = vpop.f32.mrf.mxu0
      %v1571 = vpop.f32.mrf.mxu0
      %v1572 = vadd.f32 0.0, %v1571
      %v1573 = vpop.f32.mrf.mxu0
      %1574 = vmatprep.mubr.bf16.mxu0 0
      %1575 = vmatmul.mubr.bf16.gmra.mxu0 %v1479
      %v1576 = vpop.f32.mrf.mxu0
      %v1577 = vadd.f32 0.0, %v1576
      %v1578 = vpop.f32.mrf.mxu0
      %v1579 = vpop.f32.mrf.mxu0
      %v1580 = vadd.f32 0.0, %v1579
      %v1581 = vpop.f32.mrf.mxu0
      %1582 = vmatprep.mubr.bf16.mxu0 0
      %1583 = vmatmul.mubr.bf16.gmra.mxu0 %v1480
      %v1584 = vpop.f32.mrf.mxu0
      %v1585 = vadd.f32 0.0, %v1584
      %v1586 = vpop.f32.mrf.mxu0
      %v1587 = vpop.f32.mrf.mxu0
      %v1588 = vadd.f32 0.0, %v1587
      %v1589 = vpop.f32.mrf.mxu0
      %1590 = vmatprep.mubr.bf16.mxu0 0
      %1591 = vmatmul.mubr.bf16.gmra.mxu0 %v1481
      %v1592 = vpop.f32.mrf.mxu0
      %v1593 = vadd.f32 0.0, %v1592
      %v1594 = vpop.f32.mrf.mxu0
      %v1595 = vpop.f32.mrf.mxu0
      %v1596 = vadd.f32 0.0, %v1595
      %v1597 = vpop.f32.mrf.mxu0
      %1598 = vdwg.mxu0
      %v1599 = vadd.f32 %v1428, %v1569
      %v1600 = vadd.f32 %v1429, %v1572
      %v1601 = vadd.f32 %v1430, %v1577
      %v1602 = vadd.f32 %v1431, %v1580
      %v1603 = vadd.f32 %v1432, %v1585
      %v1604 = vadd.f32 %v1433, %v1588
      %v1605 = vadd.f32 %v1434, %v1593
      %v1606 = vadd.f32 %v1435, %v1596
      %s1607 = scalar_lea.vmem %s238, 256
      %v1608 = vld [vmem:[%s1607] sm:$0xf]
      %v1609 = vld [vmem:[%s1607 + $0x4] sm:$0xf]
      %v1610 = vld [vmem:[%s1607 + $0x8] sm:$0xf]
      %v1611 = vld [vmem:[%s1607 + $0xc] sm:$0xf]
      %v1612 = vld [vmem:[%s1607 + $0x10] sm:$0xf]
      %v1613 = vld [vmem:[%s1607 + $0x14] sm:$0xf]
      %v1614 = vld [vmem:[%s1607 + $0x18] sm:$0xf]
      %v1615 = vld [vmem:[%s1607 + $0x1c] sm:$0xf]
      %s1616 = scalar_lea.vmem %s1, 512
      %v1617 = vld [vmem:[%s1616] sm:$0xf]
      %v1618 = vld [vmem:[%s1616 + $0x4] sm:$0xf]
      %v1619 = vld [vmem:[%s1616 + $0x8] sm:$0xf]
      %v1620 = vld [vmem:[%s1616 + $0xc] sm:$0xf]
      %v1621 = vld [vmem:[%s1616 + $0x10] sm:$0xf]
      %v1622 = vld [vmem:[%s1616 + $0x14] sm:$0xf]
      %v1623 = vld [vmem:[%s1616 + $0x18] sm:$0xf]
      %v1624 = vld [vmem:[%s1616 + $0x1c] sm:$0xf]
      %v1625 = vld [vmem:[%s1616 + $0x20] sm:$0xf]
      %v1626 = vld [vmem:[%s1616 + $0x24] sm:$0xf]
      %v1627 = vld [vmem:[%s1616 + $0x28] sm:$0xf]
      %v1628 = vld [vmem:[%s1616 + $0x2c] sm:$0xf]
      %v1629 = vld [vmem:[%s1616 + $0x30] sm:$0xf]
      %v1630 = vld [vmem:[%s1616 + $0x34] sm:$0xf]
      %v1631 = vld [vmem:[%s1616 + $0x38] sm:$0xf]
      %v1632 = vld [vmem:[%s1616 + $0x3c] sm:$0xf]
      %v1641 = vunpack.c.l.b16 %v1608
      %v1642 = vunpack.c.l.b16 %v1609
      %v1643 = vunpack.c.l.b16 %v1610
      %v1644 = vunpack.c.l.b16 %v1611
      %v1645 = vunpack.c.l.b16 %v1612
      %v1646 = vunpack.c.l.b16 %v1613
      %v1647 = vunpack.c.l.b16 %v1614
      %v1648 = vunpack.c.l.b16 %v1615
      %v1649 = vpack.c.b16 %v1642, %v1641
      %v1650 = vpack.c.b16 %v1644, %v1643
      %v1651 = vpack.c.b16 %v1646, %v1645
      %v1652 = vpack.c.b16 %v1648, %v1647
      %v1673 = vunpack.c.l.b16 %v1617
      %v1674 = vunpack.c.l.b16 %v1618
      %v1675 = vunpack.c.l.b16 %v1619
      %v1676 = vunpack.c.l.b16 %v1620
      %v1677 = vunpack.c.l.b16 %v1621
      %v1678 = vunpack.c.l.b16 %v1622
      %v1679 = vunpack.c.l.b16 %v1623
      %v1680 = vunpack.c.l.b16 %v1624
      %v1681 = vunpack.c.l.b16 %v1625
      %v1682 = vunpack.c.l.b16 %v1626
      %v1683 = vunpack.c.l.b16 %v1627
      %v1684 = vunpack.c.l.b16 %v1628
      %v1685 = vunpack.c.l.b16 %v1629
      %v1686 = vunpack.c.l.b16 %v1630
      %v1687 = vunpack.c.l.b16 %v1631
      %v1688 = vunpack.c.l.b16 %v1632
      %v1689 = vpack.c.b16 %v1674, %v1673
      %v1690 = vpack.c.b16 %v1676, %v1675
      %v1691 = vpack.c.b16 %v1678, %v1677
      %v1692 = vpack.c.b16 %v1680, %v1679
      %v1693 = vpack.c.b16 %v1682, %v1681
      %v1694 = vpack.c.b16 %v1684, %v1683
      %v1695 = vpack.c.b16 %v1686, %v1685
      %v1696 = vpack.c.b16 %v1688, %v1687
      %1705 = vmatprep.subr.bf16.mxu0 0
      %1706 = vmatpush1.bf16.msra.mxu0 %v1696
      %1707 = vmatprep.subr.bf16.mxu0 0
      %1708 = vmatpush1.bf16.msra.mxu0 %v1695
      %1709 = vmatprep.subr.bf16.mxu0 0
      %1710 = vmatpush1.bf16.msra.mxu0 %v1694
      %1711 = vmatprep.subr.bf16.mxu0 0
      %1712 = vmatpush1.bf16.msra.mxu0 %v1693
      %1713 = vmatprep.subr.bf16.mxu0 0
      %1714 = vmatpush1.bf16.msra.mxu0 %v1692
      %1715 = vmatprep.subr.bf16.mxu0 0
      %1716 = vmatpush1.bf16.msra.mxu0 %v1691
      %1717 = vmatprep.subr.bf16.mxu0 0
      %1718 = vmatpush1.bf16.msra.mxu0 %v1690
      %1719 = vmatprep.subr.bf16.mxu0 0
      %1720 = vmatpush1.bf16.msra.mxu0 %v1689
      %1721 = vmatprep.subr.bf16.mxu0 0
      %1722 = vmatpush2.bf16.msra.mxu0 0
      %1723 = vmatprep.subr.bf16.mxu0 0
      %1724 = vmatpush2.bf16.msra.mxu0 0
      %1725 = vmatprep.subr.bf16.mxu0 0
      %1726 = vmatpush2.bf16.msra.mxu0 0
      %1727 = vmatprep.subr.bf16.mxu0 0
      %1728 = vmatpush2.bf16.msra.mxu0 0
      %1729 = vmatprep.subr.bf16.mxu0 0
      %1730 = vmatpush2.bf16.msra.mxu0 0
      %1731 = vmatprep.subr.bf16.mxu0 0
      %1732 = vmatpush2.bf16.msra.mxu0 0
      %1733 = vmatprep.subr.bf16.mxu0 0
      %1734 = vmatpush2.bf16.msra.mxu0 0
      %1735 = vmatprep.subr.bf16.mxu0 0
      %1736 = vmatpush2.bf16.msra.mxu0 0
      %1737 = vmatprep.mubr.bf16.mxu0 0
      %1738 = vmatmul.mubr.bf16.gmra.mxu0 %v1649
      %v1739 = vpop.f32.mrf.mxu0
      %v1740 = vadd.f32 0.0, %v1739
      %v1741 = vpop.f32.mrf.mxu0
      %v1742 = vpop.f32.mrf.mxu0
      %v1743 = vadd.f32 0.0, %v1742
      %v1744 = vpop.f32.mrf.mxu0
      %1745 = vmatprep.mubr.bf16.mxu0 0
      %1746 = vmatmul.mubr.bf16.gmra.mxu0 %v1650
      %v1747 = vpop.f32.mrf.mxu0
      %v1748 = vadd.f32 0.0, %v1747
      %v1749 = vpop.f32.mrf.mxu0
      %v1750 = vpop.f32.mrf.mxu0
      %v1751 = vadd.f32 0.0, %v1750
      %v1752 = vpop.f32.mrf.mxu0
      %1753 = vmatprep.mubr.bf16.mxu0 0
      %1754 = vmatmul.mubr.bf16.gmra.mxu0 %v1651
      %v1755 = vpop.f32.mrf.mxu0
      %v1756 = vadd.f32 0.0, %v1755
      %v1757 = vpop.f32.mrf.mxu0
      %v1758 = vpop.f32.mrf.mxu0
      %v1759 = vadd.f32 0.0, %v1758
      %v1760 = vpop.f32.mrf.mxu0
      %1761 = vmatprep.mubr.bf16.mxu0 0
      %1762 = vmatmul.mubr.bf16.gmra.mxu0 %v1652
      %v1763 = vpop.f32.mrf.mxu0
      %v1764 = vadd.f32 0.0, %v1763
      %v1765 = vpop.f32.mrf.mxu0
      %v1766 = vpop.f32.mrf.mxu0
      %v1767 = vadd.f32 0.0, %v1766
      %v1768 = vpop.f32.mrf.mxu0
      %1769 = vdwg.mxu0
      %v1770 = vadd.f32 %v1599, %v1740
      %v1771 = vadd.f32 %v1600, %v1743
      %v1772 = vadd.f32 %v1601, %v1748
      %v1773 = vadd.f32 %v1602, %v1751
      %v1774 = vadd.f32 %v1603, %v1756
      %v1775 = vadd.f32 %v1604, %v1759
      %v1776 = vadd.f32 %v1605, %v1764
      %v1777 = vadd.f32 %v1606, %v1767
      %v1778 = vld [vmem:[%s2] sm:$0x1]
      %v1780 = vlaneseq
      %v1781 = vshrl.u32 %v1780, 7
      %v1782 = vsub.s32 0, %v1781
      %v1783 = vrot.slane %v1778, %v1782
      %v1785 = vadd.f32 %v1770, %v1783
      %v1786 = vadd.f32 %v1771, %v1783
      %v1787 = vadd.f32 %v1772, %v1783
      %v1788 = vadd.f32 %v1773, %v1783
      %v1789 = vadd.f32 %v1774, %v1783
      %v1790 = vadd.f32 %v1775, %v1783
      %v1791 = vadd.f32 %v1776, %v1783
      %v1792 = vadd.f32 %v1777, %v1783
      %1793 = vst [vmem:[%s246] sm:$0xff] %v1785
      %1794 = vst [vmem:[%s246 + $0x8] sm:$0xff] %v1786
      %1795 = vst [vmem:[%s246 + $0x10] sm:$0xff] %v1787
      %1796 = vst [vmem:[%s246 + $0x18] sm:$0xff] %v1788
      %1797 = vst [vmem:[%s246 + $0x20] sm:$0xff] %v1789
      %1798 = vst [vmem:[%s246 + $0x28] sm:$0xff] %v1790
      %1799 = vst [vmem:[%s246 + $0x30] sm:$0xff] %v1791
      %1800 = vst [vmem:[%s246 + $0x38] sm:$0xff] %v1792
      %v1801 = vadd.f32 %v1785, %v1786
      %v1802 = vadd.f32 %v1801, %v1787
      %v1803 = vadd.f32 %v1802, %v1788
      %v1804 = vadd.f32 %v1803, %v1789
      %v1805 = vadd.f32 %v1804, %v1790
      %v1806 = vadd.f32 %v1805, %v1791
      %v1807 = vadd.f32 %v1806, %v1792
      %v1808 = vrot.slane %v1807, 4
      %v1809 = vadd.f32 %v1807, %v1808
      %v1810 = vrot.slane %v1809, 2
      %v1811 = vadd.f32 %v1809, %v1810
      %v1812 = vrot.slane %v1811, 1
      %v1813 = vadd.f32 %v1811, %v1812
      %v1814 = vmul.f32 %v1785, %v1785
      %v1815 = vmul.f32 %v1786, %v1786
      %v1816 = vmul.f32 %v1787, %v1787
      %v1817 = vmul.f32 %v1788, %v1788
      %v1818 = vmul.f32 %v1789, %v1789
      %v1819 = vmul.f32 %v1790, %v1790
      %v1820 = vmul.f32 %v1791, %v1791
      %v1821 = vmul.f32 %v1792, %v1792
      %v1822 = vadd.f32 %v1814, %v1815
      %v1823 = vadd.f32 %v1822, %v1816
      %v1824 = vadd.f32 %v1823, %v1817
      %v1825 = vadd.f32 %v1824, %v1818
      %v1826 = vadd.f32 %v1825, %v1819
      %v1827 = vadd.f32 %v1826, %v1820
      %v1828 = vadd.f32 %v1827, %v1821
      %v1829 = vrot.slane %v1828, 4
      %v1830 = vadd.f32 %v1828, %v1829
      %v1831 = vrot.slane %v1830, 2
      %v1832 = vadd.f32 %v1830, %v1831
      %v1833 = vrot.slane %v1832, 1
      %v1834 = vadd.f32 %v1832, %v1833
      %vm1835 = vcmask 1040384
      %v1836 = vsel %vm1835, %v1813, %v1834
      %1837 = vst [vmem:[%s255] sm:$0x3] %v1836
      %s1838 = sadd.s32 %s20, %s21
      %s1839 = smul.u32 8, %s1838
      %p1840 = scmp.lt.s32.totalorder %s1839, 15
      %s1841 = scalar_select %p1840, %s1839, 15
      %s1842 = smul.addr %s1841, 8
      %s1843 = scalar_lea.vmem %s3, %s1842
      %p1844 = scmp.lt.s32.totalorder %s20, 1
      %s1845 = scalar_select %p1844, %s20, 1
      %p1846 = scmp.lt.s32.totalorder %s21, 0
      %s1847 = scalar_select %p1846, %s21, 0
      %s1848 = sadd.s32 %s1847, %s1845
      %s1849 = smul.addr %s1848, 2
      %s1850 = scalar_lea.vmem %s4, %s1849
      // Predicated region
      $region33: #{block_a_forward.6} parent=31 // pred_check
        %p1851 = pneg %p118
      $region34: #{block_a_forward.6} parent=31 // pred_check_branch
        %1853 = sbr.rel (%p1851) target = $region36
      $region35: #{block_a_forward.6} parent=31 // pred_region
        %s1854 = sadd.s32 %s20, %s21
        %s1855 = smul.u32 8, %s1854
      $region36: #{block_a_forward.6} parent=31 // pred_fallthru
        _
      // Predicated region
      $region37: #{block_a_forward.6} parent=31 // pred_check
        %p1856 = pneg %p146
      $region38: #{block_a_forward.6} parent=31 // pred_check_branch
        %1858 = sbr.rel (%p1856) target = $region40
      $region39: #{block_a_forward.6} parent=31 // pred_region
        _
      $region40: #{block_a_forward.6} parent=31 // pred_fallthru
        _
    $region32: #{block_a_forward.6} parent=5 // pred_fallthru
      _
    %p1859 = scmp.le.s32.totalorder 2, %s11
    // Predicated region
    $region41: #{block_a_forward.6} parent=5 // pred_check
      %p1860 = pneg %p1859
    $region42: #{block_a_forward.6} parent=5 // pred_check_branch
      %1862 = sbr.rel (%p1860) target = $region44
    $region43: #{block_a_forward.6} parent=5 // pred_region
      %s1863 = ssub.s32 %s11, 2
      // Predicated region
      $region45: #{block_a_forward.6} parent=43 // pred_check
        %p1864 = pneg %p124
      $region46: #{block_a_forward.6} parent=43 // pred_check_branch
        %1866 = sbr.rel (%p1864) target = $region48
      $region47: #{block_a_forward.6} parent=43 // pred_region
        %s1867 = sadd.s32 %s22, %s23
        %s1868 = smul.u32 8, %s1867
        %p1869 = scmp.lt.s32.totalorder %s1868, 15
        %s1870 = scalar_select %p1869, %s1868, 15
        %s1871 = smul.addr %s1870, 8
        %s1872 = scalar_lea.vmem %s3, %s1871
      $region48: #{block_a_forward.6} parent=43 // pred_fallthru
        _
      // Predicated region
      $region49: #{block_a_forward.6} parent=43 // pred_check
        %p1873 = pneg %p152
      $region50: #{block_a_forward.6} parent=43 // pred_check_branch
        %1875 = sbr.rel (%p1873) target = $region52
      $region51: #{block_a_forward.6} parent=43 // pred_region
        %p1876 = scmp.lt.s32.totalorder %s22, 1
        %s1877 = scalar_select %p1876, %s22, 1
        %p1878 = scmp.lt.s32.totalorder %s23, 0
        %s1879 = scalar_select %p1878, %s23, 0
        %s1880 = sadd.s32 %s1879, %s1877
        %s1881 = smul.addr %s1880, 2
        %s1882 = scalar_lea.vmem %s4, %s1881
      $region52: #{block_a_forward.6} parent=43 // pred_fallthru
        _
    $region44: #{block_a_forward.6} parent=5 // pred_fallthru
      _
  $region6: #{block_a_forward.6} parent=0 // loop_footer
    %s15 = sadd.s32 1, %s11
  $region7: #{block_a_forward.6} parent=0 // loop_footer_branch
    %10 = sbr.rel target = $region3
  $region8: #{block_a_forward.6} parent=0 // loop_exit
    _

// kernel: block_a_forward.8
$region0: #{block_a_forward.8}
  #allocation0 [shape = 'u32[]', space=smem, size = 0x4, offset = 0x4, fixed_abs, tag = 'smem constant byte address 0x4 - core index']
  #allocation1 [shape = 'u32[144,128]{1,0:T(1,128)}', space=vmem, size = 0x12000, scoped, tag = 'internal scratch']
  %s0 = inlined_call_operand.vmem [shape: bf16[2,10,10,128], index: 0, kind: input, shape index: {}]
  %s1 = inlined_call_operand.vmem [shape: bf16[9,128,128], index: 1, kind: input, shape index: {}]
  %s2 = inlined_call_operand.vmem [shape: f32[1,128], index: 2, kind: input, shape index: {}]
  %s3 = inlined_call_operand.vmem [shape: f32[128,128], index: 3, kind: output, shape index: {0}]
  %s4 = inlined_call_operand.vmem [shape: f32[2,1,2,128], index: 4, kind: output, shape index: {1}]
  %5 = xla_tuple %s3, %s4
  %s6 = sld [smem:[#allocation0]]
  $region53: #{block_a_forward.8} parent=0
    _
  %s8 = ssub.s32 1, %s6
  %s9 = scalar_select 0, %s8, %s6
  loop: start=0, step=1, limit=4
  $region2: #{block_a_forward.8} parent=0 // loop_pre_header
    _
  $region3: #{block_a_forward.8} parent=0 // loop_header
    %s11 = sphi 0, %s15
    %p12 = scmp.ge.s32.totalorder %s11, 4
    %s18 = sphi 0, %s30
    %s19 = sphi 0, %s26
    %s20 = sphi 0, %s18
    %s21 = sphi 0, %s19
    %s22 = sphi 0, %s20
    %s23 = sphi 0, %s21
    %s35 = sphi 0, %s37
    %s38 = sphi 0, %s35
    %s39 = sphi 0, %s38
    %s55 = sphi 0, %s39
    %s59 = sphi 0, %s59
    %s61 = sphi 0, %s59
    %s62 = sphi 0, %s61
    %s76 = sphi 0, %s62
    %s80 = sphi 0, %s80
    %s82 = sphi 0, %s80
    %s83 = sphi 0, %s82
    %s97 = sphi 0, %s83
    %s105 = sphi 0, %s107
    %s108 = sphi 0, %s105
    %s109 = sphi 0, %s108
    %s125 = sphi 0, %s109
    %s133 = sphi 0, %s135
    %s136 = sphi 0, %s133
    %s137 = sphi 0, %s136
    %s153 = sphi 0, %s137
  $region4: #{block_a_forward.8} parent=0 // loop_header_branch
    %14 = sbr.rel (%p12) target = $region8
  $region5: #{block_a_forward.8} parent=0 // loop_body
    %s16 = ssub.s32 %s11, 1
    %s17 = ssub.s32 %s11, 2
    %s24 = sadd.s32 1, %s19
    %p25 = scmp.ge.s32.totalorder %s24, 1
    %s26 = scalar_select %p25, 0, %s24
    %s27 = sadd.s32 1, %s18
    %s28 = scalar_select %p25, %s27, %s18
    %p29 = scmp.ge.s32.totalorder %s28, 2
    %s30 = scalar_select %p29, 0, %s28
    %s31 = ssub.s32 %s18, %s30
    %s32 = ssub.s32 %s19, %s26
    %s33 = sor.u32 %s31, %s32
    %p34 = scmp.eq.s32.totalorder %s33, 0
    %s36 = sadd.s32 %s35, 1
    %s37 = scalar_select %p34, %s35, %s36
    %p40 = pneg %p34
    %p41 = scmp.eq.s32.totalorder %s11, 1
    %p42 = por %p40, %p41
    %p43 = scmp.ne.s32.totalorder %s35, %s38
    %p44 = scmp.eq.s32.totalorder %s11, 0
    %p45 = por %p43, %p44
    %p46 = scmp.ne.s32.totalorder %s35, %s38
    %p47 = scmp.eq.s32.totalorder %s16, 1
    %p48 = por %p46, %p47
    %p49 = scmp.ne.s32.totalorder %s38, %s39
    %p50 = scmp.eq.s32.totalorder %s16, 0
    %p51 = por %p49, %p50
    %p52 = scmp.ne.s32.totalorder %s38, %s39
    %p53 = scmp.eq.s32.totalorder %s17, 1
    %p54 = por %p52, %p53
    %p56 = scmp.ne.s32.totalorder %s39, %s55
    %p57 = scmp.eq.s32.totalorder %s17, 0
    %p58 = por %p56, %p57
    %s60 = sadd.s32 %s59, 1
    %p63 = scmp.eq.s32.totalorder %s11, 1
    %p64 = scmp.ne.s32.totalorder %s59, %s61
    %p65 = scmp.eq.s32.totalorder %s11, 0
    %p66 = por %p64, %p65
    %p67 = scmp.ne.s32.totalorder %s59, %s61
    %p68 = scmp.eq.s32.totalorder %s16, 1
    %p69 = por %p67, %p68
    %p70 = scmp.ne.s32.totalorder %s61, %s62
    %p71 = scmp.eq.s32.totalorder %s16, 0
    %p72 = por %p70, %p71
    %p73 = scmp.ne.s32.totalorder %s61, %s62
    %p74 = scmp.eq.s32.totalorder %s17, 1
    %p75 = por %p73, %p74
    %p77 = scmp.ne.s32.totalorder %s62, %s76
    %p78 = scmp.eq.s32.totalorder %s17, 0
    %p79 = por %p77, %p78
    %s81 = sadd.s32 %s80, 1
    %p84 = scmp.eq.s32.totalorder %s11, 1
    %p85 = scmp.ne.s32.totalorder %s80, %s82
    %p86 = scmp.eq.s32.totalorder %s11, 0
    %p87 = por %p85, %p86
    %p88 = scmp.ne.s32.totalorder %s80, %s82
    %p89 = scmp.eq.s32.totalorder %s16, 1
    %p90 = por %p88, %p89
    %p91 = scmp.ne.s32.totalorder %s82, %s83
    %p92 = scmp.eq.s32.totalorder %s16, 0
    %p93 = por %p91, %p92
    %p94 = scmp.ne.s32.totalorder %s82, %s83
    %p95 = scmp.eq.s32.totalorder %s17, 1
    %p96 = por %p94, %p95
    %p98 = scmp.ne.s32.totalorder %s83, %s97
    %p99 = scmp.eq.s32.totalorder %s17, 0
    %p100 = por %p98, %p99
    %s101 = sadd.s32 %s18, %s19
    %s102 = sadd.s32 %s30, %s26
    %s103 = ssub.s32 %s101, %s102
    %p104 = scmp.eq.s32.totalorder %s103, 0
    %s106 = sadd.s32 %s105, 1
    %s107 = scalar_select %p104, %s105, %s106
    %p110 = pneg %p104
    %p111 = scmp.eq.s32.totalorder %s11, 1
    %p112 = por %p110, %p111
    %p113 = scmp.ne.s32.totalorder %s105, %s108
    %p114 = scmp.eq.s32.totalorder %s11, 0
    %p115 = por %p113, %p114
    %p116 = scmp.ne.s32.totalorder %s105, %s108
    %p117 = scmp.eq.s32.totalorder %s16, 1
    %p118 = por %p116, %p117
    %p119 = scmp.ne.s32.totalorder %s108, %s109
    %p120 = scmp.eq.s32.totalorder %s16, 0
    %p121 = por %p119, %p120
    %p122 = scmp.ne.s32.totalorder %s108, %s109
    %p123 = scmp.eq.s32.totalorder %s17, 1
    %p124 = por %p122, %p123
    %p126 = scmp.ne.s32.totalorder %s109, %s125
    %p127 = scmp.eq.s32.totalorder %s17, 0
    %p128 = por %p126, %p127
    %s129 = ssub.s32 %s18, %s30
    %s130 = ssub.s32 %s19, %s26
    %s131 = sor.u32 %s129, %s130
    %p132 = scmp.eq.s32.totalorder %s131, 0
    %s134 = sadd.s32 %s133, 1
    %s135 = scalar_select %p132, %s133, %s134
    %p138 = pneg %p132
    %p139 = scmp.eq.s32.totalorder %s11, 1
    %p140 = por %p138, %p139
    %p141 = scmp.ne.s32.totalorder %s133, %s136
    %p142 = scmp.eq.s32.totalorder %s11, 0
    %p143 = por %p141, %p142
    %p144 = scmp.ne.s32.totalorder %s133, %s136
    %p145 = scmp.eq.s32.totalorder %s16, 1
    %p146 = por %p144, %p145
    %p147 = scmp.ne.s32.totalorder %s136, %s137
    %p148 = scmp.eq.s32.totalorder %s16, 0
    %p149 = por %p147, %p148
    %p150 = scmp.ne.s32.totalorder %s136, %s137
    %p151 = scmp.eq.s32.totalorder %s17, 1
    %p152 = por %p150, %p151
    %p154 = scmp.ne.s32.totalorder %s137, %s153
    %p155 = scmp.eq.s32.totalorder %s17, 0
    %p156 = por %p154, %p155
    %p157 = scmp.le.s32.totalorder 1, %s11
    %p158 = scmp.lt.s32.totalorder %s11, 3
    %p159 = pnand %p157, %p158
    %p160 = pneg %p159
    // Predicated region
    $region9: #{block_a_forward.8} parent=5 // pred_check
      _
    $region10: #{block_a_forward.8} parent=5 // pred_check_branch
      %162 = sbr.rel (%p159) target = $region12
    $region11: #{block_a_forward.8} parent=5 // pred_region
      %s163 = ssub.s32 %s11, 1
      // Predicated region
      $region13: #{block_a_forward.8} parent=11 // pred_check
        %p164 = pneg %p72
      $region14: #{block_a_forward.8} parent=11 // pred_check_branch
        %166 = sbr.rel (%p164) target = $region16
      $region15: #{block_a_forward.8} parent=11 // pred_region
        _
      $region16: #{block_a_forward.8} parent=11 // pred_fallthru
        _
      // Predicated region
      $region17: #{block_a_forward.8} parent=11 // pred_check
        %p167 = pneg %p93
      $region18: #{block_a_forward.8} parent=11 // pred_check_branch
        %169 = sbr.rel (%p167) target = $region20
      $region19: #{block_a_forward.8} parent=11 // pred_region
        _
      $region20: #{block_a_forward.8} parent=11 // pred_fallthru
        _
    $region12: #{block_a_forward.8} parent=5 // pred_fallthru
      _
    %p170 = scmp.lt.s32.totalorder %s11, 2
    // Predicated region
    $region21: #{block_a_forward.8} parent=5 // pred_check
      %p171 = pneg %p170
    $region22: #{block_a_forward.8} parent=5 // pred_check_branch
      %173 = sbr.rel (%p171) target = $region24
    $region23: #{block_a_forward.8} parent=5 // pred_region
      // Predicated region
      $region25: #{block_a_forward.8} parent=23 // pred_check
        %p174 = pneg %p45
      $region26: #{block_a_forward.8} parent=23 // pred_check_branch
        %176 = sbr.rel (%p174) target = $region28
      $region27: #{block_a_forward.8} parent=23 // pred_region
        %s177 = smul.u32 10, %s19
        %p178 = scmp.lt.s32.totalorder %s18, 1
        %s179 = scalar_select %p178, %s18, 1
        %p180 = scmp.lt.s32.totalorder %s177, 9
        %s181 = scalar_select %p180, %s177, 9
        %s182 = smul.addr %s181, 2
        %s183 = smul.addr %s179, 20
        %s184 = sadd.s32 %s182, %s183
        %s185 = smul.addr %s184, 4
        %s186 = scalar_lea.vmem %s0, %s185
        %s187 = smul.u32 10, %s19
      $region28: #{block_a_forward.8} parent=23 // pred_fallthru
        _
    $region24: #{block_a_forward.8} parent=5 // pred_fallthru
      _
    %p188 = scmp.le.s32.totalorder 1, %s11
    %p189 = scmp.lt.s32.totalorder %s11, 3
    %p190 = pnand %p188, %p189
    %p191 = pneg %p190
    // Predicated region
    $region29: #{block_a_forward.8} parent=5 // pred_check
      _
    $region30: #{block_a_forward.8} parent=5 // pred_check_branch
      %193 = sbr.rel (%p190) target = $region32
    $region31: #{block_a_forward.8} parent=5 // pred_region
      %s194 = ssub.s32 %s11, 1
      %s195 = smul.u32 10, %s21
      %p196 = scmp.lt.s32.totalorder %s20, 1
      %s197 = scalar_select %p196, %s20, 1
      %p198 = scmp.lt.s32.totalorder %s195, 9
      %s199 = scalar_select %p198, %s195, 9
      %s200 = smul.addr %s199, 2
      %s201 = smul.addr %s197, 20
      %s202 = sadd.s32 %s200, %s201
      %s203 = smul.addr %s202, 4
      %s204 = scalar_lea.vmem %s0, %s203
      %p205 = pneg %p51
      %p206 = pneg %p48
      %p207 = pneg %p72
      %p208 = pneg %p69
      %p209 = pneg %p93
      %p210 = pneg %p90
      %p211 = pneg %p121
      %p212 = pneg %p118
      %s213 = sadd.s32 %s20, %s21
      %s214 = smul.u32 8, %s213
      %p215 = scmp.lt.s32.totalorder %s214, 15
      %s216 = scalar_select %p215, %s214, 15
      %s217 = smul.addr %s216, 8
      %s218 = scalar_lea.vmem %s3, %s217
      %p219 = pneg %p149
      %p220 = pneg %p146
      %p221 = scmp.lt.s32.totalorder %s20, 1
      %s222 = scalar_select %p221, %s20, 1
      %p223 = scmp.lt.s32.totalorder %s21, 0
      %s224 = scalar_select %p223, %s21, 0
      %s225 = sadd.s32 %s224, %s222
      %s226 = smul.addr %s225, 2
      %s227 = scalar_lea.vmem %s4, %s226
      %s228 = smul.u32 10, %s21
      %p229 = scmp.lt.s32.totalorder %s20, 1
      %s230 = scalar_select %p229, %s20, 1
      %p231 = scmp.lt.s32.totalorder %s228, 9
      %s232 = scalar_select %p231, %s228, 9
      %s233 = smul.addr %s232, 2
      %s234 = smul.addr %s230, 20
      %s235 = sadd.s32 %s233, %s234
      %s236 = smul.addr %s235, 4
      %s237 = scalar_lea.vmem %s0, %s236
      %s238 = smul.u32 10, %s21
      %s239 = sadd.s32 %s20, %s21
      %s240 = smul.u32 8, %s239
      %p241 = scmp.lt.s32.totalorder %s240, 15
      %s242 = scalar_select %p241, %s240, 15
      %s243 = smul.addr %s242, 8
      %s244 = scalar_lea.vmem %s3, %s243
      %s245 = sadd.s32 %s20, %s21
      %s246 = smul.u32 8, %s245
      %p247 = scmp.lt.s32.totalorder %s20, 1
      %s248 = scalar_select %p247, %s20, 1
      %p249 = scmp.lt.s32.totalorder %s21, 0
      %s250 = scalar_select %p249, %s21, 0
      %s251 = sadd.s32 %s250, %s248
      %s252 = smul.addr %s251, 2
      %s253 = scalar_lea.vmem %s4, %s252
      %v255 = vld [vmem:[%s237] sm:$0xf]
      %v256 = vld [vmem:[%s237 + $0x8] sm:$0xf]
      %v257 = vld [vmem:[%s237 + $0x10] sm:$0xf]
      %v258 = vld [vmem:[%s237 + $0x18] sm:$0xf]
      %v259 = vld [vmem:[%s237 + $0x20] sm:$0xf]
      %v260 = vld [vmem:[%s237 + $0x28] sm:$0xf]
      %v261 = vld [vmem:[%s237 + $0x30] sm:$0xf]
      %v262 = vld [vmem:[%s237 + $0x38] sm:$0xf]
      %v263 = vld [vmem:[%s1] sm:$0xf]
      %v264 = vld [vmem:[%s1 + $0x4] sm:$0xf]
      %v265 = vld [vmem:[%s1 + $0x8] sm:$0xf]
      %v266 = vld [vmem:[%s1 + $0xc] sm:$0xf]
      %v267 = vld [vmem:[%s1 + $0x10] sm:$0xf]
      %v268 = vld [vmem:[%s1 + $0x14] sm:$0xf]
      %v269 = vld [vmem:[%s1 + $0x18] sm:$0xf]
      %v270 = vld [vmem:[%s1 + $0x1c] sm:$0xf]
      %v271 = vld [vmem:[%s1 + $0x20] sm:$0xf]
      %v272 = vld [vmem:[%s1 + $0x24] sm:$0xf]
      %v273 = vld [vmem:[%s1 + $0x28] sm:$0xf]
      %v274 = vld [vmem:[%s1 + $0x2c] sm:$0xf]
      %v275 = vld [vmem:[%s1 + $0x30] sm:$0xf]
      %v276 = vld [vmem:[%s1 + $0x34] sm:$0xf]
      %v277 = vld [vmem:[%s1 + $0x38] sm:$0xf]
      %v278 = vld [vmem:[%s1 + $0x3c] sm:$0xf]
      %v279 = vld [vmem:[%s237 + $0x4] sm:$0x1]
      %v280 = vld [vmem:[%s237 + $0xc] sm:$0x1]
      %v281 = vld [vmem:[%s237 + $0x14] sm:$0x1]
      %v282 = vld [vmem:[%s237 + $0x1c] sm:$0x1]
      %v283 = vld [vmem:[%s237 + $0x24] sm:$0x1]
      %v284 = vld [vmem:[%s237 + $0x2c] sm:$0x1]
      %v285 = vld [vmem:[%s237 + $0x34] sm:$0x1]
      %v286 = vld [vmem:[%s237 + $0x3c] sm:$0x1]
      %vm287 = vsmask.f32 3328
      %vm288 = vsmask.f32 7440
      %vm289 = vmor %vm287, %vm288
      %v291 = vshrl.u32 %v255, 16
      %v293 = vrot.slane %v291, 4
      %v294 = vshll.u32 %v255, 16
      %v296 = vrot.slane %v294, 5
      %v297 = vor.u32 %v293, %v296
      %v298 = vrot.slane %v297, 4
      %v300 = vshll.u32 %v279, 16
      %v302 = vrot.slane %v300, 5
      %v303 = vsel %vm289, %v298, %v302
      %v305 = vshrl.u32 %v256, 16
      %v307 = vrot.slane %v305, 4
      %v308 = vshll.u32 %v256, 16
      %v310 = vrot.slane %v308, 5
      %v311 = vor.u32 %v307, %v310
      %v312 = vrot.slane %v311, 4
      %v314 = vshll.u32 %v280, 16
      %v316 = vrot.slane %v314, 5
      %v317 = vsel %vm289, %v312, %v316
      %v319 = vshrl.u32 %v257, 16
      %v321 = vrot.slane %v319, 4
      %v322 = vshll.u32 %v257, 16
      %v324 = vrot.slane %v322, 5
      %v325 = vor.u32 %v321, %v324
      %v326 = vrot.slane %v325, 4
      %v328 = vshll.u32 %v281, 16
      %v330 = vrot.slane %v328, 5
      %v331 = vsel %vm289, %v326, %v330
      %v333 = vshrl.u32 %v258, 16
      %v335 = vrot.slane %v333, 4
      %v336 = vshll.u32 %v258, 16
      %v338 = vrot.slane %v336, 5
      %v339 = vor.u32 %v335, %v338
      %v340 = vrot.slane %v339, 4
      %v342 = vshll.u32 %v282, 16
      %v344 = vrot.slane %v342, 5
      %v345 = vsel %vm289, %v340, %v344
      %v347 = vshrl.u32 %v259, 16
      %v349 = vrot.slane %v347, 4
      %v350 = vshll.u32 %v259, 16
      %v352 = vrot.slane %v350, 5
      %v353 = vor.u32 %v349, %v352
      %v354 = vrot.slane %v353, 4
      %v356 = vshll.u32 %v283, 16
      %v358 = vrot.slane %v356, 5
      %v359 = vsel %vm289, %v354, %v358
      %v361 = vshrl.u32 %v260, 16
      %v363 = vrot.slane %v361, 4
      %v364 = vshll.u32 %v260, 16
      %v366 = vrot.slane %v364, 5
      %v367 = vor.u32 %v363, %v366
      %v368 = vrot.slane %v367, 4
      %v370 = vshll.u32 %v284, 16
      %v372 = vrot.slane %v370, 5
      %v373 = vsel %vm289, %v368, %v372
      %v375 = vshrl.u32 %v261, 16
      %v377 = vrot.slane %v375, 4
      %v378 = vshll.u32 %v261, 16
      %v380 = vrot.slane %v378, 5
      %v381 = vor.u32 %v377, %v380
      %v382 = vrot.slane %v381, 4
      %v384 = vshll.u32 %v285, 16
      %v386 = vrot.slane %v384, 5
      %v387 = vsel %vm289, %v382, %v386
      %v389 = vshrl.u32 %v262, 16
      %v391 = vrot.slane %v389, 4
      %v392 = vshll.u32 %v262, 16
      %v394 = vrot.slane %v392, 5
      %v395 = vor.u32 %v391, %v394
      %v396 = vrot.slane %v395, 4
      %v398 = vshll.u32 %v286, 16
      %v400 = vrot.slane %v398, 5
      %v401 = vsel %vm289, %v396, %v400
      %s402 = scalar_lea.vmem %s1, 64
      %v403 = vld [vmem:[%s402] sm:$0xf]
      %v404 = vld [vmem:[%s402 + $0x4] sm:$0xf]
      %v405 = vld [vmem:[%s402 + $0x8] sm:$0xf]
      %v406 = vld [vmem:[%s402 + $0xc] sm:$0xf]
      %v407 = vld [vmem:[%s402 + $0x10] sm:$0xf]
      %v408 = vld [vmem:[%s402 + $0x14] sm:$0xf]
      %v409 = vld [vmem:[%s402 + $0x18] sm:$0xf]
      %v410 = vld [vmem:[%s402 + $0x1c] sm:$0xf]
      %v411 = vld [vmem:[%s402 + $0x20] sm:$0xf]
      %v412 = vld [vmem:[%s402 + $0x24] sm:$0xf]
      %v413 = vld [vmem:[%s402 + $0x28] sm:$0xf]
      %v414 = vld [vmem:[%s402 + $0x2c] sm:$0xf]
      %v415 = vld [vmem:[%s402 + $0x30] sm:$0xf]
      %v416 = vld [vmem:[%s402 + $0x34] sm:$0xf]
      %v417 = vld [vmem:[%s402 + $0x38] sm:$0xf]
      %v418 = vld [vmem:[%s402 + $0x3c] sm:$0xf]
      %v419 = vunpack.c.l.b16 %v303
      %v420 = vunpack.c.l.b16 %v317
      %v421 = vunpack.c.l.b16 %v331
      %v422 = vunpack.c.l.b16 %v345
      %v423 = vunpack.c.l.b16 %v359
      %v424 = vunpack.c.l.b16 %v373
      %v425 = vunpack.c.l.b16 %v387
      %v426 = vunpack.c.l.b16 %v401
      %v427 = vpack.c.b16 %v420, %v419
      %v428 = vpack.c.b16 %v422, %v421
      %v429 = vpack.c.b16 %v424, %v423
      %v430 = vpack.c.b16 %v426, %v425
      %v451 = vunpack.c.l.b16 %v403
      %v452 = vunpack.c.l.b16 %v404
      %v453 = vunpack.c.l.b16 %v405
      %v454 = vunpack.c.l.b16 %v406
      %v455 = vunpack.c.l.b16 %v407
      %v456 = vunpack.c.l.b16 %v408
      %v457 = vunpack.c.l.b16 %v409
      %v458 = vunpack.c.l.b16 %v410
      %v459 = vunpack.c.l.b16 %v411
      %v460 = vunpack.c.l.b16 %v412
      %v461 = vunpack.c.l.b16 %v413
      %v462 = vunpack.c.l.b16 %v414
      %v463 = vunpack.c.l.b16 %v415
      %v464 = vunpack.c.l.b16 %v416
      %v465 = vunpack.c.l.b16 %v417
      %v466 = vunpack.c.l.b16 %v418
      %v467 = vpack.c.b16 %v452, %v451
      %v468 = vpack.c.b16 %v454, %v453
      %v469 = vpack.c.b16 %v456, %v455
      %v470 = vpack.c.b16 %v458, %v457
      %v471 = vpack.c.b16 %v460, %v459
      %v472 = vpack.c.b16 %v462, %v461
      %v473 = vpack.c.b16 %v464, %v463
      %v474 = vpack.c.b16 %v466, %v465
      %483 = vmatprep.subr.bf16.mxu0 0
      %484 = vmatpush1.bf16.msra.mxu0 %v474
      %485 = vmatprep.subr.bf16.mxu0 0
      %486 = vmatpush1.bf16.msra.mxu0 %v473
      %487 = vmatprep.subr.bf16.mxu0 0
      %488 = vmatpush1.bf16.msra.mxu0 %v472
      %489 = vmatprep.subr.bf16.mxu0 0
      %490 = vmatpush1.bf16.msra.mxu0 %v471
      %491 = vmatprep.subr.bf16.mxu0 0
      %492 = vmatpush1.bf16.msra.mxu0 %v470
      %493 = vmatprep.subr.bf16.mxu0 0
      %494 = vmatpush1.bf16.msra.mxu0 %v469
      %495 = vmatprep.subr.bf16.mxu0 0
      %496 = vmatpush1.bf16.msra.mxu0 %v468
      %497 = vmatprep.subr.bf16.mxu0 0
      %498 = vmatpush1.bf16.msra.mxu0 %v467
      %499 = vmatprep.subr.bf16.mxu0 0
      %500 = vmatpush2.bf16.msra.mxu0 0
      %501 = vmatprep.subr.bf16.mxu0 0
      %502 = vmatpush2.bf16.msra.mxu0 0
      %503 = vmatprep.subr.bf16.mxu0 0
      %504 = vmatpush2.bf16.msra.mxu0 0
      %505 = vmatprep.subr.bf16.mxu0 0
      %506 = vmatpush2.bf16.msra.mxu0 0
      %507 = vmatprep.subr.bf16.mxu0 0
      %508 = vmatpush2.bf16.msra.mxu0 0
      %509 = vmatprep.subr.bf16.mxu0 0
      %510 = vmatpush2.bf16.msra.mxu0 0
      %511 = vmatprep.subr.bf16.mxu0 0
      %512 = vmatpush2.bf16.msra.mxu0 0
      %513 = vmatprep.subr.bf16.mxu0 0
      %514 = vmatpush2.bf16.msra.mxu0 0
      %515 = vmatprep.mubr.bf16.mxu0 0
      %516 = vmatmul.mubr.bf16.gmra.mxu0 %v427
      %v517 = vpop.f32.mrf.mxu0
      %v518 = vadd.f32 0.0, %v517
      %v519 = vpop.f32.mrf.mxu0
      %v520 = vpop.f32.mrf.mxu0
      %v521 = vadd.f32 0.0, %v520
      %v522 = vpop.f32.mrf.mxu0
      %523 = vmatprep.mubr.bf16.mxu0 0
      %524 = vmatmul.mubr.bf16.gmra.mxu0 %v428
      %v525 = vpop.f32.mrf.mxu0
      %v526 = vadd.f32 0.0, %v525
      %v527 = vpop.f32.mrf.mxu0
      %v528 = vpop.f32.mrf.mxu0
      %v529 = vadd.f32 0.0, %v528
      %v530 = vpop.f32.mrf.mxu0
      %531 = vmatprep.mubr.bf16.mxu0 0
      %532 = vmatmul.mubr.bf16.gmra.mxu0 %v429
      %v533 = vpop.f32.mrf.mxu0
      %v534 = vadd.f32 0.0, %v533
      %v535 = vpop.f32.mrf.mxu0
      %v536 = vpop.f32.mrf.mxu0
      %v537 = vadd.f32 0.0, %v536
      %v538 = vpop.f32.mrf.mxu0
      %539 = vmatprep.mubr.bf16.mxu0 0
      %540 = vmatmul.mubr.bf16.gmra.mxu0 %v430
      %v541 = vpop.f32.mrf.mxu0
      %v542 = vadd.f32 0.0, %v541
      %v543 = vpop.f32.mrf.mxu0
      %v544 = vpop.f32.mrf.mxu0
      %v545 = vadd.f32 0.0, %v544
      %v546 = vpop.f32.mrf.mxu0
      %547 = vdwg.mxu0
      %v556 = vunpack.c.l.b16 %v255
      %v557 = vunpack.c.l.b16 %v256
      %v558 = vunpack.c.l.b16 %v257
      %v559 = vunpack.c.l.b16 %v258
      %v560 = vunpack.c.l.b16 %v259
      %v561 = vunpack.c.l.b16 %v260
      %v562 = vunpack.c.l.b16 %v261
      %v563 = vunpack.c.l.b16 %v262
      %v564 = vpack.c.b16 %v557, %v556
      %v565 = vpack.c.b16 %v559, %v558
      %v566 = vpack.c.b16 %v561, %v560
      %v567 = vpack.c.b16 %v563, %v562
      %v588 = vunpack.c.l.b16 %v263
      %v589 = vunpack.c.l.b16 %v264
      %v590 = vunpack.c.l.b16 %v265
      %v591 = vunpack.c.l.b16 %v266
      %v592 = vunpack.c.l.b16 %v267
      %v593 = vunpack.c.l.b16 %v268
      %v594 = vunpack.c.l.b16 %v269
      %v595 = vunpack.c.l.b16 %v270
      %v596 = vunpack.c.l.b16 %v271
      %v597 = vunpack.c.l.b16 %v272
      %v598 = vunpack.c.l.b16 %v273
      %v599 = vunpack.c.l.b16 %v274
      %v600 = vunpack.c.l.b16 %v275
      %v601 = vunpack.c.l.b16 %v276
      %v602 = vunpack.c.l.b16 %v277
      %v603 = vunpack.c.l.b16 %v278
      %v604 = vpack.c.b16 %v589, %v588
      %v605 = vpack.c.b16 %v591, %v590
      %v606 = vpack.c.b16 %v593, %v592
      %v607 = vpack.c.b16 %v595, %v594
      %v608 = vpack.c.b16 %v597, %v596
      %v609 = vpack.c.b16 %v599, %v598
      %v610 = vpack.c.b16 %v601, %v600
      %v611 = vpack.c.b16 %v603, %v602
      %620 = vmatprep.subr.bf16.mxu0 0
      %621 = vmatpush1.bf16.msra.mxu0 %v611
      %622 = vmatprep.subr.bf16.mxu0 0
      %623 = vmatpush1.bf16.msra.mxu0 %v610
      %624 = vmatprep.subr.bf16.mxu0 0
      %625 = vmatpush1.bf16.msra.mxu0 %v609
      %626 = vmatprep.subr.bf16.mxu0 0
      %627 = vmatpush1.bf16.msra.mxu0 %v608
      %628 = vmatprep.subr.bf16.mxu0 0
      %629 = vmatpush1.bf16.msra.mxu0 %v607
      %630 = vmatprep.subr.bf16.mxu0 0
      %631 = vmatpush1.bf16.msra.mxu0 %v606
      %632 = vmatprep.subr.bf16.mxu0 0
      %633 = vmatpush1.bf16.msra.mxu0 %v605
      %634 = vmatprep.subr.bf16.mxu0 0
      %635 = vmatpush1.bf16.msra.mxu0 %v604
      %636 = vmatprep.subr.bf16.mxu0 0
      %637 = vmatpush2.bf16.msra.mxu0 0
      %638 = vmatprep.subr.bf16.mxu0 0
      %639 = vmatpush2.bf16.msra.mxu0 0
      %640 = vmatprep.subr.bf16.mxu0 0
      %641 = vmatpush2.bf16.msra.mxu0 0
      %642 = vmatprep.subr.bf16.mxu0 0
      %643 = vmatpush2.bf16.msra.mxu0 0
      %644 = vmatprep.subr.bf16.mxu0 0
      %645 = vmatpush2.bf16.msra.mxu0 0
      %646 = vmatprep.subr.bf16.mxu0 0
      %647 = vmatpush2.bf16.msra.mxu0 0
      %648 = vmatprep.subr.bf16.mxu0 0
      %649 = vmatpush2.bf16.msra.mxu0 0
      %650 = vmatprep.subr.bf16.mxu0 0
      %651 = vmatpush2.bf16.msra.mxu0 0
      %652 = vmatprep.mubr.bf16.mxu0 0
      %653 = vmatmul.mubr.bf16.gmra.mxu0 %v564
      %v654 = vpop.f32.mrf.mxu0
      %v655 = vadd.f32 %v518, %v654
      %v656 = vpop.f32.mrf.mxu0
      %v657 = vpop.f32.mrf.mxu0
      %v658 = vadd.f32 %v521, %v657
      %v659 = vpop.f32.mrf.mxu0
      %660 = vmatprep.mubr.bf16.mxu0 0
      %661 = vmatmul.mubr.bf16.gmra.mxu0 %v565
      %v662 = vpop.f32.mrf.mxu0
      %v663 = vadd.f32 %v526, %v662
      %v664 = vpop.f32.mrf.mxu0
      %v665 = vpop.f32.mrf.mxu0
      %v666 = vadd.f32 %v529, %v665
      %v667 = vpop.f32.mrf.mxu0
      %668 = vmatprep.mubr.bf16.mxu0 0
      %669 = vmatmul.mubr.bf16.gmra.mxu0 %v566
      %v670 = vpop.f32.mrf.mxu0
      %v671 = vadd.f32 %v534, %v670
      %v672 = vpop.f32.mrf.mxu0
      %v673 = vpop.f32.mrf.mxu0
      %v674 = vadd.f32 %v537, %v673
      %v675 = vpop.f32.mrf.mxu0
      %676 = vmatprep.mubr.bf16.mxu0 0
      %677 = vmatmul.mubr.bf16.gmra.mxu0 %v567
      %v678 = vpop.f32.mrf.mxu0
      %v679 = vadd.f32 %v542, %v678
      %v680 = vpop.f32.mrf.mxu0
      %v681 = vpop.f32.mrf.mxu0
      %v682 = vadd.f32 %v545, %v681
      %v683 = vpop.f32.mrf.mxu0
      %684 = vdwg.mxu0
      %v685 = vld [vmem:[%s237] sm:$0xe]
      %v686 = vld [vmem:[%s237 + $0x8] sm:$0xe]
      %v687 = vld [vmem:[%s237 + $0x10] sm:$0xe]
      %v688 = vld [vmem:[%s237 + $0x18] sm:$0xe]
      %v689 = vld [vmem:[%s237 + $0x20] sm:$0xe]
      %v690 = vld [vmem:[%s237 + $0x28] sm:$0xe]
      %v691 = vld [vmem:[%s237 + $0x30] sm:$0xe]
      %v692 = vld [vmem:[%s237 + $0x38] sm:$0xe]
      %vm709 = vcmask 1042432
      %vm710 = vcmask 1046532
      %vm711 = vmor %vm709, %vm710
      %v712 = vrot.slane %v685, 5
      %v713 = vrot.slane %v712, 4
      %v714 = vrot.slane %v279, 5
      %v715 = vsel %vm711, %v713, %v714
      %v716 = vrot.slane %v686, 5
      %v717 = vrot.slane %v716, 4
      %v718 = vrot.slane %v280, 5
      %v719 = vsel %vm711, %v717, %v718
      %v720 = vrot.slane %v687, 5
      %v721 = vrot.slane %v720, 4
      %v722 = vrot.slane %v281, 5
      %v723 = vsel %vm711, %v721, %v722
      %v724 = vrot.slane %v688, 5
      %v725 = vrot.slane %v724, 4
      %v726 = vrot.slane %v282, 5
      %v727 = vsel %vm711, %v725, %v726
      %v728 = vrot.slane %v689, 5
      %v729 = vrot.slane %v728, 4
      %v730 = vrot.slane %v283, 5
      %v731 = vsel %vm711, %v729, %v730
      %v732 = vrot.slane %v690, 5
      %v733 = vrot.slane %v732, 4
      %v734 = vrot.slane %v284, 5
      %v735 = vsel %vm711, %v733, %v734
      %v736 = vrot.slane %v691, 5
      %v737 = vrot.slane %v736, 4
      %v738 = vrot.slane %v285, 5
      %v739 = vsel %vm711, %v737, %v738
      %v740 = vrot.slane %v692, 5
      %v741 = vrot.slane %v740, 4
      %v742 = vrot.slane %v286, 5
      %v743 = vsel %vm711, %v741, %v742
      %s744 = scalar_lea.vmem %s1, 128
      %v745 = vld [vmem:[%s744] sm:$0xf]
      %v746 = vld [vmem:[%s744 + $0x4] sm:$0xf]
      %v747 = vld [vmem:[%s744 + $0x8] sm:$0xf]
      %v748 = vld [vmem:[%s744 + $0xc] sm:$0xf]
      %v749 = vld [vmem:[%s744 + $0x10] sm:$0xf]
      %v750 = vld [vmem:[%s744 + $0x14] sm:$0xf]
      %v751 = vld [vmem:[%s744 + $0x18] sm:$0xf]
      %v752 = vld [vmem:[%s744 + $0x1c] sm:$0xf]
      %v753 = vld [vmem:[%s744 + $0x20] sm:$0xf]
      %v754 = vld [vmem:[%s744 + $0x24] sm:$0xf]
      %v755 = vld [vmem:[%s744 + $0x28] sm:$0xf]
      %v756 = vld [vmem:[%s744 + $0x2c] sm:$0xf]
      %v757 = vld [vmem:[%s744 + $0x30] sm:$0xf]
      %v758 = vld [vmem:[%s744 + $0x34] sm:$0xf]
      %v759 = vld [vmem:[%s744 + $0x38] sm:$0xf]
      %v760 = vld [vmem:[%s744 + $0x3c] sm:$0xf]
      %v761 = vunpack.c.l.b16 %v715
      %v762 = vunpack.c.l.b16 %v719
      %v763 = vunpack.c.l.b16 %v723
      %v764 = vunpack.c.l.b16 %v727
      %v765 = vunpack.c.l.b16 %v731
      %v766 = vunpack.c.l.b16 %v735
      %v767 = vunpack.c.l.b16 %v739
      %v768 = vunpack.c.l.b16 %v743
      %v769 = vpack.c.b16 %v762, %v761
      %v770 = vpack.c.b16 %v764, %v763
      %v771 = vpack.c.b16 %v766, %v765
      %v772 = vpack.c.b16 %v768, %v767
      %v793 = vunpack.c.l.b16 %v745
      %v794 = vunpack.c.l.b16 %v746
      %v795 = vunpack.c.l.b16 %v747
      %v796 = vunpack.c.l.b16 %v748
      %v797 = vunpack.c.l.b16 %v749
      %v798 = vunpack.c.l.b16 %v750
      %v799 = vunpack.c.l.b16 %v751
      %v800 = vunpack.c.l.b16 %v752
      %v801 = vunpack.c.l.b16 %v753
      %v802 = vunpack.c.l.b16 %v754
      %v803 = vunpack.c.l.b16 %v755
      %v804 = vunpack.c.l.b16 %v756
      %v805 = vunpack.c.l.b16 %v757
      %v806 = vunpack.c.l.b16 %v758
      %v807 = vunpack.c.l.b16 %v759
      %v808 = vunpack.c.l.b16 %v760
      %v809 = vpack.c.b16 %v794, %v793
      %v810 = vpack.c.b16 %v796, %v795
      %v811 = vpack.c.b16 %v798, %v797
      %v812 = vpack.c.b16 %v800, %v799
      %v813 = vpack.c.b16 %v802, %v801
      %v814 = vpack.c.b16 %v804, %v803
      %v815 = vpack.c.b16 %v806, %v805
      %v816 = vpack.c.b16 %v808, %v807
      %825 = vmatprep.subr.bf16.mxu0 0
      %826 = vmatpush1.bf16.msra.mxu0 %v816
      %827 = vmatprep.subr.bf16.mxu0 0
      %828 = vmatpush1.bf16.msra.mxu0 %v815
      %829 = vmatprep.subr.bf16.mxu0 0
      %830 = vmatpush1.bf16.msra.mxu0 %v814
      %831 = vmatprep.subr.bf16.mxu0 0
      %832 = vmatpush1.bf16.msra.mxu0 %v813
      %833 = vmatprep.subr.bf16.mxu0 0
      %834 = vmatpush1.bf16.msra.mxu0 %v812
      %835 = vmatprep.subr.bf16.mxu0 0
      %836 = vmatpush1.bf16.msra.mxu0 %v811
      %837 = vmatprep.subr.bf16.mxu0 0
      %838 = vmatpush1.bf16.msra.mxu0 %v810
      %839 = vmatprep.subr.bf16.mxu0 0
      %840 = vmatpush1.bf16.msra.mxu0 %v809
      %841 = vmatprep.subr.bf16.mxu0 0
      %842 = vmatpush2.bf16.msra.mxu0 0
      %843 = vmatprep.subr.bf16.mxu0 0
      %844 = vmatpush2.bf16.msra.mxu0 0
      %845 = vmatprep.subr.bf16.mxu0 0
      %846 = vmatpush2.bf16.msra.mxu0 0
      %847 = vmatprep.subr.bf16.mxu0 0
      %848 = vmatpush2.bf16.msra.mxu0 0
      %849 = vmatprep.subr.bf16.mxu0 0
      %850 = vmatpush2.bf16.msra.mxu0 0
      %851 = vmatprep.subr.bf16.mxu0 0
      %852 = vmatpush2.bf16.msra.mxu0 0
      %853 = vmatprep.subr.bf16.mxu0 0
      %854 = vmatpush2.bf16.msra.mxu0 0
      %855 = vmatprep.subr.bf16.mxu0 0
      %856 = vmatpush2.bf16.msra.mxu0 0
      %857 = vmatprep.mubr.bf16.mxu0 0
      %858 = vmatmul.mubr.bf16.gmra.mxu0 %v769
      %v859 = vpop.f32.mrf.mxu0
      %v860 = vadd.f32 0.0, %v859
      %v861 = vpop.f32.mrf.mxu0
      %v862 = vpop.f32.mrf.mxu0
      %v863 = vadd.f32 0.0, %v862
      %v864 = vpop.f32.mrf.mxu0
      %865 = vmatprep.mubr.bf16.mxu0 0
      %866 = vmatmul.mubr.bf16.gmra.mxu0 %v770
      %v867 = vpop.f32.mrf.mxu0
      %v868 = vadd.f32 0.0, %v867
      %v869 = vpop.f32.mrf.mxu0
      %v870 = vpop.f32.mrf.mxu0
      %v871 = vadd.f32 0.0, %v870
      %v872 = vpop.f32.mrf.mxu0
      %873 = vmatprep.mubr.bf16.mxu0 0
      %874 = vmatmul.mubr.bf16.gmra.mxu0 %v771
      %v875 = vpop.f32.mrf.mxu0
      %v876 = vadd.f32 0.0, %v875
      %v877 = vpop.f32.mrf.mxu0
      %v878 = vpop.f32.mrf.mxu0
      %v879 = vadd.f32 0.0, %v878
      %v880 = vpop.f32.mrf.mxu0
      %881 = vmatprep.mubr.bf16.mxu0 0
      %882 = vmatmul.mubr.bf16.gmra.mxu0 %v772
      %v883 = vpop.f32.mrf.mxu0
      %v884 = vadd.f32 0.0, %v883
      %v885 = vpop.f32.mrf.mxu0
      %v886 = vpop.f32.mrf.mxu0
      %v887 = vadd.f32 0.0, %v886
      %v888 = vpop.f32.mrf.mxu0
      %889 = vdwg.mxu0
      %v890 = vadd.f32 %v655, %v860
      %v891 = vadd.f32 %v658, %v863
      %v892 = vadd.f32 %v663, %v868
      %v893 = vadd.f32 %v666, %v871
      %v894 = vadd.f32 %v671, %v876
      %v895 = vadd.f32 %v674, %v879
      %v896 = vadd.f32 %v679, %v884
      %v897 = vadd.f32 %v682, %v887
      %s898 = scalar_lea.vmem %s237, 8
      %v899 = vld [vmem:[%s898] sm:$0xf]
      %v900 = vld [vmem:[%s898 + $0x8] sm:$0xf]
      %v901 = vld [vmem:[%s898 + $0x10] sm:$0xf]
      %v902 = vld [vmem:[%s898 + $0x18] sm:$0xf]
      %v903 = vld [vmem:[%s898 + $0x20] sm:$0xf]
      %v904 = vld [vmem:[%s898 + $0x28] sm:$0xf]
      %v905 = vld [vmem:[%s898 + $0x30] sm:$0xf]
      %v906 = vld [vmem:[%s898 + $0x38] sm:$0xf]
      %s907 = scalar_lea.vmem %s1, 192
      %v908 = vld [vmem:[%s907] sm:$0xf]
      %v909 = vld [vmem:[%s907 + $0x4] sm:$0xf]
      %v910 = vld [vmem:[%s907 + $0x8] sm:$0xf]
      %v911 = vld [vmem:[%s907 + $0xc] sm:$0xf]
      %v912 = vld [vmem:[%s907 + $0x10] sm:$0xf]
      %v913 = vld [vmem:[%s907 + $0x14] sm:$0xf]
      %v914 = vld [vmem:[%s907 + $0x18] sm:$0xf]
      %v915 = vld [vmem:[%s907 + $0x1c] sm:$0xf]
      %v916 = vld [vmem:[%s907 + $0x20] sm:$0xf]
      %v917 = vld [vmem:[%s907 + $0x24] sm:$0xf]
      %v918 = vld [vmem:[%s907 + $0x28] sm:$0xf]
      %v919 = vld [vmem:[%s907 + $0x2c] sm:$0xf]
      %v920 = vld [vmem:[%s907 + $0x30] sm:$0xf]
      %v921 = vld [vmem:[%s907 + $0x34] sm:$0xf]
      %v922 = vld [vmem:[%s907 + $0x38] sm:$0xf]
      %v923 = vld [vmem:[%s907 + $0x3c] sm:$0xf]
      %v932 = vunpack.c.l.b16 %v899
      %v933 = vunpack.c.l.b16 %v900
      %v934 = vunpack.c.l.b16 %v901
      %v935 = vunpack.c.l.b16 %v902
      %v936 = vunpack.c.l.b16 %v903
      %v937 = vunpack.c.l.b16 %v904
      %v938 = vunpack.c.l.b16 %v905
      %v939 = vunpack.c.l.b16 %v906
      %v940 = vpack.c.b16 %v933, %v932
      %v941 = vpack.c.b16 %v935, %v934
      %v942 = vpack.c.b16 %v937, %v936
      %v943 = vpack.c.b16 %v939, %v938
      %v964 = vunpack.c.l.b16 %v908
      %v965 = vunpack.c.l.b16 %v909
      %v966 = vunpack.c.l.b16 %v910
      %v967 = vunpack.c.l.b16 %v911
      %v968 = vunpack.c.l.b16 %v912
      %v969 = vunpack.c.l.b16 %v913
      %v970 = vunpack.c.l.b16 %v914
      %v971 = vunpack.c.l.b16 %v915
      %v972 = vunpack.c.l.b16 %v916
      %v973 = vunpack.c.l.b16 %v917
      %v974 = vunpack.c.l.b16 %v918
      %v975 = vunpack.c.l.b16 %v919
      %v976 = vunpack.c.l.b16 %v920
      %v977 = vunpack.c.l.b16 %v921
      %v978 = vunpack.c.l.b16 %v922
      %v979 = vunpack.c.l.b16 %v923
      %v980 = vpack.c.b16 %v965, %v964
      %v981 = vpack.c.b16 %v967, %v966
      %v982 = vpack.c.b16 %v969, %v968
      %v983 = vpack.c.b16 %v971, %v970
      %v984 = vpack.c.b16 %v973, %v972
      %v985 = vpack.c.b16 %v975, %v974
      %v986 = vpack.c.b16 %v977, %v976
      %v987 = vpack.c.b16 %v979, %v978
      %996 = vmatprep.subr.bf16.mxu0 0
      %997 = vmatpush1.bf16.msra.mxu0 %v987
      %998 = vmatprep.subr.bf16.mxu0 0
      %999 = vmatpush1.bf16.msra.mxu0 %v986
      %1000 = vmatprep.subr.bf16.mxu0 0
      %1001 = vmatpush1.bf16.msra.mxu0 %v985
      %1002 = vmatprep.subr.bf16.mxu0 0
      %1003 = vmatpush1.bf16.msra.mxu0 %v984
      %1004 = vmatprep.subr.bf16.mxu0 0
      %1005 = vmatpush1.bf16.msra.mxu0 %v983
      %1006 = vmatprep.subr.bf16.mxu0 0
      %1007 = vmatpush1.bf16.msra.mxu0 %v982
      %1008 = vmatprep.subr.bf16.mxu0 0
      %1009 = vmatpush1.bf16.msra.mxu0 %v981
      %1010 = vmatprep.subr.bf16.mxu0 0
      %1011 = vmatpush1.bf16.msra.mxu0 %v980
      %1012 = vmatprep.subr.bf16.mxu0 0
      %1013 = vmatpush2.bf16.msra.mxu0 0
      %1014 = vmatprep.subr.bf16.mxu0 0
      %1015 = vmatpush2.bf16.msra.mxu0 0
      %1016 = vmatprep.subr.bf16.mxu0 0
      %1017 = vmatpush2.bf16.msra.mxu0 0
      %1018 = vmatprep.subr.bf16.mxu0 0
      %1019 = vmatpush2.bf16.msra.mxu0 0
      %1020 = vmatprep.subr.bf16.mxu0 0
      %1021 = vmatpush2.bf16.msra.mxu0 0
      %1022 = vmatprep.subr.bf16.mxu0 0
      %1023 = vmatpush2.bf16.msra.mxu0 0
      %1024 = vmatprep.subr.bf16.mxu0 0
      %1025 = vmatpush2.bf16.msra.mxu0 0
      %1026 = vmatprep.subr.bf16.mxu0 0
      %1027 = vmatpush2.bf16.msra.mxu0 0
      %1028 = vmatprep.mubr.bf16.mxu0 0
      %1029 = vmatmul.mubr.bf16.gmra.mxu0 %v940
      %v1030 = vpop.f32.mrf.mxu0
      %v1031 = vadd.f32 0.0, %v1030
      %v1032 = vpop.f32.mrf.mxu0
      %v1033 = vpop.f32.mrf.mxu0
      %v1034 = vadd.f32 0.0, %v1033
      %v1035 = vpop.f32.mrf.mxu0
      %1036 = vmatprep.mubr.bf16.mxu0 0
      %1037 = vmatmul.mubr.bf16.gmra.mxu0 %v941
      %v1038 = vpop.f32.mrf.mxu0
      %v1039 = vadd.f32 0.0, %v1038
      %v1040 = vpop.f32.mrf.mxu0
      %v1041 = vpop.f32.mrf.mxu0
      %v1042 = vadd.f32 0.0, %v1041
      %v1043 = vpop.f32.mrf.mxu0
      %1044 = vmatprep.mubr.bf16.mxu0 0
      %1045 = vmatmul.mubr.bf16.gmra.mxu0 %v942
      %v1046 = vpop.f32.mrf.mxu0
      %v1047 = vadd.f32 0.0, %v1046
      %v1048 = vpop.f32.mrf.mxu0
      %v1049 = vpop.f32.mrf.mxu0
      %v1050 = vadd.f32 0.0, %v1049
      %v1051 = vpop.f32.mrf.mxu0
      %1052 = vmatprep.mubr.bf16.mxu0 0
      %1053 = vmatmul.mubr.bf16.gmra.mxu0 %v943
      %v1054 = vpop.f32.mrf.mxu0
      %v1055 = vadd.f32 0.0, %v1054
      %v1056 = vpop.f32.mrf.mxu0
      %v1057 = vpop.f32.mrf.mxu0
      %v1058 = vadd.f32 0.0, %v1057
      %v1059 = vpop.f32.mrf.mxu0
      %1060 = vdwg.mxu0
      %v1061 = vadd.f32 %v890, %v1031
      %v1062 = vadd.f32 %v891, %v1034
      %v1063 = vadd.f32 %v892, %v1039
      %v1064 = vadd.f32 %v893, %v1042
      %v1065 = vadd.f32 %v894, %v1047
      %v1066 = vadd.f32 %v895, %v1050
      %v1067 = vadd.f32 %v896, %v1055
      %v1068 = vadd.f32 %v897, %v1058
      %v1069 = vld [vmem:[%s898] sm:$0xf]
      %v1070 = vld [vmem:[%s898 + $0x4] sm:$0x1]
      %v1071 = vld [vmem:[%s898 + $0x8] sm:$0xf]
      %v1072 = vld [vmem:[%s898 + $0xc] sm:$0x1]
      %v1073 = vld [vmem:[%s898 + $0x10] sm:$0xf]
      %v1074 = vld [vmem:[%s898 + $0x14] sm:$0x1]
      %v1075 = vld [vmem:[%s898 + $0x18] sm:$0xf]
      %v1076 = vld [vmem:[%s898 + $0x1c] sm:$0x1]
      %v1077 = vld [vmem:[%s898 + $0x20] sm:$0xf]
      %v1078 = vld [vmem:[%s898 + $0x24] sm:$0x1]
      %v1079 = vld [vmem:[%s898 + $0x28] sm:$0xf]
      %v1080 = vld [vmem:[%s898 + $0x2c] sm:$0x1]
      %v1081 = vld [vmem:[%s898 + $0x30] sm:$0xf]
      %v1082 = vld [vmem:[%s898 + $0x34] sm:$0x1]
      %v1083 = vld [vmem:[%s898 + $0x38] sm:$0xf]
      %v1084 = vld [vmem:[%s898 + $0x3c] sm:$0x1]
      %v1086 = vshrl.u32 %v1069, 16
      %v1088 = vrot.slane %v1086, 4
      %v1089 = vshll.u32 %v1069, 16
      %v1091 = vrot.slane %v1089, 5
      %v1092 = vor.u32 %v1088, %v1091
      %v1093 = vrot.slane %v1092, 4
      %v1095 = vshll.u32 %v1070, 16
      %v1097 = vrot.slane %v1095, 5
      %v1098 = vsel %vm289, %v1093, %v1097
      %v1100 = vshrl.u32 %v1071, 16
      %v1102 = vrot.slane %v1100, 4
      %v1103 = vshll.u32 %v1071, 16
      %v1105 = vrot.slane %v1103, 5
      %v1106 = vor.u32 %v1102, %v1105
      %v1107 = vrot.slane %v1106, 4
      %v1109 = vshll.u32 %v1072, 16
      %v1111 = vrot.slane %v1109, 5
      %v1112 = vsel %vm289, %v1107, %v1111
      %v1114 = vshrl.u32 %v1073, 16
      %v1116 = vrot.slane %v1114, 4
      %v1117 = vshll.u32 %v1073, 16
      %v1119 = vrot.slane %v1117, 5
      %v1120 = vor.u32 %v1116, %v1119
      %v1121 = vrot.slane %v1120, 4
      %v1123 = vshll.u32 %v1074, 16
      %v1125 = vrot.slane %v1123, 5
      %v1126 = vsel %vm289, %v1121, %v1125
      %v1128 = vshrl.u32 %v1075, 16
      %v1130 = vrot.slane %v1128, 4
      %v1131 = vshll.u32 %v1075, 16
      %v1133 = vrot.slane %v1131, 5
      %v1134 = vor.u32 %v1130, %v1133
      %v1135 = vrot.slane %v1134, 4
      %v1137 = vshll.u32 %v1076, 16
      %v1139 = vrot.slane %v1137, 5
      %v1140 = vsel %vm289, %v1135, %v1139
      %v1142 = vshrl.u32 %v1077, 16
      %v1144 = vrot.slane %v1142, 4
      %v1145 = vshll.u32 %v1077, 16
      %v1147 = vrot.slane %v1145, 5
      %v1148 = vor.u32 %v1144, %v1147
      %v1149 = vrot.slane %v1148, 4
      %v1151 = vshll.u32 %v1078, 16
      %v1153 = vrot.slane %v1151, 5
      %v1154 = vsel %vm289, %v1149, %v1153
      %v1156 = vshrl.u32 %v1079, 16
      %v1158 = vrot.slane %v1156, 4
      %v1159 = vshll.u32 %v1079, 16
      %v1161 = vrot.slane %v1159, 5
      %v1162 = vor.u32 %v1158, %v1161
      %v1163 = vrot.slane %v1162, 4
      %v1165 = vshll.u32 %v1080, 16
      %v1167 = vrot.slane %v1165, 5
      %v1168 = vsel %vm289, %v1163, %v1167
      %v1170 = vshrl.u32 %v1081, 16
      %v1172 = vrot.slane %v1170, 4
      %v1173 = vshll.u32 %v1081, 16
      %v1175 = vrot.slane %v1173, 5
      %v1176 = vor.u32 %v1172, %v1175
      %v1177 = vrot.slane %v1176, 4
      %v1179 = vshll.u32 %v1082, 16
      %v1181 = vrot.slane %v1179, 5
      %v1182 = vsel %vm289, %v1177, %v1181
      %v1184 = vshrl.u32 %v1083, 16
      %v1186 = vrot.slane %v1184, 4
      %v1187 = vshll.u32 %v1083, 16
      %v1189 = vrot.slane %v1187, 5
      %v1190 = vor.u32 %v1186, %v1189
      %v1191 = vrot.slane %v1190, 4
      %v1193 = vshll.u32 %v1084, 16
      %v1195 = vrot.slane %v1193, 5
      %v1196 = vsel %vm289, %v1191, %v1195
      %s1197 = scalar_lea.vmem %s1, 256
      %v1198 = vld [vmem:[%s1197] sm:$0xf]
      %v1199 = vld [vmem:[%s1197 + $0x4] sm:$0xf]
      %v1200 = vld [vmem:[%s1197 + $0x8] sm:$0xf]
      %v1201 = vld [vmem:[%s1197 + $0xc] sm:$0xf]
      %v1202 = vld [vmem:[%s1197 + $0x10] sm:$0xf]
      %v1203 = vld [vmem:[%s1197 + $0x14] sm:$0xf]
      %v1204 = vld [vmem:[%s1197 + $0x18] sm:$0xf]
      %v1205 = vld [vmem:[%s1197 + $0x1c] sm:$0xf]
      %v1206 = vld [vmem:[%s1197 + $0x20] sm:$0xf]
      %v1207 = vld [vmem:[%s1197 + $0x24] sm:$0xf]
      %v1208 = vld [vmem:[%s1197 + $0x28] sm:$0xf]
      %v1209 = vld [vmem:[%s1197 + $0x2c] sm:$0xf]
      %v1210 = vld [vmem:[%s1197 + $0x30] sm:$0xf]
      %v1211 = vld [vmem:[%s1197 + $0x34] sm:$0xf]
      %v1212 = vld [vmem:[%s1197 + $0x38] sm:$0xf]
      %v1213 = vld [vmem:[%s1197 + $0x3c] sm:$0xf]
      %v1214 = vunpack.c.l.b16 %v1098
      %v1215 = vunpack.c.l.b16 %v1112
      %v1216 = vunpack.c.l.b16 %v1126
      %v1217 = vunpack.c.l.b16 %v1140
      %v1218 = vunpack.c.l.b16 %v1154
      %v1219 = vunpack.c.l.b16 %v1168
      %v1220 = vunpack.c.l.b16 %v1182
      %v1221 = vunpack.c.l.b16 %v1196
      %v1222 = vpack.c.b16 %v1215, %v1214
      %v1223 = vpack.c.b16 %v1217, %v1216
      %v1224 = vpack.c.b16 %v1219, %v1218
      %v1225 = vpack.c.b16 %v1221, %v1220
      %v1246 = vunpack.c.l.b16 %v1198
      %v1247 = vunpack.c.l.b16 %v1199
      %v1248 = vunpack.c.l.b16 %v1200
      %v1249 = vunpack.c.l.b16 %v1201
      %v1250 = vunpack.c.l.b16 %v1202
      %v1251 = vunpack.c.l.b16 %v1203
      %v1252 = vunpack.c.l.b16 %v1204
      %v1253 = vunpack.c.l.b16 %v1205
      %v1254 = vunpack.c.l.b16 %v1206
      %v1255 = vunpack.c.l.b16 %v1207
      %v1256 = vunpack.c.l.b16 %v1208
      %v1257 = vunpack.c.l.b16 %v1209
      %v1258 = vunpack.c.l.b16 %v1210
      %v1259 = vunpack.c.l.b16 %v1211
      %v1260 = vunpack.c.l.b16 %v1212
      %v1261 = vunpack.c.l.b16 %v1213
      %v1262 = vpack.c.b16 %v1247, %v1246
      %v1263 = vpack.c.b16 %v1249, %v1248
      %v1264 = vpack.c.b16 %v1251, %v1250
      %v1265 = vpack.c.b16 %v1253, %v1252
      %v1266 = vpack.c.b16 %v1255, %v1254
      %v1267 = vpack.c.b16 %v1257, %v1256
      %v1268 = vpack.c.b16 %v1259, %v1258
      %v1269 = vpack.c.b16 %v1261, %v1260
      %1278 = vmatprep.subr.bf16.mxu0 0
      %1279 = vmatpush1.bf16.msra.mxu0 %v1269
      %1280 = vmatprep.subr.bf16.mxu0 0
      %1281 = vmatpush1.bf16.msra.mxu0 %v1268
      %1282 = vmatprep.subr.bf16.mxu0 0
      %1283 = vmatpush1.bf16.msra.mxu0 %v1267
      %1284 = vmatprep.subr.bf16.mxu0 0
      %1285 = vmatpush1.bf16.msra.mxu0 %v1266
      %1286 = vmatprep.subr.bf16.mxu0 0
      %1287 = vmatpush1.bf16.msra.mxu0 %v1265
      %1288 = vmatprep.subr.bf16.mxu0 0
      %1289 = vmatpush1.bf16.msra.mxu0 %v1264
      %1290 = vmatprep.subr.bf16.mxu0 0
      %1291 = vmatpush1.bf16.msra.mxu0 %v1263
      %1292 = vmatprep.subr.bf16.mxu0 0
      %1293 = vmatpush1.bf16.msra.mxu0 %v1262
      %1294 = vmatprep.subr.bf16.mxu0 0
      %1295 = vmatpush2.bf16.msra.mxu0 0
      %1296 = vmatprep.subr.bf16.mxu0 0
      %1297 = vmatpush2.bf16.msra.mxu0 0
      %1298 = vmatprep.subr.bf16.mxu0 0
      %1299 = vmatpush2.bf16.msra.mxu0 0
      %1300 = vmatprep.subr.bf16.mxu0 0
      %1301 = vmatpush2.bf16.msra.mxu0 0
      %1302 = vmatprep.subr.bf16.mxu0 0
      %1303 = vmatpush2.bf16.msra.mxu0 0
      %1304 = vmatprep.subr.bf16.mxu0 0
      %1305 = vmatpush2.bf16.msra.mxu0 0
      %1306 = vmatprep.subr.bf16.mxu0 0
      %1307 = vmatpush2.bf16.msra.mxu0 0
      %1308 = vmatprep.subr.bf16.mxu0 0
      %1309 = vmatpush2.bf16.msra.mxu0 0
      %1310 = vmatprep.mubr.bf16.mxu0 0
      %1311 = vmatmul.mubr.bf16.gmra.mxu0 %v1222
      %v1312 = vpop.f32.mrf.mxu0
      %v1313 = vadd.f32 0.0, %v1312
      %v1314 = vpop.f32.mrf.mxu0
      %v1315 = vpop.f32.mrf.mxu0
      %v1316 = vadd.f32 0.0, %v1315
      %v1317 = vpop.f32.mrf.mxu0
      %1318 = vmatprep.mubr.bf16.mxu0 0
      %1319 = vmatmul.mubr.bf16.gmra.mxu0 %v1223
      %v1320 = vpop.f32.mrf.mxu0
      %v1321 = vadd.f32 0.0, %v1320
      %v1322 = vpop.f32.mrf.mxu0
      %v1323 = vpop.f32.mrf.mxu0
      %v1324 = vadd.f32 0.0, %v1323
      %v1325 = vpop.f32.mrf.mxu0
      %1326 = vmatprep.mubr.bf16.mxu0 0
      %1327 = vmatmul.mubr.bf16.gmra.mxu0 %v1224
      %v1328 = vpop.f32.mrf.mxu0
      %v1329 = vadd.f32 0.0, %v1328
      %v1330 = vpop.f32.mrf.mxu0
      %v1331 = vpop.f32.mrf.mxu0
      %v1332 = vadd.f32 0.0, %v1331
      %v1333 = vpop.f32.mrf.mxu0
      %1334 = vmatprep.mubr.bf16.mxu0 0
      %1335 = vmatmul.mubr.bf16.gmra.mxu0 %v1225
      %v1336 = vpop.f32.mrf.mxu0
      %v1337 = vadd.f32 0.0, %v1336
      %v1338 = vpop.f32.mrf.mxu0
      %v1339 = vpop.f32.mrf.mxu0
      %v1340 = vadd.f32 0.0, %v1339
      %v1341 = vpop.f32.mrf.mxu0
      %1342 = vdwg.mxu0
      %v1343 = vadd.f32 %v1061, %v1313
      %v1344 = vadd.f32 %v1062, %v1316
      %v1345 = vadd.f32 %v1063, %v1321
      %v1346 = vadd.f32 %v1064, %v1324
      %v1347 = vadd.f32 %v1065, %v1329
      %v1348 = vadd.f32 %v1066, %v1332
      %v1349 = vadd.f32 %v1067, %v1337
      %v1350 = vadd.f32 %v1068, %v1340
      %v1351 = vld [vmem:[%s898] sm:$0xe]
      %v1352 = vld [vmem:[%s898 + $0x8] sm:$0xe]
      %v1353 = vld [vmem:[%s898 + $0x10] sm:$0xe]
      %v1354 = vld [vmem:[%s898 + $0x18] sm:$0xe]
      %v1355 = vld [vmem:[%s898 + $0x20] sm:$0xe]
      %v1356 = vld [vmem:[%s898 + $0x28] sm:$0xe]
      %v1357 = vld [vmem:[%s898 + $0x30] sm:$0xe]
      %v1358 = vld [vmem:[%s898 + $0x38] sm:$0xe]
      %v1375 = vrot.slane %v1351, 5
      %v1376 = vrot.slane %v1375, 4
      %v1377 = vrot.slane %v1070, 5
      %v1378 = vsel %vm711, %v1376, %v1377
      %v1379 = vrot.slane %v1352, 5
      %v1380 = vrot.slane %v1379, 4
      %v1381 = vrot.slane %v1072, 5
      %v1382 = vsel %vm711, %v1380, %v1381
      %v1383 = vrot.slane %v1353, 5
      %v1384 = vrot.slane %v1383, 4
      %v1385 = vrot.slane %v1074, 5
      %v1386 = vsel %vm711, %v1384, %v1385
      %v1387 = vrot.slane %v1354, 5
      %v1388 = vrot.slane %v1387, 4
      %v1389 = vrot.slane %v1076, 5
      %v1390 = vsel %vm711, %v1388, %v1389
      %v1391 = vrot.slane %v1355, 5
      %v1392 = vrot.slane %v1391, 4
      %v1393 = vrot.slane %v1078, 5
      %v1394 = vsel %vm711, %v1392, %v1393
      %v1395 = vrot.slane %v1356, 5
      %v1396 = vrot.slane %v1395, 4
      %v1397 = vrot.slane %v1080, 5
      %v1398 = vsel %vm711, %v1396, %v1397
      %v1399 = vrot.slane %v1357, 5
      %v1400 = vrot.slane %v1399, 4
      %v1401 = vrot.slane %v1082, 5
      %v1402 = vsel %vm711, %v1400, %v1401
      %v1403 = vrot.slane %v1358, 5
      %v1404 = vrot.slane %v1403, 4
      %v1405 = vrot.slane %v1084, 5
      %v1406 = vsel %vm711, %v1404, %v1405
      %s1407 = scalar_lea.vmem %s1, 320
      %v1408 = vld [vmem:[%s1407] sm:$0xf]
      %v1409 = vld [vmem:[%s1407 + $0x4] sm:$0xf]
      %v1410 = vld [vmem:[%s1407 + $0x8] sm:$0xf]
      %v1411 = vld [vmem:[%s1407 + $0xc] sm:$0xf]
      %v1412 = vld [vmem:[%s1407 + $0x10] sm:$0xf]
      %v1413 = vld [vmem:[%s1407 + $0x14] sm:$0xf]
      %v1414 = vld [vmem:[%s1407 + $0x18] sm:$0xf]
      %v1415 = vld [vmem:[%s1407 + $0x1c] sm:$0xf]
      %v1416 = vld [vmem:[%s1407 + $0x20] sm:$0xf]
      %v1417 = vld [vmem:[%s1407 + $0x24] sm:$0xf]
      %v1418 = vld [vmem:[%s1407 + $0x28] sm:$0xf]
      %v1419 = vld [vmem:[%s1407 + $0x2c] sm:$0xf]
      %v1420 = vld [vmem:[%s1407 + $0x30] sm:$0xf]
      %v1421 = vld [vmem:[%s1407 + $0x34] sm:$0xf]
      %v1422 = vld [vmem:[%s1407 + $0x38] sm:$0xf]
      %v1423 = vld [vmem:[%s1407 + $0x3c] sm:$0xf]
      %v1424 = vunpack.c.l.b16 %v1378
      %v1425 = vunpack.c.l.b16 %v1382
      %v1426 = vunpack.c.l.b16 %v1386
      %v1427 = vunpack.c.l.b16 %v1390
      %v1428 = vunpack.c.l.b16 %v1394
      %v1429 = vunpack.c.l.b16 %v1398
      %v1430 = vunpack.c.l.b16 %v1402
      %v1431 = vunpack.c.l.b16 %v1406
      %v1432 = vpack.c.b16 %v1425, %v1424
      %v1433 = vpack.c.b16 %v1427, %v1426
      %v1434 = vpack.c.b16 %v1429, %v1428
      %v1435 = vpack.c.b16 %v1431, %v1430
      %v1456 = vunpack.c.l.b16 %v1408
      %v1457 = vunpack.c.l.b16 %v1409
      %v1458 = vunpack.c.l.b16 %v1410
      %v1459 = vunpack.c.l.b16 %v1411
      %v1460 = vunpack.c.l.b16 %v1412
      %v1461 = vunpack.c.l.b16 %v1413
      %v1462 = vunpack.c.l.b16 %v1414
      %v1463 = vunpack.c.l.b16 %v1415
      %v1464 = vunpack.c.l.b16 %v1416
      %v1465 = vunpack.c.l.b16 %v1417
      %v1466 = vunpack.c.l.b16 %v1418
      %v1467 = vunpack.c.l.b16 %v1419
      %v1468 = vunpack.c.l.b16 %v1420
      %v1469 = vunpack.c.l.b16 %v1421
      %v1470 = vunpack.c.l.b16 %v1422
      %v1471 = vunpack.c.l.b16 %v1423
      %v1472 = vpack.c.b16 %v1457, %v1456
      %v1473 = vpack.c.b16 %v1459, %v1458
      %v1474 = vpack.c.b16 %v1461, %v1460
      %v1475 = vpack.c.b16 %v1463, %v1462
      %v1476 = vpack.c.b16 %v1465, %v1464
      %v1477 = vpack.c.b16 %v1467, %v1466
      %v1478 = vpack.c.b16 %v1469, %v1468
      %v1479 = vpack.c.b16 %v1471, %v1470
      %1488 = vmatprep.subr.bf16.mxu0 0
      %1489 = vmatpush1.bf16.msra.mxu0 %v1479
      %1490 = vmatprep.subr.bf16.mxu0 0
      %1491 = vmatpush1.bf16.msra.mxu0 %v1478
      %1492 = vmatprep.subr.bf16.mxu0 0
      %1493 = vmatpush1.bf16.msra.mxu0 %v1477
      %1494 = vmatprep.subr.bf16.mxu0 0
      %1495 = vmatpush1.bf16.msra.mxu0 %v1476
      %1496 = vmatprep.subr.bf16.mxu0 0
      %1497 = vmatpush1.bf16.msra.mxu0 %v1475
      %1498 = vmatprep.subr.bf16.mxu0 0
      %1499 = vmatpush1.bf16.msra.mxu0 %v1474
      %1500 = vmatprep.subr.bf16.mxu0 0
      %1501 = vmatpush1.bf16.msra.mxu0 %v1473
      %1502 = vmatprep.subr.bf16.mxu0 0
      %1503 = vmatpush1.bf16.msra.mxu0 %v1472
      %1504 = vmatprep.subr.bf16.mxu0 0
      %1505 = vmatpush2.bf16.msra.mxu0 0
      %1506 = vmatprep.subr.bf16.mxu0 0
      %1507 = vmatpush2.bf16.msra.mxu0 0
      %1508 = vmatprep.subr.bf16.mxu0 0
      %1509 = vmatpush2.bf16.msra.mxu0 0
      %1510 = vmatprep.subr.bf16.mxu0 0
      %1511 = vmatpush2.bf16.msra.mxu0 0
      %1512 = vmatprep.subr.bf16.mxu0 0
      %1513 = vmatpush2.bf16.msra.mxu0 0
      %1514 = vmatprep.subr.bf16.mxu0 0
      %1515 = vmatpush2.bf16.msra.mxu0 0
      %1516 = vmatprep.subr.bf16.mxu0 0
      %1517 = vmatpush2.bf16.msra.mxu0 0
      %1518 = vmatprep.subr.bf16.mxu0 0
      %1519 = vmatpush2.bf16.msra.mxu0 0
      %1520 = vmatprep.mubr.bf16.mxu0 0
      %1521 = vmatmul.mubr.bf16.gmra.mxu0 %v1432
      %v1522 = vpop.f32.mrf.mxu0
      %v1523 = vadd.f32 0.0, %v1522
      %v1524 = vpop.f32.mrf.mxu0
      %v1525 = vpop.f32.mrf.mxu0
      %v1526 = vadd.f32 0.0, %v1525
      %v1527 = vpop.f32.mrf.mxu0
      %1528 = vmatprep.mubr.bf16.mxu0 0
      %1529 = vmatmul.mubr.bf16.gmra.mxu0 %v1433
      %v1530 = vpop.f32.mrf.mxu0
      %v1531 = vadd.f32 0.0, %v1530
      %v1532 = vpop.f32.mrf.mxu0
      %v1533 = vpop.f32.mrf.mxu0
      %v1534 = vadd.f32 0.0, %v1533
      %v1535 = vpop.f32.mrf.mxu0
      %1536 = vmatprep.mubr.bf16.mxu0 0
      %1537 = vmatmul.mubr.bf16.gmra.mxu0 %v1434
      %v1538 = vpop.f32.mrf.mxu0
      %v1539 = vadd.f32 0.0, %v1538
      %v1540 = vpop.f32.mrf.mxu0
      %v1541 = vpop.f32.mrf.mxu0
      %v1542 = vadd.f32 0.0, %v1541
      %v1543 = vpop.f32.mrf.mxu0
      %1544 = vmatprep.mubr.bf16.mxu0 0
      %1545 = vmatmul.mubr.bf16.gmra.mxu0 %v1435
      %v1546 = vpop.f32.mrf.mxu0
      %v1547 = vadd.f32 0.0, %v1546
      %v1548 = vpop.f32.mrf.mxu0
      %v1549 = vpop.f32.mrf.mxu0
      %v1550 = vadd.f32 0.0, %v1549
      %v1551 = vpop.f32.mrf.mxu0
      %1552 = vdwg.mxu0
      %v1553 = vadd.f32 %v1343, %v1523
      %v1554 = vadd.f32 %v1344, %v1526
      %v1555 = vadd.f32 %v1345, %v1531
      %v1556 = vadd.f32 %v1346, %v1534
      %v1557 = vadd.f32 %v1347, %v1539
      %v1558 = vadd.f32 %v1348, %v1542
      %v1559 = vadd.f32 %v1349, %v1547
      %v1560 = vadd.f32 %v1350, %v1550
      %s1561 = scalar_lea.vmem %s237, 16
      %v1562 = vld [vmem:[%s1561] sm:$0xf]
      %v1563 = vld [vmem:[%s1561 + $0x8] sm:$0xf]
      %v1564 = vld [vmem:[%s1561 + $0x10] sm:$0xf]
      %v1565 = vld [vmem:[%s1561 + $0x18] sm:$0xf]
      %v1566 = vld [vmem:[%s1561 + $0x20] sm:$0xf]
      %v1567 = vld [vmem:[%s1561 + $0x28] sm:$0xf]
      %v1568 = vld [vmem:[%s1561 + $0x30] sm:$0xf]
      %v1569 = vld [vmem:[%s1561 + $0x38] sm:$0xf]
      %s1570 = scalar_lea.vmem %s1, 384
      %v1571 = vld [vmem:[%s1570] sm:$0xf]
      %v1572 = vld [vmem:[%s1570 + $0x4] sm:$0xf]
      %v1573 = vld [vmem:[%s1570 + $0x8] sm:$0xf]
      %v1574 = vld [vmem:[%s1570 + $0xc] sm:$0xf]
      %v1575 = vld [vmem:[%s1570 + $0x10] sm:$0xf]
      %v1576 = vld [vmem:[%s1570 + $0x14] sm:$0xf]
      %v1577 = vld [vmem:[%s1570 + $0x18] sm:$0xf]
      %v1578 = vld [vmem:[%s1570 + $0x1c] sm:$0xf]
      %v1579 = vld [vmem:[%s1570 + $0x20] sm:$0xf]
      %v1580 = vld [vmem:[%s1570 + $0x24] sm:$0xf]
      %v1581 = vld [vmem:[%s1570 + $0x28] sm:$0xf]
      %v1582 = vld [vmem:[%s1570 + $0x2c] sm:$0xf]
      %v1583 = vld [vmem:[%s1570 + $0x30] sm:$0xf]
      %v1584 = vld [vmem:[%s1570 + $0x34] sm:$0xf]
      %v1585 = vld [vmem:[%s1570 + $0x38] sm:$0xf]
      %v1586 = vld [vmem:[%s1570 + $0x3c] sm:$0xf]
      %v1595 = vunpack.c.l.b16 %v1562
      %v1596 = vunpack.c.l.b16 %v1563
      %v1597 = vunpack.c.l.b16 %v1564
      %v1598 = vunpack.c.l.b16 %v1565
      %v1599 = vunpack.c.l.b16 %v1566
      %v1600 = vunpack.c.l.b16 %v1567
      %v1601 = vunpack.c.l.b16 %v1568
      %v1602 = vunpack.c.l.b16 %v1569
      %v1603 = vpack.c.b16 %v1596, %v1595
      %v1604 = vpack.c.b16 %v1598, %v1597
      %v1605 = vpack.c.b16 %v1600, %v1599
      %v1606 = vpack.c.b16 %v1602, %v1601
      %v1627 = vunpack.c.l.b16 %v1571
      %v1628 = vunpack.c.l.b16 %v1572
      %v1629 = vunpack.c.l.b16 %v1573
      %v1630 = vunpack.c.l.b16 %v1574
      %v1631 = vunpack.c.l.b16 %v1575
      %v1632 = vunpack.c.l.b16 %v1576
      %v1633 = vunpack.c.l.b16 %v1577
      %v1634 = vunpack.c.l.b16 %v1578
      %v1635 = vunpack.c.l.b16 %v1579
      %v1636 = vunpack.c.l.b16 %v1580
      %v1637 = vunpack.c.l.b16 %v1581
      %v1638 = vunpack.c.l.b16 %v1582
      %v1639 = vunpack.c.l.b16 %v1583
      %v1640 = vunpack.c.l.b16 %v1584
      %v1641 = vunpack.c.l.b16 %v1585
      %v1642 = vunpack.c.l.b16 %v1586
      %v1643 = vpack.c.b16 %v1628, %v1627
      %v1644 = vpack.c.b16 %v1630, %v1629
      %v1645 = vpack.c.b16 %v1632, %v1631
      %v1646 = vpack.c.b16 %v1634, %v1633
      %v1647 = vpack.c.b16 %v1636, %v1635
      %v1648 = vpack.c.b16 %v1638, %v1637
      %v1649 = vpack.c.b16 %v1640, %v1639
      %v1650 = vpack.c.b16 %v1642, %v1641
      %1659 = vmatprep.subr.bf16.mxu0 0
      %1660 = vmatpush1.bf16.msra.mxu0 %v1650
      %1661 = vmatprep.subr.bf16.mxu0 0
      %1662 = vmatpush1.bf16.msra.mxu0 %v1649
      %1663 = vmatprep.subr.bf16.mxu0 0
      %1664 = vmatpush1.bf16.msra.mxu0 %v1648
      %1665 = vmatprep.subr.bf16.mxu0 0
      %1666 = vmatpush1.bf16.msra.mxu0 %v1647
      %1667 = vmatprep.subr.bf16.mxu0 0
      %1668 = vmatpush1.bf16.msra.mxu0 %v1646
      %1669 = vmatprep.subr.bf16.mxu0 0
      %1670 = vmatpush1.bf16.msra.mxu0 %v1645
      %1671 = vmatprep.subr.bf16.mxu0 0
      %1672 = vmatpush1.bf16.msra.mxu0 %v1644
      %1673 = vmatprep.subr.bf16.mxu0 0
      %1674 = vmatpush1.bf16.msra.mxu0 %v1643
      %1675 = vmatprep.subr.bf16.mxu0 0
      %1676 = vmatpush2.bf16.msra.mxu0 0
      %1677 = vmatprep.subr.bf16.mxu0 0
      %1678 = vmatpush2.bf16.msra.mxu0 0
      %1679 = vmatprep.subr.bf16.mxu0 0
      %1680 = vmatpush2.bf16.msra.mxu0 0
      %1681 = vmatprep.subr.bf16.mxu0 0
      %1682 = vmatpush2.bf16.msra.mxu0 0
      %1683 = vmatprep.subr.bf16.mxu0 0
      %1684 = vmatpush2.bf16.msra.mxu0 0
      %1685 = vmatprep.subr.bf16.mxu0 0
      %1686 = vmatpush2.bf16.msra.mxu0 0
      %1687 = vmatprep.subr.bf16.mxu0 0
      %1688 = vmatpush2.bf16.msra.mxu0 0
      %1689 = vmatprep.subr.bf16.mxu0 0
      %1690 = vmatpush2.bf16.msra.mxu0 0
      %1691 = vmatprep.mubr.bf16.mxu0 0
      %1692 = vmatmul.mubr.bf16.gmra.mxu0 %v1603
      %v1693 = vpop.f32.mrf.mxu0
      %v1694 = vadd.f32 0.0, %v1693
      %v1695 = vpop.f32.mrf.mxu0
      %v1696 = vpop.f32.mrf.mxu0
      %v1697 = vadd.f32 0.0, %v1696
      %v1698 = vpop.f32.mrf.mxu0
      %1699 = vmatprep.mubr.bf16.mxu0 0
      %1700 = vmatmul.mubr.bf16.gmra.mxu0 %v1604
      %v1701 = vpop.f32.mrf.mxu0
      %v1702 = vadd.f32 0.0, %v1701
      %v1703 = vpop.f32.mrf.mxu0
      %v1704 = vpop.f32.mrf.mxu0
      %v1705 = vadd.f32 0.0, %v1704
      %v1706 = vpop.f32.mrf.mxu0
      %1707 = vmatprep.mubr.bf16.mxu0 0
      %1708 = vmatmul.mubr.bf16.gmra.mxu0 %v1605
      %v1709 = vpop.f32.mrf.mxu0
      %v1710 = vadd.f32 0.0, %v1709
      %v1711 = vpop.f32.mrf.mxu0
      %v1712 = vpop.f32.mrf.mxu0
      %v1713 = vadd.f32 0.0, %v1712
      %v1714 = vpop.f32.mrf.mxu0
      %1715 = vmatprep.mubr.bf16.mxu0 0
      %1716 = vmatmul.mubr.bf16.gmra.mxu0 %v1606
      %v1717 = vpop.f32.mrf.mxu0
      %v1718 = vadd.f32 0.0, %v1717
      %v1719 = vpop.f32.mrf.mxu0
      %v1720 = vpop.f32.mrf.mxu0
      %v1721 = vadd.f32 0.0, %v1720
      %v1722 = vpop.f32.mrf.mxu0
      %1723 = vdwg.mxu0
      %v1724 = vadd.f32 %v1553, %v1694
      %v1725 = vadd.f32 %v1554, %v1697
      %v1726 = vadd.f32 %v1555, %v1702
      %v1727 = vadd.f32 %v1556, %v1705
      %v1728 = vadd.f32 %v1557, %v1710
      %v1729 = vadd.f32 %v1558, %v1713
      %v1730 = vadd.f32 %v1559, %v1718
      %v1731 = vadd.f32 %v1560, %v1721
      %v1732 = vld [vmem:[%s1561] sm:$0xf]
      %v1733 = vld [vmem:[%s1561 + $0x4] sm:$0x1]
      %v1734 = vld [vmem:[%s1561 + $0x8] sm:$0xf]
      %v1735 = vld [vmem:[%s1561 + $0xc] sm:$0x1]
      %v1736 = vld [vmem:[%s1561 + $0x10] sm:$0xf]
      %v1737 = vld [vmem:[%s1561 + $0x14] sm:$0x1]
      %v1738 = vld [vmem:[%s1561 + $0x18] sm:$0xf]
      %v1739 = vld [vmem:[%s1561 + $0x1c] sm:$0x1]
      %v1740 = vld [vmem:[%s1561 + $0x20] sm:$0xf]
      %v1741 = vld [vmem:[%s1561 + $0x24] sm:$0x1]
      %v1742 = vld [vmem:[%s1561 + $0x28] sm:$0xf]
      %v1743 = vld [vmem:[%s1561 + $0x2c] sm:$0x1]
      %v1744 = vld [vmem:[%s1561 + $0x30] sm:$0xf]
      %v1745 = vld [vmem:[%s1561 + $0x34] sm:$0x1]
      %v1746 = vld [vmem:[%s1561 + $0x38] sm:$0xf]
      %v1747 = vld [vmem:[%s1561 + $0x3c] sm:$0x1]
      %v1749 = vshrl.u32 %v1732, 16
      %v1751 = vrot.slane %v1749, 4
      %v1752 = vshll.u32 %v1732, 16
      %v1754 = vrot.slane %v1752, 5
      %v1755 = vor.u32 %v1751, %v1754
      %v1756 = vrot.slane %v1755, 4
      %v1758 = vshll.u32 %v1733, 16
      %v1760 = vrot.slane %v1758, 5
      %v1761 = vsel %vm289, %v1756, %v1760
      %v1763 = vshrl.u32 %v1734, 16
      %v1765 = vrot.slane %v1763, 4
      %v1766 = vshll.u32 %v1734, 16
      %v1768 = vrot.slane %v1766, 5
      %v1769 = vor.u32 %v1765, %v1768
      %v1770 = vrot.slane %v1769, 4
      %v1772 = vshll.u32 %v1735, 16
      %v1774 = vrot.slane %v1772, 5
      %v1775 = vsel %vm289, %v1770, %v1774
      %v1777 = vshrl.u32 %v1736, 16
      %v1779 = vrot.slane %v1777, 4
      %v1780 = vshll.u32 %v1736, 16
      %v1782 = vrot.slane %v1780, 5
      %v1783 = vor.u32 %v1779, %v1782
      %v1784 = vrot.slane %v1783, 4
      %v1786 = vshll.u32 %v1737, 16
      %v1788 = vrot.slane %v1786, 5
      %v1789 = vsel %vm289, %v1784, %v1788
      %v1791 = vshrl.u32 %v1738, 16
      %v1793 = vrot.slane %v1791, 4
      %v1794 = vshll.u32 %v1738, 16
      %v1796 = vrot.slane %v1794, 5
      %v1797 = vor.u32 %v1793, %v1796
      %v1798 = vrot.slane %v1797, 4
      %v1800 = vshll.u32 %v1739, 16
      %v1802 = vrot.slane %v1800, 5
      %v1803 = vsel %vm289, %v1798, %v1802
      %v1805 = vshrl.u32 %v1740, 16
      %v1807 = vrot.slane %v1805, 4
      %v1808 = vshll.u32 %v1740, 16
      %v1810 = vrot.slane %v1808, 5
      %v1811 = vor.u32 %v1807, %v1810
      %v1812 = vrot.slane %v1811, 4
      %v1814 = vshll.u32 %v1741, 16
      %v1816 = vrot.slane %v1814, 5
      %v1817 = vsel %vm289, %v1812, %v1816
      %v1819 = vshrl.u32 %v1742, 16
      %v1821 = vrot.slane %v1819, 4
      %v1822 = vshll.u32 %v1742, 16
      %v1824 = vrot.slane %v1822, 5
      %v1825 = vor.u32 %v1821, %v1824
      %v1826 = vrot.slane %v1825, 4
      %v1828 = vshll.u32 %v1743, 16
      %v1830 = vrot.slane %v1828, 5
      %v1831 = vsel %vm289, %v1826, %v1830
      %v1833 = vshrl.u32 %v1744, 16
      %v1835 = vrot.slane %v1833, 4
      %v1836 = vshll.u32 %v1744, 16
      %v1838 = vrot.slane %v1836, 5
      %v1839 = vor.u32 %v1835, %v1838
      %v1840 = vrot.slane %v1839, 4
      %v1842 = vshll.u32 %v1745, 16
      %v1844 = vrot.slane %v1842, 5
      %v1845 = vsel %vm289, %v1840, %v1844
      %v1847 = vshrl.u32 %v1746, 16
      %v1849 = vrot.slane %v1847, 4
      %v1850 = vshll.u32 %v1746, 16
      %v1852 = vrot.slane %v1850, 5
      %v1853 = vor.u32 %v1849, %v1852
      %v1854 = vrot.slane %v1853, 4
      %v1856 = vshll.u32 %v1747, 16
      %v1858 = vrot.slane %v1856, 5
      %v1859 = vsel %vm289, %v1854, %v1858
      %s1860 = scalar_lea.vmem %s1, 448
      %v1861 = vld [vmem:[%s1860] sm:$0xf]
      %v1862 = vld [vmem:[%s1860 + $0x4] sm:$0xf]
      %v1863 = vld [vmem:[%s1860 + $0x8] sm:$0xf]
      %v1864 = vld [vmem:[%s1860 + $0xc] sm:$0xf]
      %v1865 = vld [vmem:[%s1860 + $0x10] sm:$0xf]
      %v1866 = vld [vmem:[%s1860 + $0x14] sm:$0xf]
      %v1867 = vld [vmem:[%s1860 + $0x18] sm:$0xf]
      %v1868 = vld [vmem:[%s1860 + $0x1c] sm:$0xf]
      %v1869 = vld [vmem:[%s1860 + $0x20] sm:$0xf]
      %v1870 = vld [vmem:[%s1860 + $0x24] sm:$0xf]
      %v1871 = vld [vmem:[%s1860 + $0x28] sm:$0xf]
      %v1872 = vld [vmem:[%s1860 + $0x2c] sm:$0xf]
      %v1873 = vld [vmem:[%s1860 + $0x30] sm:$0xf]
      %v1874 = vld [vmem:[%s1860 + $0x34] sm:$0xf]
      %v1875 = vld [vmem:[%s1860 + $0x38] sm:$0xf]
      %v1876 = vld [vmem:[%s1860 + $0x3c] sm:$0xf]
      %v1877 = vunpack.c.l.b16 %v1761
      %v1878 = vunpack.c.l.b16 %v1775
      %v1879 = vunpack.c.l.b16 %v1789
      %v1880 = vunpack.c.l.b16 %v1803
      %v1881 = vunpack.c.l.b16 %v1817
      %v1882 = vunpack.c.l.b16 %v1831
      %v1883 = vunpack.c.l.b16 %v1845
      %v1884 = vunpack.c.l.b16 %v1859
      %v1885 = vpack.c.b16 %v1878, %v1877
      %v1886 = vpack.c.b16 %v1880, %v1879
      %v1887 = vpack.c.b16 %v1882, %v1881
      %v1888 = vpack.c.b16 %v1884, %v1883
      %v1909 = vunpack.c.l.b16 %v1861
      %v1910 = vunpack.c.l.b16 %v1862
      %v1911 = vunpack.c.l.b16 %v1863
      %v1912 = vunpack.c.l.b16 %v1864
      %v1913 = vunpack.c.l.b16 %v1865
      %v1914 = vunpack.c.l.b16 %v1866
      %v1915 = vunpack.c.l.b16 %v1867
      %v1916 = vunpack.c.l.b16 %v1868
      %v1917 = vunpack.c.l.b16 %v1869
      %v1918 = vunpack.c.l.b16 %v1870
      %v1919 = vunpack.c.l.b16 %v1871
      %v1920 = vunpack.c.l.b16 %v1872
      %v1921 = vunpack.c.l.b16 %v1873
      %v1922 = vunpack.c.l.b16 %v1874
      %v1923 = vunpack.c.l.b16 %v1875
      %v1924 = vunpack.c.l.b16 %v1876
      %v1925 = vpack.c.b16 %v1910, %v1909
      %v1926 = vpack.c.b16 %v1912, %v1911
      %v1927 = vpack.c.b16 %v1914, %v1913
      %v1928 = vpack.c.b16 %v1916, %v1915
      %v1929 = vpack.c.b16 %v1918, %v1917
      %v1930 = vpack.c.b16 %v1920, %v1919
      %v1931 = vpack.c.b16 %v1922, %v1921
      %v1932 = vpack.c.b16 %v1924, %v1923
      %1941 = vmatprep.subr.bf16.mxu0 0
      %1942 = vmatpush1.bf16.msra.mxu0 %v1932
      %1943 = vmatprep.subr.bf16.mxu0 0
      %1944 = vmatpush1.bf16.msra.mxu0 %v1931
      %1945 = vmatprep.subr.bf16.mxu0 0
      %1946 = vmatpush1.bf16.msra.mxu0 %v1930
      %1947 = vmatprep.subr.bf16.mxu0 0
      %1948 = vmatpush1.bf16.msra.mxu0 %v1929
      %1949 = vmatprep.subr.bf16.mxu0 0
      %1950 = vmatpush1.bf16.msra.mxu0 %v1928
      %1951 = vmatprep.subr.bf16.mxu0 0
      %1952 = vmatpush1.bf16.msra.mxu0 %v1927
      %1953 = vmatprep.subr.bf16.mxu0 0
      %1954 = vmatpush1.bf16.msra.mxu0 %v1926
      %1955 = vmatprep.subr.bf16.mxu0 0
      %1956 = vmatpush1.bf16.msra.mxu0 %v1925
      %1957 = vmatprep.subr.bf16.mxu0 0
      %1958 = vmatpush2.bf16.msra.mxu0 0
      %1959 = vmatprep.subr.bf16.mxu0 0
      %1960 = vmatpush2.bf16.msra.mxu0 0
      %1961 = vmatprep.subr.bf16.mxu0 0
      %1962 = vmatpush2.bf16.msra.mxu0 0
      %1963 = vmatprep.subr.bf16.mxu0 0
      %1964 = vmatpush2.bf16.msra.mxu0 0
      %1965 = vmatprep.subr.bf16.mxu0 0
      %1966 = vmatpush2.bf16.msra.mxu0 0
      %1967 = vmatprep.subr.bf16.mxu0 0
      %1968 = vmatpush2.bf16.msra.mxu0 0
      %1969 = vmatprep.subr.bf16.mxu0 0
      %1970 = vmatpush2.bf16.msra.mxu0 0
      %1971 = vmatprep.subr.bf16.mxu0 0
      %1972 = vmatpush2.bf16.msra.mxu0 0
      %1973 = vmatprep.mubr.bf16.mxu0 0
      %1974 = vmatmul.mubr.bf16.gmra.mxu0 %v1885
      %v1975 = vpop.f32.mrf.mxu0
      %v1976 = vadd.f32 0.0, %v1975
      %v1977 = vpop.f32.mrf.mxu0
      %v1978 = vpop.f32.mrf.mxu0
      %v1979 = vadd.f32 0.0, %v1978
      %v1980 = vpop.f32.mrf.mxu0
      %1981 = vmatprep.mubr.bf16.mxu0 0
      %1982 = vmatmul.mubr.bf16.gmra.mxu0 %v1886
      %v1983 = vpop.f32.mrf.mxu0
      %v1984 = vadd.f32 0.0, %v1983
      %v1985 = vpop.f32.mrf.mxu0
      %v1986 = vpop.f32.mrf.mxu0
      %v1987 = vadd.f32 0.0, %v1986
      %v1988 = vpop.f32.mrf.mxu0
      %1989 = vmatprep.mubr.bf16.mxu0 0
      %1990 = vmatmul.mubr.bf16.gmra.mxu0 %v1887
      %v1991 = vpop.f32.mrf.mxu0
      %v1992 = vadd.f32 0.0, %v1991
      %v1993 = vpop.f32.mrf.mxu0
      %v1994 = vpop.f32.mrf.mxu0
      %v1995 = vadd.f32 0.0, %v1994
      %v1996 = vpop.f32.mrf.mxu0
      %1997 = vmatprep.mubr.bf16.mxu0 0
      %1998 = vmatmul.mubr.bf16.gmra.mxu0 %v1888
      %v1999 = vpop.f32.mrf.mxu0
      %v2000 = vadd.f32 0.0, %v1999
      %v2001 = vpop.f32.mrf.mxu0
      %v2002 = vpop.f32.mrf.mxu0
      %v2003 = vadd.f32 0.0, %v2002
      %v2004 = vpop.f32.mrf.mxu0
      %2005 = vdwg.mxu0
      %v2006 = vadd.f32 %v1724, %v1976
      %v2007 = vadd.f32 %v1725, %v1979
      %v2008 = vadd.f32 %v1726, %v1984
      %v2009 = vadd.f32 %v1727, %v1987
      %v2010 = vadd.f32 %v1728, %v1992
      %v2011 = vadd.f32 %v1729, %v1995
      %v2012 = vadd.f32 %v1730, %v2000
      %v2013 = vadd.f32 %v1731, %v2003
      %v2014 = vld [vmem:[%s1561] sm:$0xe]
      %v2015 = vld [vmem:[%s1561 + $0x8] sm:$0xe]
      %v2016 = vld [vmem:[%s1561 + $0x10] sm:$0xe]
      %v2017 = vld [vmem:[%s1561 + $0x18] sm:$0xe]
      %v2018 = vld [vmem:[%s1561 + $0x20] sm:$0xe]
      %v2019 = vld [vmem:[%s1561 + $0x28] sm:$0xe]
      %v2020 = vld [vmem:[%s1561 + $0x30] sm:$0xe]
      %v2021 = vld [vmem:[%s1561 + $0x38] sm:$0xe]
      %v2038 = vrot.slane %v2014, 5
      %v2039 = vrot.slane %v2038, 4
      %v2040 = vrot.slane %v1733, 5
      %v2041 = vsel %vm711, %v2039, %v2040
      %v2042 = vrot.slane %v2015, 5
      %v2043 = vrot.slane %v2042, 4
      %v2044 = vrot.slane %v1735, 5
      %v2045 = vsel %vm711, %v2043, %v2044
      %v2046 = vrot.slane %v2016, 5
      %v2047 = vrot.slane %v2046, 4
      %v2048 = vrot.slane %v1737, 5
      %v2049 = vsel %vm711, %v2047, %v2048
      %v2050 = vrot.slane %v2017, 5
      %v2051 = vrot.slane %v2050, 4
      %v2052 = vrot.slane %v1739, 5
      %v2053 = vsel %vm711, %v2051, %v2052
      %v2054 = vrot.slane %v2018, 5
      %v2055 = vrot.slane %v2054, 4
      %v2056 = vrot.slane %v1741, 5
      %v2057 = vsel %vm711, %v2055, %v2056
      %v2058 = vrot.slane %v2019, 5
      %v2059 = vrot.slane %v2058, 4
      %v2060 = vrot.slane %v1743, 5
      %v2061 = vsel %vm711, %v2059, %v2060
      %v2062 = vrot.slane %v2020, 5
      %v2063 = vrot.slane %v2062, 4
      %v2064 = vrot.slane %v1745, 5
      %v2065 = vsel %vm711, %v2063, %v2064
      %v2066 = vrot.slane %v2021, 5
      %v2067 = vrot.slane %v2066, 4
      %v2068 = vrot.slane %v1747, 5
      %v2069 = vsel %vm711, %v2067, %v2068
      %s2070 = scalar_lea.vmem %s1, 512
      %v2071 = vld [vmem:[%s2070] sm:$0xf]
      %v2072 = vld [vmem:[%s2070 + $0x4] sm:$0xf]
      %v2073 = vld [vmem:[%s2070 + $0x8] sm:$0xf]
      %v2074 = vld [vmem:[%s2070 + $0xc] sm:$0xf]
      %v2075 = vld [vmem:[%s2070 + $0x10] sm:$0xf]
      %v2076 = vld [vmem:[%s2070 + $0x14] sm:$0xf]
      %v2077 = vld [vmem:[%s2070 + $0x18] sm:$0xf]
      %v2078 = vld [vmem:[%s2070 + $0x1c] sm:$0xf]
      %v2079 = vld [vmem:[%s2070 + $0x20] sm:$0xf]
      %v2080 = vld [vmem:[%s2070 + $0x24] sm:$0xf]
      %v2081 = vld [vmem:[%s2070 + $0x28] sm:$0xf]
      %v2082 = vld [vmem:[%s2070 + $0x2c] sm:$0xf]
      %v2083 = vld [vmem:[%s2070 + $0x30] sm:$0xf]
      %v2084 = vld [vmem:[%s2070 + $0x34] sm:$0xf]
      %v2085 = vld [vmem:[%s2070 + $0x38] sm:$0xf]
      %v2086 = vld [vmem:[%s2070 + $0x3c] sm:$0xf]
      %v2087 = vunpack.c.l.b16 %v2041
      %v2088 = vunpack.c.l.b16 %v2045
      %v2089 = vunpack.c.l.b16 %v2049
      %v2090 = vunpack.c.l.b16 %v2053
      %v2091 = vunpack.c.l.b16 %v2057
      %v2092 = vunpack.c.l.b16 %v2061
      %v2093 = vunpack.c.l.b16 %v2065
      %v2094 = vunpack.c.l.b16 %v2069
      %v2095 = vpack.c.b16 %v2088, %v2087
      %v2096 = vpack.c.b16 %v2090, %v2089
      %v2097 = vpack.c.b16 %v2092, %v2091
      %v2098 = vpack.c.b16 %v2094, %v2093
      %v2119 = vunpack.c.l.b16 %v2071
      %v2120 = vunpack.c.l.b16 %v2072
      %v2121 = vunpack.c.l.b16 %v2073
      %v2122 = vunpack.c.l.b16 %v2074
      %v2123 = vunpack.c.l.b16 %v2075
      %v2124 = vunpack.c.l.b16 %v2076
      %v2125 = vunpack.c.l.b16 %v2077
      %v2126 = vunpack.c.l.b16 %v2078
      %v2127 = vunpack.c.l.b16 %v2079
      %v2128 = vunpack.c.l.b16 %v2080
      %v2129 = vunpack.c.l.b16 %v2081
      %v2130 = vunpack.c.l.b16 %v2082
      %v2131 = vunpack.c.l.b16 %v2083
      %v2132 = vunpack.c.l.b16 %v2084
      %v2133 = vunpack.c.l.b16 %v2085
      %v2134 = vunpack.c.l.b16 %v2086
      %v2135 = vpack.c.b16 %v2120, %v2119
      %v2136 = vpack.c.b16 %v2122, %v2121
      %v2137 = vpack.c.b16 %v2124, %v2123
      %v2138 = vpack.c.b16 %v2126, %v2125
      %v2139 = vpack.c.b16 %v2128, %v2127
      %v2140 = vpack.c.b16 %v2130, %v2129
      %v2141 = vpack.c.b16 %v2132, %v2131
      %v2142 = vpack.c.b16 %v2134, %v2133
      %2151 = vmatprep.subr.bf16.mxu0 0
      %2152 = vmatpush1.bf16.msra.mxu0 %v2142
      %2153 = vmatprep.subr.bf16.mxu0 0
      %2154 = vmatpush1.bf16.msra.mxu0 %v2141
      %2155 = vmatprep.subr.bf16.mxu0 0
      %2156 = vmatpush1.bf16.msra.mxu0 %v2140
      %2157 = vmatprep.subr.bf16.mxu0 0
      %2158 = vmatpush1.bf16.msra.mxu0 %v2139
      %2159 = vmatprep.subr.bf16.mxu0 0
      %2160 = vmatpush1.bf16.msra.mxu0 %v2138
      %2161 = vmatprep.subr.bf16.mxu0 0
      %2162 = vmatpush1.bf16.msra.mxu0 %v2137
      %2163 = vmatprep.subr.bf16.mxu0 0
      %2164 = vmatpush1.bf16.msra.mxu0 %v2136
      %2165 = vmatprep.subr.bf16.mxu0 0
      %2166 = vmatpush1.bf16.msra.mxu0 %v2135
      %2167 = vmatprep.subr.bf16.mxu0 0
      %2168 = vmatpush2.bf16.msra.mxu0 0
      %2169 = vmatprep.subr.bf16.mxu0 0
      %2170 = vmatpush2.bf16.msra.mxu0 0
      %2171 = vmatprep.subr.bf16.mxu0 0
      %2172 = vmatpush2.bf16.msra.mxu0 0
      %2173 = vmatprep.subr.bf16.mxu0 0
      %2174 = vmatpush2.bf16.msra.mxu0 0
      %2175 = vmatprep.subr.bf16.mxu0 0
      %2176 = vmatpush2.bf16.msra.mxu0 0
      %2177 = vmatprep.subr.bf16.mxu0 0
      %2178 = vmatpush2.bf16.msra.mxu0 0
      %2179 = vmatprep.subr.bf16.mxu0 0
      %2180 = vmatpush2.bf16.msra.mxu0 0
      %2181 = vmatprep.subr.bf16.mxu0 0
      %2182 = vmatpush2.bf16.msra.mxu0 0
      %2183 = vmatprep.mubr.bf16.mxu0 0
      %2184 = vmatmul.mubr.bf16.gmra.mxu0 %v2095
      %v2185 = vpop.f32.mrf.mxu0
      %v2186 = vadd.f32 0.0, %v2185
      %v2187 = vpop.f32.mrf.mxu0
      %v2188 = vpop.f32.mrf.mxu0
      %v2189 = vadd.f32 0.0, %v2188
      %v2190 = vpop.f32.mrf.mxu0
      %2191 = vmatprep.mubr.bf16.mxu0 0
      %2192 = vmatmul.mubr.bf16.gmra.mxu0 %v2096
      %v2193 = vpop.f32.mrf.mxu0
      %v2194 = vadd.f32 0.0, %v2193
      %v2195 = vpop.f32.mrf.mxu0
      %v2196 = vpop.f32.mrf.mxu0
      %v2197 = vadd.f32 0.0, %v2196
      %v2198 = vpop.f32.mrf.mxu0
      %2199 = vmatprep.mubr.bf16.mxu0 0
      %2200 = vmatmul.mubr.bf16.gmra.mxu0 %v2097
      %v2201 = vpop.f32.mrf.mxu0
      %v2202 = vadd.f32 0.0, %v2201
      %v2203 = vpop.f32.mrf.mxu0
      %v2204 = vpop.f32.mrf.mxu0
      %v2205 = vadd.f32 0.0, %v2204
      %v2206 = vpop.f32.mrf.mxu0
      %2207 = vmatprep.mubr.bf16.mxu0 0
      %2208 = vmatmul.mubr.bf16.gmra.mxu0 %v2098
      %v2209 = vpop.f32.mrf.mxu0
      %v2210 = vadd.f32 0.0, %v2209
      %v2211 = vpop.f32.mrf.mxu0
      %v2212 = vpop.f32.mrf.mxu0
      %v2213 = vadd.f32 0.0, %v2212
      %v2214 = vpop.f32.mrf.mxu0
      %2215 = vdwg.mxu0
      %v2216 = vadd.f32 %v2006, %v2186
      %v2217 = vadd.f32 %v2007, %v2189
      %v2218 = vadd.f32 %v2008, %v2194
      %v2219 = vadd.f32 %v2009, %v2197
      %v2220 = vadd.f32 %v2010, %v2202
      %v2221 = vadd.f32 %v2011, %v2205
      %v2222 = vadd.f32 %v2012, %v2210
      %v2223 = vadd.f32 %v2013, %v2213
      %v2224 = vld [vmem:[%s2] sm:$0x1]
      %v2226 = vlaneseq
      %v2227 = vshrl.u32 %v2226, 7
      %v2228 = vsub.s32 0, %v2227
      %v2229 = vrot.slane %v2224, %v2228
      %v2231 = vadd.f32 %v2216, %v2229
      %v2232 = vadd.f32 %v2217, %v2229
      %v2233 = vadd.f32 %v2218, %v2229
      %v2234 = vadd.f32 %v2219, %v2229
      %v2235 = vadd.f32 %v2220, %v2229
      %v2236 = vadd.f32 %v2221, %v2229
      %v2237 = vadd.f32 %v2222, %v2229
      %v2238 = vadd.f32 %v2223, %v2229
      %2239 = vst [vmem:[%s244] sm:$0xff] %v2231
      %2240 = vst [vmem:[%s244 + $0x8] sm:$0xff] %v2232
      %2241 = vst [vmem:[%s244 + $0x10] sm:$0xff] %v2233
      %2242 = vst [vmem:[%s244 + $0x18] sm:$0xff] %v2234
      %2243 = vst [vmem:[%s244 + $0x20] sm:$0xff] %v2235
      %2244 = vst [vmem:[%s244 + $0x28] sm:$0xff] %v2236
      %2245 = vst [vmem:[%s244 + $0x30] sm:$0xff] %v2237
      %2246 = vst [vmem:[%s244 + $0x38] sm:$0xff] %v2238
      %v2247 = vadd.f32 %v2231, %v2232
      %v2248 = vadd.f32 %v2247, %v2233
      %v2249 = vadd.f32 %v2248, %v2234
      %v2250 = vadd.f32 %v2249, %v2235
      %v2251 = vadd.f32 %v2250, %v2236
      %v2252 = vadd.f32 %v2251, %v2237
      %v2253 = vadd.f32 %v2252, %v2238
      %v2254 = vrot.slane %v2253, 4
      %v2255 = vadd.f32 %v2253, %v2254
      %v2256 = vrot.slane %v2255, 2
      %v2257 = vadd.f32 %v2255, %v2256
      %v2258 = vrot.slane %v2257, 1
      %v2259 = vadd.f32 %v2257, %v2258
      %v2260 = vmul.f32 %v2231, %v2231
      %v2261 = vmul.f32 %v2232, %v2232
      %v2262 = vmul.f32 %v2233, %v2233
      %v2263 = vmul.f32 %v2234, %v2234
      %v2264 = vmul.f32 %v2235, %v2235
      %v2265 = vmul.f32 %v2236, %v2236
      %v2266 = vmul.f32 %v2237, %v2237
      %v2267 = vmul.f32 %v2238, %v2238
      %v2268 = vadd.f32 %v2260, %v2261
      %v2269 = vadd.f32 %v2268, %v2262
      %v2270 = vadd.f32 %v2269, %v2263
      %v2271 = vadd.f32 %v2270, %v2264
      %v2272 = vadd.f32 %v2271, %v2265
      %v2273 = vadd.f32 %v2272, %v2266
      %v2274 = vadd.f32 %v2273, %v2267
      %v2275 = vrot.slane %v2274, 4
      %v2276 = vadd.f32 %v2274, %v2275
      %v2277 = vrot.slane %v2276, 2
      %v2278 = vadd.f32 %v2276, %v2277
      %v2279 = vrot.slane %v2278, 1
      %v2280 = vadd.f32 %v2278, %v2279
      %vm2281 = vcmask 1040384
      %v2282 = vsel %vm2281, %v2259, %v2280
      %2283 = vst [vmem:[%s253] sm:$0x3] %v2282
      %s2284 = sadd.s32 %s20, %s21
      %s2285 = smul.u32 8, %s2284
      %p2286 = scmp.lt.s32.totalorder %s2285, 15
      %s2287 = scalar_select %p2286, %s2285, 15
      %s2288 = smul.addr %s2287, 8
      %s2289 = scalar_lea.vmem %s3, %s2288
      %p2290 = scmp.lt.s32.totalorder %s20, 1
      %s2291 = scalar_select %p2290, %s20, 1
      %p2292 = scmp.lt.s32.totalorder %s21, 0
      %s2293 = scalar_select %p2292, %s21, 0
      %s2294 = sadd.s32 %s2293, %s2291
      %s2295 = smul.addr %s2294, 2
      %s2296 = scalar_lea.vmem %s4, %s2295
      // Predicated region
      $region33: #{block_a_forward.8} parent=31 // pred_check
        %p2297 = pneg %p118
      $region34: #{block_a_forward.8} parent=31 // pred_check_branch
        %2299 = sbr.rel (%p2297) target = $region36
      $region35: #{block_a_forward.8} parent=31 // pred_region
        %s2300 = sadd.s32 %s20, %s21
        %s2301 = smul.u32 8, %s2300
      $region36: #{block_a_forward.8} parent=31 // pred_fallthru
        _
      // Predicated region
      $region37: #{block_a_forward.8} parent=31 // pred_check
        %p2302 = pneg %p146
      $region38: #{block_a_forward.8} parent=31 // pred_check_branch
        %2304 = sbr.rel (%p2302) target = $region40
      $region39: #{block_a_forward.8} parent=31 // pred_region
        _
      $region40: #{block_a_forward.8} parent=31 // pred_fallthru
        _
    $region32: #{block_a_forward.8} parent=5 // pred_fallthru
      _
    %p2305 = scmp.le.s32.totalorder 2, %s11
    // Predicated region
    $region41: #{block_a_forward.8} parent=5 // pred_check
      %p2306 = pneg %p2305
    $region42: #{block_a_forward.8} parent=5 // pred_check_branch
      %2308 = sbr.rel (%p2306) target = $region44
    $region43: #{block_a_forward.8} parent=5 // pred_region
      %s2309 = ssub.s32 %s11, 2
      // Predicated region
      $region45: #{block_a_forward.8} parent=43 // pred_check
        %p2310 = pneg %p124
      $region46: #{block_a_forward.8} parent=43 // pred_check_branch
        %2312 = sbr.rel (%p2310) target = $region48
      $region47: #{block_a_forward.8} parent=43 // pred_region
        %s2313 = sadd.s32 %s22, %s23
        %s2314 = smul.u32 8, %s2313
        %p2315 = scmp.lt.s32.totalorder %s2314, 15
        %s2316 = scalar_select %p2315, %s2314, 15
        %s2317 = smul.addr %s2316, 8
        %s2318 = scalar_lea.vmem %s3, %s2317
      $region48: #{block_a_forward.8} parent=43 // pred_fallthru
        _
      // Predicated region
      $region49: #{block_a_forward.8} parent=43 // pred_check
        %p2319 = pneg %p152
      $region50: #{block_a_forward.8} parent=43 // pred_check_branch
        %2321 = sbr.rel (%p2319) target = $region52
      $region51: #{block_a_forward.8} parent=43 // pred_region
        %p2322 = scmp.lt.s32.totalorder %s22, 1
        %s2323 = scalar_select %p2322, %s22, 1
        %p2324 = scmp.lt.s32.totalorder %s23, 0
        %s2325 = scalar_select %p2324, %s23, 0
        %s2326 = sadd.s32 %s2325, %s2323
        %s2327 = smul.addr %s2326, 2
        %s2328 = scalar_lea.vmem %s4, %s2327
      $region52: #{block_a_forward.8} parent=43 // pred_fallthru
        _
    $region44: #{block_a_forward.8} parent=5 // pred_fallthru
      _
  $region6: #{block_a_forward.8} parent=0 // loop_footer
    %s15 = sadd.s32 1, %s11
  $region7: #{block_a_forward.8} parent=0 // loop_footer_branch
    %10 = sbr.rel target = $region3
  $region8: #{block_a_forward.8} parent=0 // loop_exit
    _

</llo_original>
